<compile_context>
chip_gen: v5e
topology: v5e:2x2
jax: 0.10.0
libtpu: 0.0.40
codegen_flags: <defaults>
</compile_context>

<pallas_src>
import jax
import jax.numpy as jnp
from jax import lax
from jax.experimental import pallas as pl
from jax.experimental.pallas import tpu as pltpu


# ----------------------------- configuration -------------------------------
D_L, D_A, D_V = 4, 4, 4                   # input dims per modality
DH_L = DH_A = DH_V = 8                    # LSTM hidden dims (equal -> fusable)
MEM_DIM = 8                               # memory size
WINDOW = 2                                # window size (prev_cs ++ new_cs)
TOTAL_H = DH_L + DH_A + DH_V              # 24
ATT_IN = TOTAL_H * WINDOW                 # 48
GAMMA_IN = ATT_IN + MEM_DIM               # 56
FINAL_OUT = TOTAL_H + MEM_DIM             # 32
H_ATT1 = H_ATT2 = H_G1 = H_G2 = H_OUT = 32
OUT_DIM = 1
GATES = 4 * TOTAL_H                       # 96 (fused gate width)
OUT_PAD = 128                             # lane-dense padded output width

T_STEPS = 8                               # sequence length
N_BATCH = 2                               # batch size
D_TOTAL = D_L + D_A + D_V                 # 12


# ------------------------------ kernel body ---------------------------------
def mfn_kernel(x_ref,
               wih_ref, whh_ref, b_ref,
               a1w1_ref, a1b1_ref, a1w2_ref, a1b2_ref,
               a2w1_ref, a2b1_ref, a2w2_ref, a2b2_ref,
               gw1_ref, gb1_ref, gw2_ref, gb2_ref,
               ow1_ref, ob1_ref, ow2_ref, ob2_ref,
               out_ref):
    t_total, n, _ = x_ref.shape

    # ---- hoist weight loads / bias broadcasts out of the time loop ----
    wih = wih_ref[...]                               # (12, 96)
    whh = whh_ref[...]                               # (24, 96)
    b_g = jnp.broadcast_to(b_ref[...], (n, GATES))   # (n, 96)

    a1w1 = a1w1_ref[...]
    a1b1 = jnp.broadcast_to(a1b1_ref[...], (n, H_ATT1))
    a1w2 = a1w2_ref[...]
    a1b2 = jnp.broadcast_to(a1b2_ref[...], (n, ATT_IN))
    a2w1 = a2w1_ref[...]
    a2b1 = jnp.broadcast_to(a2b1_ref[...], (n, H_ATT2))
    a2w2 = a2w2_ref[...]
    a2b2 = jnp.broadcast_to(a2b2_ref[...], (n, MEM_DIM))
    gw1 = gw1_ref[...]                               # (56, 64) fused gamma fc1
    gb1 = jnp.broadcast_to(gb1_ref[...], (n, 2 * H_G1))
    gw2 = gw2_ref[...]                               # (64, 16) block-diag gamma fc2
    gb2 = jnp.broadcast_to(gb2_ref[...], (n, 2 * MEM_DIM))

    def step(t, carry):
        h, c, mem = carry                            # (n,24), (n,24), (n,8)
        x_t = x_ref[t]                               # (n, 12)

        # fused LSTM gates for all 3 modalities: 2 dots instead of 6.
        gates = (jnp.dot(x_t, wih, preferred_element_type=jnp.float32)
                 + jnp.dot(h, whh, preferred_element_type=jnp.float32)
                 + b_g)                              # (n, 96) gate-grouped
        i_g = jax.nn.sigmoid(gates[:, 0 * TOTAL_H:1 * TOTAL_H])
        f_g = jax.nn.sigmoid(gates[:, 1 * TOTAL_H:2 * TOTAL_H])
        g_g = jnp.tanh(gates[:, 2 * TOTAL_H:3 * TOTAL_H])
        o_g = jax.nn.sigmoid(gates[:, 3 * TOTAL_H:4 * TOTAL_H])
        c_new = f_g * c + i_g * g_g                  # (n, 24) = [c_l c_a c_v]
        h_new = o_g * jnp.tanh(c_new)                # (n, 24) = [h_l h_a h_v]

        # attention over cStar = [prev_cs, new_cs]
        c_star = jnp.concatenate([c, c_new], axis=1)             # (n, 48)
        att_hid = jnp.maximum(
            jnp.dot(c_star, a1w1, preferred_element_type=jnp.float32) + a1b1, 0.0)
        attention = jax.nn.softmax(
            jnp.dot(att_hid, a1w2, preferred_element_type=jnp.float32) + a1b2,
            axis=1)
        attended = attention * c_star                            # (n, 48)

        chat_hid = jnp.maximum(
            jnp.dot(attended, a2w1, preferred_element_type=jnp.float32) + a2b1, 0.0)
        c_hat = jnp.tanh(
            jnp.dot(chat_hid, a2w2, preferred_element_type=jnp.float32) + a2b2)

        # fused gamma1/gamma2: 2 dots instead of 4.
        both = jnp.concatenate([attended, mem], axis=1)          # (n, 56)
        g_hid = jnp.maximum(
            jnp.dot(both, gw1, preferred_element_type=jnp.float32) + gb1, 0.0)
        g_out = jax.nn.sigmoid(
            jnp.dot(g_hid, gw2, preferred_element_type=jnp.float32) + gb2)
        gamma1 = g_out[:, :MEM_DIM]
        gamma2 = g_out[:, MEM_DIM:]
        mem_new = gamma1 * mem + gamma2 * c_hat
        return h_new, c_new, mem_new

    h0 = jnp.zeros((n, TOTAL_H), jnp.float32)
    c0 = jnp.zeros((n, TOTAL_H), jnp.float32)
    m0 = jnp.zeros((n, MEM_DIM), jnp.float32)
    h, c, mem = lax.fori_loop(0, t_total, step, (h0, c0, m0), unroll=True)

    # output head, computed exactly once, written lane-dense (padded to 128).
    last_hs = jnp.concatenate([h, mem], axis=1)                  # (n, 32)
    out_hid = jnp.maximum(
        jnp.dot(last_hs, ow1_ref[...], preferred_element_type=jnp.float32)
        + ob1_ref[...], 0.0)
    out_ref[...] = (jnp.dot(out_hid, ow2_ref[...],
                            preferred_element_type=jnp.float32)
                    + ob2_ref[...]).astype(out_ref.dtype)


# ---------------------------- weight packing --------------------------------
def pack_params(p):
    """Pack per-modality LSTM weights block-diagonally with gate-grouped
    columns, fuse gamma MLPs, and lane-pad the output head."""
    f32 = jnp.float32
    dh = DH_L

    wih_bd = jnp.zeros((D_TOTAL, GATES), f32)
    wih_bd = wih_bd.at[:D_L, 0:4 * dh].set(p["wih_l"])
    wih_bd = wih_bd.at[D_L:D_L + D_A, 4 * dh:8 * dh].set(p["wih_a"])
    wih_bd = wih_bd.at[D_L + D_A:, 8 * dh:12 * dh].set(p["wih_v"])

    whh_bd = jnp.zeros((TOTAL_H, GATES), f32)
    whh_bd = whh_bd.at[:dh, 0:4 * dh].set(p["whh_l"])
    whh_bd = whh_bd.at[dh:2 * dh, 4 * dh:8 * dh].set(p["whh_a"])
    whh_bd = whh_bd.at[2 * dh:, 8 * dh:12 * dh].set(p["whh_v"])

    b_bd = jnp.concatenate([p["b_l"], p["b_a"], p["b_v"]], axis=1)   # (1, 96)

    # per-modality [i f g o] blocks -> gate-grouped [i_l i_a i_v | f.. | g.. | o..]
    perm = jnp.array([m * 4 * dh + g * dh + k
                      for g in range(4) for m in range(3) for k in range(dh)],
                     jnp.int32)
    wih_p = wih_bd[:, perm]
    whh_p = whh_bd[:, perm]
    b_p = b_bd[:, perm]

    # fused gamma MLPs
    gw1 = jnp.concatenate([p["g1w1"], p["g2w1"]], axis=1)            # (56, 64)
    gb1 = jnp.concatenate([p["g1b1"], p["g2b1"]], axis=1)            # (1, 64)
    gw2 = jnp.zeros((2 * H_G1, 2 * MEM_DIM), f32)
    gw2 = gw2.at[:H_G1, :MEM_DIM].set(p["g1w2"])
    gw2 = gw2.at[H_G1:, MEM_DIM:].set(p["g2w2"])                     # (64, 16)
    gb2 = jnp.concatenate([p["g1b2"], p["g2b2"]], axis=1)            # (1, 16)

    # lane-dense output head (pad last dim to 128; result lives in column 0)
    ow2 = jnp.zeros((H_OUT, OUT_PAD), f32).at[:, :OUT_DIM].set(p["ow2"])
    ob2 = jnp.zeros((1, OUT_PAD), f32).at[:, :OUT_DIM].set(p["ob2"])

    return [wih_p, whh_p, b_p,
            p["a1w1"], p["a1b1"], p["a1w2"], p["a1b2"],
            p["a2w1"], p["a2b1"], p["a2w2"], p["a2b2"],
            gw1, gb1, gw2, gb2,
            p["ow1"], p["ob1"], ow2, ob2]


# ------------------------------ JAX wrapper ---------------------------------
def _full_spec(a):
    nd = a.ndim
    return pl.BlockSpec(a.shape, lambda i, nd=nd: (0,) * nd)


def mfn_forward(x, params):
    t, n, _ = x.shape
    packed = pack_params(params)

    in_specs = [_full_spec(x)] + [_full_spec(w) for w in packed]
    out_spec = pl.BlockSpec((n, OUT_PAD), lambda i: (0, 0))

    out_padded = pl.pallas_call(
        mfn_kernel,
        out_shape=jax.ShapeDtypeStruct((n, OUT_PAD), jnp.float32),
        grid_spec=pltpu.PrefetchScalarGridSpec(
            num_scalar_prefetch=0,
            grid=(1,),                       # single grid step; T loop is in-kernel
            in_specs=in_specs,
            out_specs=out_spec),
        compiler_params=pltpu.CompilerParams(
            dimension_semantics=("arbitrary",)),
    )(x, *packed)
    return out_padded[:, :OUT_DIM]


# -------------------------- pure-JAX reference ------------------------------
def mfn_reference(x, p):
    t, n, _ = x.shape

    def lstm(xx, h, c, w_ih, w_hh, b, dh):
        g = xx @ w_ih + h @ w_hh + b
        i = jax.nn.sigmoid(g[:, :dh])
        f = jax.nn.sigmoid(g[:, dh:2 * dh])
        gg = jnp.tanh(g[:, 2 * dh:3 * dh])
        o = jax.nn.sigmoid(g[:, 3 * dh:])
        c_new = f * c + i * gg
        return o * jnp.tanh(c_new), c_new

    def mlp2(xx, w1, b1, w2, b2):
        return jnp.maximum(xx @ w1 + b1, 0.0) @ w2 + b2

    h_l = jnp.zeros((n, DH_L)); c_l = jnp.zeros((n, DH_L))
    h_a = jnp.zeros((n, DH_A)); c_a = jnp.zeros((n, DH_A))
    h_v = jnp.zeros((n, DH_V)); c_v = jnp.zeros((n, DH_V))
    mem = jnp.zeros((n, MEM_DIM))

    for i in range(t):
        x_t = x[i]
        x_l = x_t[:, :D_L]; x_a = x_t[:, D_L:D_L + D_A]; x_v = x_t[:, D_L + D_A:]
        pcl, pca, pcv = c_l, c_a, c_v
        h_l, c_l = lstm(x_l, h_l, c_l, p["wih_l"], p["whh_l"], p["b_l"], DH_L)
        h_a, c_a = lstm(x_a, h_a, c_a, p["wih_a"], p["whh_a"], p["b_a"], DH_A)
        h_v, c_v = lstm(x_v, h_v, c_v, p["wih_v"], p["whh_v"], p["b_v"], DH_V)
        c_star = jnp.concatenate([pcl, pca, pcv, c_l, c_a, c_v], axis=1)
        att = jax.nn.softmax(mlp2(c_star, p["a1w1"], p["a1b1"], p["a1w2"], p["a1b2"]), axis=1)
        attended = att * c_star
        c_hat = jnp.tanh(mlp2(attended, p["a2w1"], p["a2b1"], p["a2w2"], p["a2b2"]))
        both = jnp.concatenate([attended, mem], axis=1)
        g1 = jax.nn.sigmoid(mlp2(both, p["g1w1"], p["g1b1"], p["g1w2"], p["g1b2"]))
        g2 = jax.nn.sigmoid(mlp2(both, p["g2w1"], p["g2b1"], p["g2w2"], p["g2b2"]))
        mem = g1 * mem + g2 * c_hat

    last_hs = jnp.concatenate([h_l, h_a, h_v, mem], axis=1)
    return mlp2(last_hs, p["ow1"], p["ob1"], p["ow2"], p["ob2"])


# ------------------------------ param init ----------------------------------
def init_params(key):
    def nxt():
        nonlocal key
        key, sub = jax.random.split(key)
        return sub

    def lin(din, dout):
        w = 0.1 * jax.random.normal(nxt(), (din, dout), jnp.float32)
        b = 0.1 * jax.random.normal(nxt(), (1, dout), jnp.float32)
        return w, b

    def lstm_params(din, dh):
        w_ih = 0.1 * jax.random.normal(nxt(), (din, 4 * dh), jnp.float32)
        w_hh = 0.1 * jax.random.normal(nxt(), (dh, 4 * dh), jnp.float32)
        b = 0.1 * jax.random.normal(nxt(), (1, 4 * dh), jnp.float32)  # bias_ih + bias_hh
        return w_ih, w_hh, b

    p = {}
    p["wih_l"], p["whh_l"], p["b_l"] = lstm_params(D_L, DH_L)
    p["wih_a"], p["whh_a"], p["b_a"] = lstm_params(D_A, DH_A)
    p["wih_v"], p["whh_v"], p["b_v"] = lstm_params(D_V, DH_V)
    p["a1w1"], p["a1b1"] = lin(ATT_IN, H_ATT1)
    p["a1w2"], p["a1b2"] = lin(H_ATT1, ATT_IN)
    p["a2w1"], p["a2b1"] = lin(ATT_IN, H_ATT2)
    p["a2w2"], p["a2b2"] = lin(H_ATT2, MEM_DIM)
    p["g1w1"], p["g1b1"] = lin(GAMMA_IN, H_G1)
    p["g1w2"], p["g1b2"] = lin(H_G1, MEM_DIM)
    p["g2w1"], p["g2b1"] = lin(GAMMA_IN, H_G2)
    p["g2w2"], p["g2b2"] = lin(H_G2, MEM_DIM)
    p["ow1"], p["ob1"] = lin(FINAL_OUT, H_OUT)
    p["ow2"], p["ob2"] = lin(H_OUT, OUT_DIM)
    return p


# ---------------------------------- main -------------------------------------
if __name__ == "__main__":
    key = jax.random.PRNGKey(0)
    key, xkey = jax.random.split(key)
    x = jax.random.normal(xkey, (T_STEPS, N_BATCH, D_TOTAL), jnp.float32)
    params = init_params(key)

    out = mfn_forward(x, params)
    out = jax.block_until_ready(out)

    ref = mfn_reference(x, params)
    assert out.shape == (N_BATCH, OUT_DIM)
    assert jnp.allclose(out, ref, atol=1e-2, rtol=1e-2), (out, ref)

    print("KERNEL_OK")
</pallas_src>

<mosaic_0001>
module attributes {stable_mosaic.version = 11 : i64} {
  func.func @mfn_kernel(%arg0: i32, %arg1: memref<8x2x12xf32, #tpu.memory_space<vmem>>, %arg2: memref<12x96xf32, #tpu.memory_space<vmem>>, %arg3: memref<24x96xf32, #tpu.memory_space<vmem>>, %arg4: memref<1x96xf32, #tpu.memory_space<vmem>>, %arg5: memref<48x32xf32, #tpu.memory_space<vmem>>, %arg6: memref<1x32xf32, #tpu.memory_space<vmem>>, %arg7: memref<32x48xf32, #tpu.memory_space<vmem>>, %arg8: memref<1x48xf32, #tpu.memory_space<vmem>>, %arg9: memref<48x32xf32, #tpu.memory_space<vmem>>, %arg10: memref<1x32xf32, #tpu.memory_space<vmem>>, %arg11: memref<32x8xf32, #tpu.memory_space<vmem>>, %arg12: memref<1x8xf32, #tpu.memory_space<vmem>>, %arg13: memref<56x64xf32, #tpu.memory_space<vmem>>, %arg14: memref<1x64xf32, #tpu.memory_space<vmem>>, %arg15: memref<64x16xf32, #tpu.memory_space<vmem>>, %arg16: memref<1x16xf32, #tpu.memory_space<vmem>>, %arg17: memref<32x32xf32, #tpu.memory_space<vmem>>, %arg18: memref<1x32xf32, #tpu.memory_space<vmem>>, %arg19: memref<32x128xf32, #tpu.memory_space<vmem>>, %arg20: memref<1x128xf32, #tpu.memory_space<vmem>>, %arg21: memref<2x128xf32, #tpu.memory_space<vmem>>) attributes {dimension_semantics = [#tpu.dimension_semantics<arbitrary>], iteration_bounds = array<i64: 1>, scalar_prefetch = 0 : i64, scratch_operands = 0 : i64, tpu.core_type = #tpu.core_type<tc>, window_params = [{pipeline_mode = #tpu.pipeline_mode<synchronous>, transform_indices = @transform_0, window_bounds = array<i64: 8, 2, 12>}, {pipeline_mode = #tpu.pipeline_mode<synchronous>, transform_indices = @transform_1, window_bounds = array<i64: 12, 96>}, {pipeline_mode = #tpu.pipeline_mode<synchronous>, transform_indices = @transform_2, window_bounds = array<i64: 24, 96>}, {pipeline_mode = #tpu.pipeline_mode<synchronous>, transform_indices = @transform_3, window_bounds = array<i64: 1, 96>}, {pipeline_mode = #tpu.pipeline_mode<synchronous>, transform_indices = @transform_4, window_bounds = array<i64: 48, 32>}, {pipeline_mode = #tpu.pipeline_mode<synchronous>, transform_indices = @transform_5, window_bounds = array<i64: 1, 32>}, {pipeline_mode = #tpu.pipeline_mode<synchronous>, transform_indices = @transform_6, window_bounds = array<i64: 32, 48>}, {pipeline_mode = #tpu.pipeline_mode<synchronous>, transform_indices = @transform_7, window_bounds = array<i64: 1, 48>}, {pipeline_mode = #tpu.pipeline_mode<synchronous>, transform_indices = @transform_8, window_bounds = array<i64: 48, 32>}, {pipeline_mode = #tpu.pipeline_mode<synchronous>, transform_indices = @transform_9, window_bounds = array<i64: 1, 32>}, {pipeline_mode = #tpu.pipeline_mode<synchronous>, transform_indices = @transform_10, window_bounds = array<i64: 32, 8>}, {pipeline_mode = #tpu.pipeline_mode<synchronous>, transform_indices = @transform_11, window_bounds = array<i64: 1, 8>}, {pipeline_mode = #tpu.pipeline_mode<synchronous>, transform_indices = @transform_12, window_bounds = array<i64: 56, 64>}, {pipeline_mode = #tpu.pipeline_mode<synchronous>, transform_indices = @transform_13, window_bounds = array<i64: 1, 64>}, {pipeline_mode = #tpu.pipeline_mode<synchronous>, transform_indices = @transform_14, window_bounds = array<i64: 64, 16>}, {pipeline_mode = #tpu.pipeline_mode<synchronous>, transform_indices = @transform_15, window_bounds = array<i64: 1, 16>}, {pipeline_mode = #tpu.pipeline_mode<synchronous>, transform_indices = @transform_16, window_bounds = array<i64: 32, 32>}, {pipeline_mode = #tpu.pipeline_mode<synchronous>, transform_indices = @transform_17, window_bounds = array<i64: 1, 32>}, {pipeline_mode = #tpu.pipeline_mode<synchronous>, transform_indices = @transform_18, window_bounds = array<i64: 32, 128>}, {pipeline_mode = #tpu.pipeline_mode<synchronous>, transform_indices = @transform_19, window_bounds = array<i64: 1, 128>}, {pipeline_mode = #tpu.pipeline_mode<synchronous>, transform_indices = @transform_20, window_bounds = array<i64: 2, 128>}]} {
    %c0 = arith.constant 0 : index
    %c0_0 = arith.constant 0 : index
    %0 = vector.load %arg2[%c0, %c0_0] : memref<12x96xf32, #tpu.memory_space<vmem>>, vector<12x96xf32>
    %c0_1 = arith.constant 0 : index
    %c0_2 = arith.constant 0 : index
    %1 = vector.load %arg3[%c0_1, %c0_2] : memref<24x96xf32, #tpu.memory_space<vmem>>, vector<24x96xf32>
    %c0_3 = arith.constant 0 : index
    %c0_4 = arith.constant 0 : index
    %2 = vector.load %arg4[%c0_3, %c0_4] : memref<1x96xf32, #tpu.memory_space<vmem>>, vector<1x96xf32>
    %3 = vector.shape_cast %2 : vector<1x96xf32> to vector<1x96xf32>
    %4 = vector.broadcast %3 : vector<1x96xf32> to vector<2x96xf32>
    %c0_5 = arith.constant 0 : index
    %c0_6 = arith.constant 0 : index
    %5 = vector.load %arg5[%c0_5, %c0_6] : memref<48x32xf32, #tpu.memory_space<vmem>>, vector<48x32xf32>
    %c0_7 = arith.constant 0 : index
    %c0_8 = arith.constant 0 : index
    %6 = vector.load %arg6[%c0_7, %c0_8] : memref<1x32xf32, #tpu.memory_space<vmem>>, vector<1x32xf32>
    %7 = vector.shape_cast %6 : vector<1x32xf32> to vector<1x32xf32>
    %8 = vector.broadcast %7 : vector<1x32xf32> to vector<2x32xf32>
    %c0_9 = arith.constant 0 : index
    %c0_10 = arith.constant 0 : index
    %9 = vector.load %arg7[%c0_9, %c0_10] : memref<32x48xf32, #tpu.memory_space<vmem>>, vector<32x48xf32>
    %c0_11 = arith.constant 0 : index
    %c0_12 = arith.constant 0 : index
    %10 = vector.load %arg8[%c0_11, %c0_12] : memref<1x48xf32, #tpu.memory_space<vmem>>, vector<1x48xf32>
    %11 = vector.shape_cast %10 : vector<1x48xf32> to vector<1x48xf32>
    %12 = vector.broadcast %11 : vector<1x48xf32> to vector<2x48xf32>
    %c0_13 = arith.constant 0 : index
    %c0_14 = arith.constant 0 : index
    %13 = vector.load %arg9[%c0_13, %c0_14] : memref<48x32xf32, #tpu.memory_space<vmem>>, vector<48x32xf32>
    %c0_15 = arith.constant 0 : index
    %c0_16 = arith.constant 0 : index
    %14 = vector.load %arg10[%c0_15, %c0_16] : memref<1x32xf32, #tpu.memory_space<vmem>>, vector<1x32xf32>
    %15 = vector.shape_cast %14 : vector<1x32xf32> to vector<1x32xf32>
    %16 = vector.broadcast %15 : vector<1x32xf32> to vector<2x32xf32>
    %c0_17 = arith.constant 0 : index
    %c0_18 = arith.constant 0 : index
    %17 = vector.load %arg11[%c0_17, %c0_18] : memref<32x8xf32, #tpu.memory_space<vmem>>, vector<32x8xf32>
    %c0_19 = arith.constant 0 : index
    %c0_20 = arith.constant 0 : index
    %18 = vector.load %arg12[%c0_19, %c0_20] : memref<1x8xf32, #tpu.memory_space<vmem>>, vector<1x8xf32>
    %19 = vector.shape_cast %18 : vector<1x8xf32> to vector<1x8xf32>
    %20 = vector.broadcast %19 : vector<1x8xf32> to vector<2x8xf32>
    %c0_21 = arith.constant 0 : index
    %c0_22 = arith.constant 0 : index
    %21 = vector.load %arg13[%c0_21, %c0_22] : memref<56x64xf32, #tpu.memory_space<vmem>>, vector<56x64xf32>
    %c0_23 = arith.constant 0 : index
    %c0_24 = arith.constant 0 : index
    %22 = vector.load %arg14[%c0_23, %c0_24] : memref<1x64xf32, #tpu.memory_space<vmem>>, vector<1x64xf32>
    %23 = vector.shape_cast %22 : vector<1x64xf32> to vector<1x64xf32>
    %24 = vector.broadcast %23 : vector<1x64xf32> to vector<2x64xf32>
    %c0_25 = arith.constant 0 : index
    %c0_26 = arith.constant 0 : index
    %25 = vector.load %arg15[%c0_25, %c0_26] : memref<64x16xf32, #tpu.memory_space<vmem>>, vector<64x16xf32>
    %c0_27 = arith.constant 0 : index
    %c0_28 = arith.constant 0 : index
    %26 = vector.load %arg16[%c0_27, %c0_28] : memref<1x16xf32, #tpu.memory_space<vmem>>, vector<1x16xf32>
    %27 = vector.shape_cast %26 : vector<1x16xf32> to vector<1x16xf32>
    %28 = vector.broadcast %27 : vector<1x16xf32> to vector<2x16xf32>
    %cst = arith.constant 0.000000e+00 : f32
    %29 = vector.broadcast %cst : f32 to vector<2x24xf32>
    %cst_29 = arith.constant 0.000000e+00 : f32
    %30 = vector.broadcast %cst_29 : f32 to vector<2x24xf32>
    %cst_30 = arith.constant 0.000000e+00 : f32
    %31 = vector.broadcast %cst_30 : f32 to vector<2x8xf32>
    %c0_i32 = arith.constant 0 : i32
    %32 = arith.index_cast %c0_i32 : i32 to index
    %c0_31 = arith.constant 0 : index
    %c0_32 = arith.constant 0 : index
    %33 = vector.load %arg1[%32, %c0_31, %c0_32] : memref<8x2x12xf32, #tpu.memory_space<vmem>>, vector<1x2x12xf32>
    %34 = vector.shape_cast %33 : vector<1x2x12xf32> to vector<2x12xf32>
    %cst_33 = arith.constant dense<0.000000e+00> : vector<2x96xf32>
    %35 = tpu.matmul %34, %0, %cst_33 {dimension_numbers = #tpu.dot_dimension_numbers<[1], [0], [0], [1], [0, 0, 1, 1], [], []>} : vector<2x12xf32>, vector<12x96xf32>, vector<2x96xf32> -> vector<2x96xf32>
    %cst_34 = arith.constant dense<0.000000e+00> : vector<2x96xf32>
    %36 = tpu.matmul %29, %1, %cst_34 {dimension_numbers = #tpu.dot_dimension_numbers<[1], [0], [0], [1], [0, 0, 1, 1], [], []>} : vector<2x24xf32>, vector<24x96xf32>, vector<2x96xf32> -> vector<2x96xf32>
    %37 = arith.addf %35, %36 : vector<2x96xf32>
    %38 = arith.addf %37, %4 : vector<2x96xf32>
    %39 = vector.extract_strided_slice %38 {offsets = [0, 0], sizes = [2, 24], strides = [1, 1]} : vector<2x96xf32> to vector<2x24xf32>
    %40 = arith.negf %39 : vector<2x24xf32>
    %41 = math.exp %40 : vector<2x24xf32>
    %cst_35 = arith.constant 1.000000e+00 : f32
    %42 = vector.broadcast %cst_35 : f32 to vector<2x24xf32>
    %43 = arith.addf %42, %41 : vector<2x24xf32>
    %44 = arith.divf %42, %43 : vector<2x24xf32>
    %45 = vector.extract_strided_slice %38 {offsets = [0, 24], sizes = [2, 24], strides = [1, 1]} : vector<2x96xf32> to vector<2x24xf32>
    %46 = arith.negf %45 : vector<2x24xf32>
    %47 = math.exp %46 : vector<2x24xf32>
    %cst_36 = arith.constant 1.000000e+00 : f32
    %48 = vector.broadcast %cst_36 : f32 to vector<2x24xf32>
    %49 = arith.addf %48, %47 : vector<2x24xf32>
    %50 = arith.divf %48, %49 : vector<2x24xf32>
    %51 = vector.extract_strided_slice %38 {offsets = [0, 48], sizes = [2, 24], strides = [1, 1]} : vector<2x96xf32> to vector<2x24xf32>
    %52 = math.tanh %51 : vector<2x24xf32>
    %53 = vector.extract_strided_slice %38 {offsets = [0, 72], sizes = [2, 24], strides = [1, 1]} : vector<2x96xf32> to vector<2x24xf32>
    %54 = arith.negf %53 : vector<2x24xf32>
    %55 = math.exp %54 : vector<2x24xf32>
    %cst_37 = arith.constant 1.000000e+00 : f32
    %56 = vector.broadcast %cst_37 : f32 to vector<2x24xf32>
    %57 = arith.addf %56, %55 : vector<2x24xf32>
    %58 = arith.divf %56, %57 : vector<2x24xf32>
    %59 = arith.mulf %50, %30 : vector<2x24xf32>
    %60 = arith.mulf %44, %52 : vector<2x24xf32>
    %61 = arith.addf %59, %60 : vector<2x24xf32>
    %62 = math.tanh %61 : vector<2x24xf32>
    %63 = arith.mulf %58, %62 : vector<2x24xf32>
    %64 = tpu.concatenate %30, %61 in 1 : vector<2x24xf32>, vector<2x24xf32> -> vector<2x48xf32>
    %cst_38 = arith.constant dense<0.000000e+00> : vector<2x32xf32>
    %65 = tpu.matmul %64, %5, %cst_38 {dimension_numbers = #tpu.dot_dimension_numbers<[1], [0], [0], [1], [0, 0, 1, 1], [], []>} : vector<2x48xf32>, vector<48x32xf32>, vector<2x32xf32> -> vector<2x32xf32>
    %66 = arith.addf %65, %8 : vector<2x32xf32>
    %cst_39 = arith.constant 0.000000e+00 : f32
    %67 = vector.broadcast %cst_39 : f32 to vector<2x32xf32>
    %68 = arith.maximumf %66, %67 : vector<2x32xf32>
    %cst_40 = arith.constant dense<0.000000e+00> : vector<2x48xf32>
    %69 = tpu.matmul %68, %9, %cst_40 {dimension_numbers = #tpu.dot_dimension_numbers<[1], [0], [0], [1], [0, 0, 1, 1], [], []>} : vector<2x32xf32>, vector<32x48xf32>, vector<2x48xf32> -> vector<2x48xf32>
    %70 = arith.addf %69, %12 : vector<2x48xf32>
    %cst_41 = arith.constant dense<0xFF800000> : vector<2xf32>
    %71 = vector.multi_reduction <maximumf>, %70, %cst_41 [1] : vector<2x48xf32> to vector<2xf32>
    %cst_42 = arith.constant 0xFF800000 : f32
    %72 = vector.broadcast %cst_42 : f32 to vector<2xf32>
    %73 = arith.maximumf %72, %71 : vector<2xf32>
    %74 = vector.shape_cast %73 : vector<2xf32> to vector<2x1xf32>
    %75 = vector.broadcast %74 : vector<2x1xf32> to vector<2x48xf32>
    %76 = arith.subf %70, %75 : vector<2x48xf32>
    %77 = math.exp %76 : vector<2x48xf32>
    %cst_43 = arith.constant dense<0.000000e+00> : vector<2xf32>
    %78 = vector.multi_reduction <add>, %77, %cst_43 [1] : vector<2x48xf32> to vector<2xf32>
    %79 = vector.shape_cast %78 : vector<2xf32> to vector<2x1xf32>
    %80 = vector.broadcast %79 : vector<2x1xf32> to vector<2x48xf32>
    %81 = arith.divf %77, %80 : vector<2x48xf32>
    %82 = arith.mulf %81, %64 : vector<2x48xf32>
    %cst_44 = arith.constant dense<0.000000e+00> : vector<2x32xf32>
    %83 = tpu.matmul %82, %13, %cst_44 {dimension_numbers = #tpu.dot_dimension_numbers<[1], [0], [0], [1], [0, 0, 1, 1], [], []>} : vector<2x48xf32>, vector<48x32xf32>, vector<2x32xf32> -> vector<2x32xf32>
    %84 = arith.addf %83, %16 : vector<2x32xf32>
    %cst_45 = arith.constant 0.000000e+00 : f32
    %85 = vector.broadcast %cst_45 : f32 to vector<2x32xf32>
    %86 = arith.maximumf %84, %85 : vector<2x32xf32>
    %cst_46 = arith.constant dense<0.000000e+00> : vector<2x8xf32>
    %87 = tpu.matmul %86, %17, %cst_46 {dimension_numbers = #tpu.dot_dimension_numbers<[1], [0], [0], [1], [0, 0, 1, 1], [], []>} : vector<2x32xf32>, vector<32x8xf32>, vector<2x8xf32> -> vector<2x8xf32>
    %88 = arith.addf %87, %20 : vector<2x8xf32>
    %89 = math.tanh %88 : vector<2x8xf32>
    %90 = tpu.concatenate %82, %31 in 1 : vector<2x48xf32>, vector<2x8xf32> -> vector<2x56xf32>
    %cst_47 = arith.constant dense<0.000000e+00> : vector<2x64xf32>
    %91 = tpu.matmul %90, %21, %cst_47 {dimension_numbers = #tpu.dot_dimension_numbers<[1], [0], [0], [1], [0, 0, 1, 1], [], []>} : vector<2x56xf32>, vector<56x64xf32>, vector<2x64xf32> -> vector<2x64xf32>
    %92 = arith.addf %91, %24 : vector<2x64xf32>
    %cst_48 = arith.constant 0.000000e+00 : f32
    %93 = vector.broadcast %cst_48 : f32 to vector<2x64xf32>
    %94 = arith.maximumf %92, %93 : vector<2x64xf32>
    %cst_49 = arith.constant dense<0.000000e+00> : vector<2x16xf32>
    %95 = tpu.matmul %94, %25, %cst_49 {dimension_numbers = #tpu.dot_dimension_numbers<[1], [0], [0], [1], [0, 0, 1, 1], [], []>} : vector<2x64xf32>, vector<64x16xf32>, vector<2x16xf32> -> vector<2x16xf32>
    %96 = arith.addf %95, %28 : vector<2x16xf32>
    %97 = arith.negf %96 : vector<2x16xf32>
    %98 = math.exp %97 : vector<2x16xf32>
    %cst_50 = arith.constant 1.000000e+00 : f32
    %99 = vector.broadcast %cst_50 : f32 to vector<2x16xf32>
    %100 = arith.addf %99, %98 : vector<2x16xf32>
    %101 = arith.divf %99, %100 : vector<2x16xf32>
    %102 = vector.extract_strided_slice %101 {offsets = [0, 0], sizes = [2, 8], strides = [1, 1]} : vector<2x16xf32> to vector<2x8xf32>
    %103 = vector.extract_strided_slice %101 {offsets = [0, 8], sizes = [2, 8], strides = [1, 1]} : vector<2x16xf32> to vector<2x8xf32>
    %104 = arith.mulf %102, %31 : vector<2x8xf32>
    %105 = arith.mulf %103, %89 : vector<2x8xf32>
    %106 = arith.addf %104, %105 : vector<2x8xf32>
    %c1_i32 = arith.constant 1 : i32
    %107 = arith.index_cast %c1_i32 : i32 to index
    %c0_51 = arith.constant 0 : index
    %c0_52 = arith.constant 0 : index
    %108 = vector.load %arg1[%107, %c0_51, %c0_52] : memref<8x2x12xf32, #tpu.memory_space<vmem>>, vector<1x2x12xf32>
    %109 = vector.shape_cast %108 : vector<1x2x12xf32> to vector<2x12xf32>
    %cst_53 = arith.constant dense<0.000000e+00> : vector<2x96xf32>
    %110 = tpu.matmul %109, %0, %cst_53 {dimension_numbers = #tpu.dot_dimension_numbers<[1], [0], [0], [1], [0, 0, 1, 1], [], []>} : vector<2x12xf32>, vector<12x96xf32>, vector<2x96xf32> -> vector<2x96xf32>
    %cst_54 = arith.constant dense<0.000000e+00> : vector<2x96xf32>
    %111 = tpu.matmul %63, %1, %cst_54 {dimension_numbers = #tpu.dot_dimension_numbers<[1], [0], [0], [1], [0, 0, 1, 1], [], []>} : vector<2x24xf32>, vector<24x96xf32>, vector<2x96xf32> -> vector<2x96xf32>
    %112 = arith.addf %110, %111 : vector<2x96xf32>
    %113 = arith.addf %112, %4 : vector<2x96xf32>
    %114 = vector.extract_strided_slice %113 {offsets = [0, 0], sizes = [2, 24], strides = [1, 1]} : vector<2x96xf32> to vector<2x24xf32>
    %115 = arith.negf %114 : vector<2x24xf32>
    %116 = math.exp %115 : vector<2x24xf32>
    %cst_55 = arith.constant 1.000000e+00 : f32
    %117 = vector.broadcast %cst_55 : f32 to vector<2x24xf32>
    %118 = arith.addf %117, %116 : vector<2x24xf32>
    %119 = arith.divf %117, %118 : vector<2x24xf32>
    %120 = vector.extract_strided_slice %113 {offsets = [0, 24], sizes = [2, 24], strides = [1, 1]} : vector<2x96xf32> to vector<2x24xf32>
    %121 = arith.negf %120 : vector<2x24xf32>
    %122 = math.exp %121 : vector<2x24xf32>
    %cst_56 = arith.constant 1.000000e+00 : f32
    %123 = vector.broadcast %cst_56 : f32 to vector<2x24xf32>
    %124 = arith.addf %123, %122 : vector<2x24xf32>
    %125 = arith.divf %123, %124 : vector<2x24xf32>
    %126 = vector.extract_strided_slice %113 {offsets = [0, 48], sizes = [2, 24], strides = [1, 1]} : vector<2x96xf32> to vector<2x24xf32>
    %127 = math.tanh %126 : vector<2x24xf32>
    %128 = vector.extract_strided_slice %113 {offsets = [0, 72], sizes = [2, 24], strides = [1, 1]} : vector<2x96xf32> to vector<2x24xf32>
    %129 = arith.negf %128 : vector<2x24xf32>
    %130 = math.exp %129 : vector<2x24xf32>
    %cst_57 = arith.constant 1.000000e+00 : f32
    %131 = vector.broadcast %cst_57 : f32 to vector<2x24xf32>
    %132 = arith.addf %131, %130 : vector<2x24xf32>
    %133 = arith.divf %131, %132 : vector<2x24xf32>
    %134 = arith.mulf %125, %61 : vector<2x24xf32>
    %135 = arith.mulf %119, %127 : vector<2x24xf32>
    %136 = arith.addf %134, %135 : vector<2x24xf32>
    %137 = math.tanh %136 : vector<2x24xf32>
    %138 = arith.mulf %133, %137 : vector<2x24xf32>
    %139 = tpu.concatenate %61, %136 in 1 : vector<2x24xf32>, vector<2x24xf32> -> vector<2x48xf32>
    %cst_58 = arith.constant dense<0.000000e+00> : vector<2x32xf32>
    %140 = tpu.matmul %139, %5, %cst_58 {dimension_numbers = #tpu.dot_dimension_numbers<[1], [0], [0], [1], [0, 0, 1, 1], [], []>} : vector<2x48xf32>, vector<48x32xf32>, vector<2x32xf32> -> vector<2x32xf32>
    %141 = arith.addf %140, %8 : vector<2x32xf32>
    %cst_59 = arith.constant 0.000000e+00 : f32
    %142 = vector.broadcast %cst_59 : f32 to vector<2x32xf32>
    %143 = arith.maximumf %141, %142 : vector<2x32xf32>
    %cst_60 = arith.constant dense<0.000000e+00> : vector<2x48xf32>
    %144 = tpu.matmul %143, %9, %cst_60 {dimension_numbers = #tpu.dot_dimension_numbers<[1], [0], [0], [1], [0, 0, 1, 1], [], []>} : vector<2x32xf32>, vector<32x48xf32>, vector<2x48xf32> -> vector<2x48xf32>
    %145 = arith.addf %144, %12 : vector<2x48xf32>
    %cst_61 = arith.constant dense<0xFF800000> : vector<2xf32>
    %146 = vector.multi_reduction <maximumf>, %145, %cst_61 [1] : vector<2x48xf32> to vector<2xf32>
    %cst_62 = arith.constant 0xFF800000 : f32
    %147 = vector.broadcast %cst_62 : f32 to vector<2xf32>
    %148 = arith.maximumf %147, %146 : vector<2xf32>
    %149 = vector.shape_cast %148 : vector<2xf32> to vector<2x1xf32>
    %150 = vector.broadcast %149 : vector<2x1xf32> to vector<2x48xf32>
    %151 = arith.subf %145, %150 : vector<2x48xf32>
    %152 = math.exp %151 : vector<2x48xf32>
    %cst_63 = arith.constant dense<0.000000e+00> : vector<2xf32>
    %153 = vector.multi_reduction <add>, %152, %cst_63 [1] : vector<2x48xf32> to vector<2xf32>
    %154 = vector.shape_cast %153 : vector<2xf32> to vector<2x1xf32>
    %155 = vector.broadcast %154 : vector<2x1xf32> to vector<2x48xf32>
    %156 = arith.divf %152, %155 : vector<2x48xf32>
    %157 = arith.mulf %156, %139 : vector<2x48xf32>
    %cst_64 = arith.constant dense<0.000000e+00> : vector<2x32xf32>
    %158 = tpu.matmul %157, %13, %cst_64 {dimension_numbers = #tpu.dot_dimension_numbers<[1], [0], [0], [1], [0, 0, 1, 1], [], []>} : vector<2x48xf32>, vector<48x32xf32>, vector<2x32xf32> -> vector<2x32xf32>
    %159 = arith.addf %158, %16 : vector<2x32xf32>
    %cst_65 = arith.constant 0.000000e+00 : f32
    %160 = vector.broadcast %cst_65 : f32 to vector<2x32xf32>
    %161 = arith.maximumf %159, %160 : vector<2x32xf32>
    %cst_66 = arith.constant dense<0.000000e+00> : vector<2x8xf32>
    %162 = tpu.matmul %161, %17, %cst_66 {dimension_numbers = #tpu.dot_dimension_numbers<[1], [0], [0], [1], [0, 0, 1, 1], [], []>} : vector<2x32xf32>, vector<32x8xf32>, vector<2x8xf32> -> vector<2x8xf32>
    %163 = arith.addf %162, %20 : vector<2x8xf32>
    %164 = math.tanh %163 : vector<2x8xf32>
    %165 = tpu.concatenate %157, %106 in 1 : vector<2x48xf32>, vector<2x8xf32> -> vector<2x56xf32>
    %cst_67 = arith.constant dense<0.000000e+00> : vector<2x64xf32>
    %166 = tpu.matmul %165, %21, %cst_67 {dimension_numbers = #tpu.dot_dimension_numbers<[1], [0], [0], [1], [0, 0, 1, 1], [], []>} : vector<2x56xf32>, vector<56x64xf32>, vector<2x64xf32> -> vector<2x64xf32>
    %167 = arith.addf %166, %24 : vector<2x64xf32>
    %cst_68 = arith.constant 0.000000e+00 : f32
    %168 = vector.broadcast %cst_68 : f32 to vector<2x64xf32>
    %169 = arith.maximumf %167, %168 : vector<2x64xf32>
    %cst_69 = arith.constant dense<0.000000e+00> : vector<2x16xf32>
    %170 = tpu.matmul %169, %25, %cst_69 {dimension_numbers = #tpu.dot_dimension_numbers<[1], [0], [0], [1], [0, 0, 1, 1], [], []>} : vector<2x64xf32>, vector<64x16xf32>, vector<2x16xf32> -> vector<2x16xf32>
    %171 = arith.addf %170, %28 : vector<2x16xf32>
    %172 = arith.negf %171 : vector<2x16xf32>
    %173 = math.exp %172 : vector<2x16xf32>
    %cst_70 = arith.constant 1.000000e+00 : f32
    %174 = vector.broadcast %cst_70 : f32 to vector<2x16xf32>
    %175 = arith.addf %174, %173 : vector<2x16xf32>
    %176 = arith.divf %174, %175 : vector<2x16xf32>
    %177 = vector.extract_strided_slice %176 {offsets = [0, 0], sizes = [2, 8], strides = [1, 1]} : vector<2x16xf32> to vector<2x8xf32>
    %178 = vector.extract_strided_slice %176 {offsets = [0, 8], sizes = [2, 8], strides = [1, 1]} : vector<2x16xf32> to vector<2x8xf32>
    %179 = arith.mulf %177, %106 : vector<2x8xf32>
    %180 = arith.mulf %178, %164 : vector<2x8xf32>
    %181 = arith.addf %179, %180 : vector<2x8xf32>
    %c2_i32 = arith.constant 2 : i32
    %182 = arith.index_cast %c2_i32 : i32 to index
    %c0_71 = arith.constant 0 : index
    %c0_72 = arith.constant 0 : index
    %183 = vector.load %arg1[%182, %c0_71, %c0_72] : memref<8x2x12xf32, #tpu.memory_space<vmem>>, vector<1x2x12xf32>
    %184 = vector.shape_cast %183 : vector<1x2x12xf32> to vector<2x12xf32>
    %cst_73 = arith.constant dense<0.000000e+00> : vector<2x96xf32>
    %185 = tpu.matmul %184, %0, %cst_73 {dimension_numbers = #tpu.dot_dimension_numbers<[1], [0], [0], [1], [0, 0, 1, 1], [], []>} : vector<2x12xf32>, vector<12x96xf32>, vector<2x96xf32> -> vector<2x96xf32>
    %cst_74 = arith.constant dense<0.000000e+00> : vector<2x96xf32>
    %186 = tpu.matmul %138, %1, %cst_74 {dimension_numbers = #tpu.dot_dimension_numbers<[1], [0], [0], [1], [0, 0, 1, 1], [], []>} : vector<2x24xf32>, vector<24x96xf32>, vector<2x96xf32> -> vector<2x96xf32>
    %187 = arith.addf %185, %186 : vector<2x96xf32>
    %188 = arith.addf %187, %4 : vector<2x96xf32>
    %189 = vector.extract_strided_slice %188 {offsets = [0, 0], sizes = [2, 24], strides = [1, 1]} : vector<2x96xf32> to vector<2x24xf32>
    %190 = arith.negf %189 : vector<2x24xf32>
    %191 = math.exp %190 : vector<2x24xf32>
    %cst_75 = arith.constant 1.000000e+00 : f32
    %192 = vector.broadcast %cst_75 : f32 to vector<2x24xf32>
    %193 = arith.addf %192, %191 : vector<2x24xf32>
    %194 = arith.divf %192, %193 : vector<2x24xf32>
    %195 = vector.extract_strided_slice %188 {offsets = [0, 24], sizes = [2, 24], strides = [1, 1]} : vector<2x96xf32> to vector<2x24xf32>
    %196 = arith.negf %195 : vector<2x24xf32>
    %197 = math.exp %196 : vector<2x24xf32>
    %cst_76 = arith.constant 1.000000e+00 : f32
    %198 = vector.broadcast %cst_76 : f32 to vector<2x24xf32>
    %199 = arith.addf %198, %197 : vector<2x24xf32>
    %200 = arith.divf %198, %199 : vector<2x24xf32>
    %201 = vector.extract_strided_slice %188 {offsets = [0, 48], sizes = [2, 24], strides = [1, 1]} : vector<2x96xf32> to vector<2x24xf32>
    %202 = math.tanh %201 : vector<2x24xf32>
    %203 = vector.extract_strided_slice %188 {offsets = [0, 72], sizes = [2, 24], strides = [1, 1]} : vector<2x96xf32> to vector<2x24xf32>
    %204 = arith.negf %203 : vector<2x24xf32>
    %205 = math.exp %204 : vector<2x24xf32>
    %cst_77 = arith.constant 1.000000e+00 : f32
    %206 = vector.broadcast %cst_77 : f32 to vector<2x24xf32>
    %207 = arith.addf %206, %205 : vector<2x24xf32>
    %208 = arith.divf %206, %207 : vector<2x24xf32>
    %209 = arith.mulf %200, %136 : vector<2x24xf32>
    %210 = arith.mulf %194, %202 : vector<2x24xf32>
    %211 = arith.addf %209, %210 : vector<2x24xf32>
    %212 = math.tanh %211 : vector<2x24xf32>
    %213 = arith.mulf %208, %212 : vector<2x24xf32>
    %214 = tpu.concatenate %136, %211 in 1 : vector<2x24xf32>, vector<2x24xf32> -> vector<2x48xf32>
    %cst_78 = arith.constant dense<0.000000e+00> : vector<2x32xf32>
    %215 = tpu.matmul %214, %5, %cst_78 {dimension_numbers = #tpu.dot_dimension_numbers<[1], [0], [0], [1], [0, 0, 1, 1], [], []>} : vector<2x48xf32>, vector<48x32xf32>, vector<2x32xf32> -> vector<2x32xf32>
    %216 = arith.addf %215, %8 : vector<2x32xf32>
    %cst_79 = arith.constant 0.000000e+00 : f32
    %217 = vector.broadcast %cst_79 : f32 to vector<2x32xf32>
    %218 = arith.maximumf %216, %217 : vector<2x32xf32>
    %cst_80 = arith.constant dense<0.000000e+00> : vector<2x48xf32>
    %219 = tpu.matmul %218, %9, %cst_80 {dimension_numbers = #tpu.dot_dimension_numbers<[1], [0], [0], [1], [0, 0, 1, 1], [], []>} : vector<2x32xf32>, vector<32x48xf32>, vector<2x48xf32> -> vector<2x48xf32>
    %220 = arith.addf %219, %12 : vector<2x48xf32>
    %cst_81 = arith.constant dense<0xFF800000> : vector<2xf32>
    %221 = vector.multi_reduction <maximumf>, %220, %cst_81 [1] : vector<2x48xf32> to vector<2xf32>
    %cst_82 = arith.constant 0xFF800000 : f32
    %222 = vector.broadcast %cst_82 : f32 to vector<2xf32>
    %223 = arith.maximumf %222, %221 : vector<2xf32>
    %224 = vector.shape_cast %223 : vector<2xf32> to vector<2x1xf32>
    %225 = vector.broadcast %224 : vector<2x1xf32> to vector<2x48xf32>
    %226 = arith.subf %220, %225 : vector<2x48xf32>
    %227 = math.exp %226 : vector<2x48xf32>
    %cst_83 = arith.constant dense<0.000000e+00> : vector<2xf32>
    %228 = vector.multi_reduction <add>, %227, %cst_83 [1] : vector<2x48xf32> to vector<2xf32>
    %229 = vector.shape_cast %228 : vector<2xf32> to vector<2x1xf32>
    %230 = vector.broadcast %229 : vector<2x1xf32> to vector<2x48xf32>
    %231 = arith.divf %227, %230 : vector<2x48xf32>
    %232 = arith.mulf %231, %214 : vector<2x48xf32>
    %cst_84 = arith.constant dense<0.000000e+00> : vector<2x32xf32>
    %233 = tpu.matmul %232, %13, %cst_84 {dimension_numbers = #tpu.dot_dimension_numbers<[1], [0], [0], [1], [0, 0, 1, 1], [], []>} : vector<2x48xf32>, vector<48x32xf32>, vector<2x32xf32> -> vector<2x32xf32>
    %234 = arith.addf %233, %16 : vector<2x32xf32>
    %cst_85 = arith.constant 0.000000e+00 : f32
    %235 = vector.broadcast %cst_85 : f32 to vector<2x32xf32>
    %236 = arith.maximumf %234, %235 : vector<2x32xf32>
    %cst_86 = arith.constant dense<0.000000e+00> : vector<2x8xf32>
    %237 = tpu.matmul %236, %17, %cst_86 {dimension_numbers = #tpu.dot_dimension_numbers<[1], [0], [0], [1], [0, 0, 1, 1], [], []>} : vector<2x32xf32>, vector<32x8xf32>, vector<2x8xf32> -> vector<2x8xf32>
    %238 = arith.addf %237, %20 : vector<2x8xf32>
    %239 = math.tanh %238 : vector<2x8xf32>
    %240 = tpu.concatenate %232, %181 in 1 : vector<2x48xf32>, vector<2x8xf32> -> vector<2x56xf32>
    %cst_87 = arith.constant dense<0.000000e+00> : vector<2x64xf32>
    %241 = tpu.matmul %240, %21, %cst_87 {dimension_numbers = #tpu.dot_dimension_numbers<[1], [0], [0], [1], [0, 0, 1, 1], [], []>} : vector<2x56xf32>, vector<56x64xf32>, vector<2x64xf32> -> vector<2x64xf32>
    %242 = arith.addf %241, %24 : vector<2x64xf32>
    %cst_88 = arith.constant 0.000000e+00 : f32
    %243 = vector.broadcast %cst_88 : f32 to vector<2x64xf32>
    %244 = arith.maximumf %242, %243 : vector<2x64xf32>
    %cst_89 = arith.constant dense<0.000000e+00> : vector<2x16xf32>
    %245 = tpu.matmul %244, %25, %cst_89 {dimension_numbers = #tpu.dot_dimension_numbers<[1], [0], [0], [1], [0, 0, 1, 1], [], []>} : vector<2x64xf32>, vector<64x16xf32>, vector<2x16xf32> -> vector<2x16xf32>
    %246 = arith.addf %245, %28 : vector<2x16xf32>
    %247 = arith.negf %246 : vector<2x16xf32>
    %248 = math.exp %247 : vector<2x16xf32>
    %cst_90 = arith.constant 1.000000e+00 : f32
    %249 = vector.broadcast %cst_90 : f32 to vector<2x16xf32>
    %250 = arith.addf %249, %248 : vector<2x16xf32>
    %251 = arith.divf %249, %250 : vector<2x16xf32>
    %252 = vector.extract_strided_slice %251 {offsets = [0, 0], sizes = [2, 8], strides = [1, 1]} : vector<2x16xf32> to vector<2x8xf32>
    %253 = vector.extract_strided_slice %251 {offsets = [0, 8], sizes = [2, 8], strides = [1, 1]} : vector<2x16xf32> to vector<2x8xf32>
    %254 = arith.mulf %252, %181 : vector<2x8xf32>
    %255 = arith.mulf %253, %239 : vector<2x8xf32>
    %256 = arith.addf %254, %255 : vector<2x8xf32>
    %c3_i32 = arith.constant 3 : i32
    %257 = arith.index_cast %c3_i32 : i32 to index
    %c0_91 = arith.constant 0 : index
    %c0_92 = arith.constant 0 : index
    %258 = vector.load %arg1[%257, %c0_91, %c0_92] : memref<8x2x12xf32, #tpu.memory_space<vmem>>, vector<1x2x12xf32>
    %259 = vector.shape_cast %258 : vector<1x2x12xf32> to vector<2x12xf32>
    %cst_93 = arith.constant dense<0.000000e+00> : vector<2x96xf32>
    %260 = tpu.matmul %259, %0, %cst_93 {dimension_numbers = #tpu.dot_dimension_numbers<[1], [0], [0], [1], [0, 0, 1, 1], [], []>} : vector<2x12xf32>, vector<12x96xf32>, vector<2x96xf32> -> vector<2x96xf32>
    %cst_94 = arith.constant dense<0.000000e+00> : vector<2x96xf32>
    %261 = tpu.matmul %213, %1, %cst_94 {dimension_numbers = #tpu.dot_dimension_numbers<[1], [0], [0], [1], [0, 0, 1, 1], [], []>} : vector<2x24xf32>, vector<24x96xf32>, vector<2x96xf32> -> vector<2x96xf32>
    %262 = arith.addf %260, %261 : vector<2x96xf32>
    %263 = arith.addf %262, %4 : vector<2x96xf32>
    %264 = vector.extract_strided_slice %263 {offsets = [0, 0], sizes = [2, 24], strides = [1, 1]} : vector<2x96xf32> to vector<2x24xf32>
    %265 = arith.negf %264 : vector<2x24xf32>
    %266 = math.exp %265 : vector<2x24xf32>
    %cst_95 = arith.constant 1.000000e+00 : f32
    %267 = vector.broadcast %cst_95 : f32 to vector<2x24xf32>
    %268 = arith.addf %267, %266 : vector<2x24xf32>
    %269 = arith.divf %267, %268 : vector<2x24xf32>
    %270 = vector.extract_strided_slice %263 {offsets = [0, 24], sizes = [2, 24], strides = [1, 1]} : vector<2x96xf32> to vector<2x24xf32>
    %271 = arith.negf %270 : vector<2x24xf32>
    %272 = math.exp %271 : vector<2x24xf32>
    %cst_96 = arith.constant 1.000000e+00 : f32
    %273 = vector.broadcast %cst_96 : f32 to vector<2x24xf32>
    %274 = arith.addf %273, %272 : vector<2x24xf32>
    %275 = arith.divf %273, %274 : vector<2x24xf32>
    %276 = vector.extract_strided_slice %263 {offsets = [0, 48], sizes = [2, 24], strides = [1, 1]} : vector<2x96xf32> to vector<2x24xf32>
    %277 = math.tanh %276 : vector<2x24xf32>
    %278 = vector.extract_strided_slice %263 {offsets = [0, 72], sizes = [2, 24], strides = [1, 1]} : vector<2x96xf32> to vector<2x24xf32>
    %279 = arith.negf %278 : vector<2x24xf32>
    %280 = math.exp %279 : vector<2x24xf32>
    %cst_97 = arith.constant 1.000000e+00 : f32
    %281 = vector.broadcast %cst_97 : f32 to vector<2x24xf32>
    %282 = arith.addf %281, %280 : vector<2x24xf32>
    %283 = arith.divf %281, %282 : vector<2x24xf32>
    %284 = arith.mulf %275, %211 : vector<2x24xf32>
    %285 = arith.mulf %269, %277 : vector<2x24xf32>
    %286 = arith.addf %284, %285 : vector<2x24xf32>
    %287 = math.tanh %286 : vector<2x24xf32>
    %288 = arith.mulf %283, %287 : vector<2x24xf32>
    %289 = tpu.concatenate %211, %286 in 1 : vector<2x24xf32>, vector<2x24xf32> -> vector<2x48xf32>
    %cst_98 = arith.constant dense<0.000000e+00> : vector<2x32xf32>
    %290 = tpu.matmul %289, %5, %cst_98 {dimension_numbers = #tpu.dot_dimension_numbers<[1], [0], [0], [1], [0, 0, 1, 1], [], []>} : vector<2x48xf32>, vector<48x32xf32>, vector<2x32xf32> -> vector<2x32xf32>
    %291 = arith.addf %290, %8 : vector<2x32xf32>
    %cst_99 = arith.constant 0.000000e+00 : f32
    %292 = vector.broadcast %cst_99 : f32 to vector<2x32xf32>
    %293 = arith.maximumf %291, %292 : vector<2x32xf32>
    %cst_100 = arith.constant dense<0.000000e+00> : vector<2x48xf32>
    %294 = tpu.matmul %293, %9, %cst_100 {dimension_numbers = #tpu.dot_dimension_numbers<[1], [0], [0], [1], [0, 0, 1, 1], [], []>} : vector<2x32xf32>, vector<32x48xf32>, vector<2x48xf32> -> vector<2x48xf32>
    %295 = arith.addf %294, %12 : vector<2x48xf32>
    %cst_101 = arith.constant dense<0xFF800000> : vector<2xf32>
    %296 = vector.multi_reduction <maximumf>, %295, %cst_101 [1] : vector<2x48xf32> to vector<2xf32>
    %cst_102 = arith.constant 0xFF800000 : f32
    %297 = vector.broadcast %cst_102 : f32 to vector<2xf32>
    %298 = arith.maximumf %297, %296 : vector<2xf32>
    %299 = vector.shape_cast %298 : vector<2xf32> to vector<2x1xf32>
    %300 = vector.broadcast %299 : vector<2x1xf32> to vector<2x48xf32>
    %301 = arith.subf %295, %300 : vector<2x48xf32>
    %302 = math.exp %301 : vector<2x48xf32>
    %cst_103 = arith.constant dense<0.000000e+00> : vector<2xf32>
    %303 = vector.multi_reduction <add>, %302, %cst_103 [1] : vector<2x48xf32> to vector<2xf32>
    %304 = vector.shape_cast %303 : vector<2xf32> to vector<2x1xf32>
    %305 = vector.broadcast %304 : vector<2x1xf32> to vector<2x48xf32>
    %306 = arith.divf %302, %305 : vector<2x48xf32>
    %307 = arith.mulf %306, %289 : vector<2x48xf32>
    %cst_104 = arith.constant dense<0.000000e+00> : vector<2x32xf32>
    %308 = tpu.matmul %307, %13, %cst_104 {dimension_numbers = #tpu.dot_dimension_numbers<[1], [0], [0], [1], [0, 0, 1, 1], [], []>} : vector<2x48xf32>, vector<48x32xf32>, vector<2x32xf32> -> vector<2x32xf32>
    %309 = arith.addf %308, %16 : vector<2x32xf32>
    %cst_105 = arith.constant 0.000000e+00 : f32
    %310 = vector.broadcast %cst_105 : f32 to vector<2x32xf32>
    %311 = arith.maximumf %309, %310 : vector<2x32xf32>
    %cst_106 = arith.constant dense<0.000000e+00> : vector<2x8xf32>
    %312 = tpu.matmul %311, %17, %cst_106 {dimension_numbers = #tpu.dot_dimension_numbers<[1], [0], [0], [1], [0, 0, 1, 1], [], []>} : vector<2x32xf32>, vector<32x8xf32>, vector<2x8xf32> -> vector<2x8xf32>
    %313 = arith.addf %312, %20 : vector<2x8xf32>
    %314 = math.tanh %313 : vector<2x8xf32>
    %315 = tpu.concatenate %307, %256 in 1 : vector<2x48xf32>, vector<2x8xf32> -> vector<2x56xf32>
    %cst_107 = arith.constant dense<0.000000e+00> : vector<2x64xf32>
    %316 = tpu.matmul %315, %21, %cst_107 {dimension_numbers = #tpu.dot_dimension_numbers<[1], [0], [0], [1], [0, 0, 1, 1], [], []>} : vector<2x56xf32>, vector<56x64xf32>, vector<2x64xf32> -> vector<2x64xf32>
    %317 = arith.addf %316, %24 : vector<2x64xf32>
    %cst_108 = arith.constant 0.000000e+00 : f32
    %318 = vector.broadcast %cst_108 : f32 to vector<2x64xf32>
    %319 = arith.maximumf %317, %318 : vector<2x64xf32>
    %cst_109 = arith.constant dense<0.000000e+00> : vector<2x16xf32>
    %320 = tpu.matmul %319, %25, %cst_109 {dimension_numbers = #tpu.dot_dimension_numbers<[1], [0], [0], [1], [0, 0, 1, 1], [], []>} : vector<2x64xf32>, vector<64x16xf32>, vector<2x16xf32> -> vector<2x16xf32>
    %321 = arith.addf %320, %28 : vector<2x16xf32>
    %322 = arith.negf %321 : vector<2x16xf32>
    %323 = math.exp %322 : vector<2x16xf32>
    %cst_110 = arith.constant 1.000000e+00 : f32
    %324 = vector.broadcast %cst_110 : f32 to vector<2x16xf32>
    %325 = arith.addf %324, %323 : vector<2x16xf32>
    %326 = arith.divf %324, %325 : vector<2x16xf32>
    %327 = vector.extract_strided_slice %326 {offsets = [0, 0], sizes = [2, 8], strides = [1, 1]} : vector<2x16xf32> to vector<2x8xf32>
    %328 = vector.extract_strided_slice %326 {offsets = [0, 8], sizes = [2, 8], strides = [1, 1]} : vector<2x16xf32> to vector<2x8xf32>
    %329 = arith.mulf %327, %256 : vector<2x8xf32>
    %330 = arith.mulf %328, %314 : vector<2x8xf32>
    %331 = arith.addf %329, %330 : vector<2x8xf32>
    %c4_i32 = arith.constant 4 : i32
    %332 = arith.index_cast %c4_i32 : i32 to index
    %c0_111 = arith.constant 0 : index
    %c0_112 = arith.constant 0 : index
    %333 = vector.load %arg1[%332, %c0_111, %c0_112] : memref<8x2x12xf32, #tpu.memory_space<vmem>>, vector<1x2x12xf32>
    %334 = vector.shape_cast %333 : vector<1x2x12xf32> to vector<2x12xf32>
    %cst_113 = arith.constant dense<0.000000e+00> : vector<2x96xf32>
    %335 = tpu.matmul %334, %0, %cst_113 {dimension_numbers = #tpu.dot_dimension_numbers<[1], [0], [0], [1], [0, 0, 1, 1], [], []>} : vector<2x12xf32>, vector<12x96xf32>, vector<2x96xf32> -> vector<2x96xf32>
    %cst_114 = arith.constant dense<0.000000e+00> : vector<2x96xf32>
    %336 = tpu.matmul %288, %1, %cst_114 {dimension_numbers = #tpu.dot_dimension_numbers<[1], [0], [0], [1], [0, 0, 1, 1], [], []>} : vector<2x24xf32>, vector<24x96xf32>, vector<2x96xf32> -> vector<2x96xf32>
    %337 = arith.addf %335, %336 : vector<2x96xf32>
    %338 = arith.addf %337, %4 : vector<2x96xf32>
    %339 = vector.extract_strided_slice %338 {offsets = [0, 0], sizes = [2, 24], strides = [1, 1]} : vector<2x96xf32> to vector<2x24xf32>
    %340 = arith.negf %339 : vector<2x24xf32>
    %341 = math.exp %340 : vector<2x24xf32>
    %cst_115 = arith.constant 1.000000e+00 : f32
    %342 = vector.broadcast %cst_115 : f32 to vector<2x24xf32>
    %343 = arith.addf %342, %341 : vector<2x24xf32>
    %344 = arith.divf %342, %343 : vector<2x24xf32>
    %345 = vector.extract_strided_slice %338 {offsets = [0, 24], sizes = [2, 24], strides = [1, 1]} : vector<2x96xf32> to vector<2x24xf32>
    %346 = arith.negf %345 : vector<2x24xf32>
    %347 = math.exp %346 : vector<2x24xf32>
    %cst_116 = arith.constant 1.000000e+00 : f32
    %348 = vector.broadcast %cst_116 : f32 to vector<2x24xf32>
    %349 = arith.addf %348, %347 : vector<2x24xf32>
    %350 = arith.divf %348, %349 : vector<2x24xf32>
    %351 = vector.extract_strided_slice %338 {offsets = [0, 48], sizes = [2, 24], strides = [1, 1]} : vector<2x96xf32> to vector<2x24xf32>
    %352 = math.tanh %351 : vector<2x24xf32>
    %353 = vector.extract_strided_slice %338 {offsets = [0, 72], sizes = [2, 24], strides = [1, 1]} : vector<2x96xf32> to vector<2x24xf32>
    %354 = arith.negf %353 : vector<2x24xf32>
    %355 = math.exp %354 : vector<2x24xf32>
    %cst_117 = arith.constant 1.000000e+00 : f32
    %356 = vector.broadcast %cst_117 : f32 to vector<2x24xf32>
    %357 = arith.addf %356, %355 : vector<2x24xf32>
    %358 = arith.divf %356, %357 : vector<2x24xf32>
    %359 = arith.mulf %350, %286 : vector<2x24xf32>
    %360 = arith.mulf %344, %352 : vector<2x24xf32>
    %361 = arith.addf %359, %360 : vector<2x24xf32>
    %362 = math.tanh %361 : vector<2x24xf32>
    %363 = arith.mulf %358, %362 : vector<2x24xf32>
    %364 = tpu.concatenate %286, %361 in 1 : vector<2x24xf32>, vector<2x24xf32> -> vector<2x48xf32>
    %cst_118 = arith.constant dense<0.000000e+00> : vector<2x32xf32>
    %365 = tpu.matmul %364, %5, %cst_118 {dimension_numbers = #tpu.dot_dimension_numbers<[1], [0], [0], [1], [0, 0, 1, 1], [], []>} : vector<2x48xf32>, vector<48x32xf32>, vector<2x32xf32> -> vector<2x32xf32>
    %366 = arith.addf %365, %8 : vector<2x32xf32>
    %cst_119 = arith.constant 0.000000e+00 : f32
    %367 = vector.broadcast %cst_119 : f32 to vector<2x32xf32>
    %368 = arith.maximumf %366, %367 : vector<2x32xf32>
    %cst_120 = arith.constant dense<0.000000e+00> : vector<2x48xf32>
    %369 = tpu.matmul %368, %9, %cst_120 {dimension_numbers = #tpu.dot_dimension_numbers<[1], [0], [0], [1], [0, 0, 1, 1], [], []>} : vector<2x32xf32>, vector<32x48xf32>, vector<2x48xf32> -> vector<2x48xf32>
    %370 = arith.addf %369, %12 : vector<2x48xf32>
    %cst_121 = arith.constant dense<0xFF800000> : vector<2xf32>
    %371 = vector.multi_reduction <maximumf>, %370, %cst_121 [1] : vector<2x48xf32> to vector<2xf32>
    %cst_122 = arith.constant 0xFF800000 : f32
    %372 = vector.broadcast %cst_122 : f32 to vector<2xf32>
    %373 = arith.maximumf %372, %371 : vector<2xf32>
    %374 = vector.shape_cast %373 : vector<2xf32> to vector<2x1xf32>
    %375 = vector.broadcast %374 : vector<2x1xf32> to vector<2x48xf32>
    %376 = arith.subf %370, %375 : vector<2x48xf32>
    %377 = math.exp %376 : vector<2x48xf32>
    %cst_123 = arith.constant dense<0.000000e+00> : vector<2xf32>
    %378 = vector.multi_reduction <add>, %377, %cst_123 [1] : vector<2x48xf32> to vector<2xf32>
    %379 = vector.shape_cast %378 : vector<2xf32> to vector<2x1xf32>
    %380 = vector.broadcast %379 : vector<2x1xf32> to vector<2x48xf32>
    %381 = arith.divf %377, %380 : vector<2x48xf32>
    %382 = arith.mulf %381, %364 : vector<2x48xf32>
    %cst_124 = arith.constant dense<0.000000e+00> : vector<2x32xf32>
    %383 = tpu.matmul %382, %13, %cst_124 {dimension_numbers = #tpu.dot_dimension_numbers<[1], [0], [0], [1], [0, 0, 1, 1], [], []>} : vector<2x48xf32>, vector<48x32xf32>, vector<2x32xf32> -> vector<2x32xf32>
    %384 = arith.addf %383, %16 : vector<2x32xf32>
    %cst_125 = arith.constant 0.000000e+00 : f32
    %385 = vector.broadcast %cst_125 : f32 to vector<2x32xf32>
    %386 = arith.maximumf %384, %385 : vector<2x32xf32>
    %cst_126 = arith.constant dense<0.000000e+00> : vector<2x8xf32>
    %387 = tpu.matmul %386, %17, %cst_126 {dimension_numbers = #tpu.dot_dimension_numbers<[1], [0], [0], [1], [0, 0, 1, 1], [], []>} : vector<2x32xf32>, vector<32x8xf32>, vector<2x8xf32> -> vector<2x8xf32>
    %388 = arith.addf %387, %20 : vector<2x8xf32>
    %389 = math.tanh %388 : vector<2x8xf32>
    %390 = tpu.concatenate %382, %331 in 1 : vector<2x48xf32>, vector<2x8xf32> -> vector<2x56xf32>
    %cst_127 = arith.constant dense<0.000000e+00> : vector<2x64xf32>
    %391 = tpu.matmul %390, %21, %cst_127 {dimension_numbers = #tpu.dot_dimension_numbers<[1], [0], [0], [1], [0, 0, 1, 1], [], []>} : vector<2x56xf32>, vector<56x64xf32>, vector<2x64xf32> -> vector<2x64xf32>
    %392 = arith.addf %391, %24 : vector<2x64xf32>
    %cst_128 = arith.constant 0.000000e+00 : f32
    %393 = vector.broadcast %cst_128 : f32 to vector<2x64xf32>
    %394 = arith.maximumf %392, %393 : vector<2x64xf32>
    %cst_129 = arith.constant dense<0.000000e+00> : vector<2x16xf32>
    %395 = tpu.matmul %394, %25, %cst_129 {dimension_numbers = #tpu.dot_dimension_numbers<[1], [0], [0], [1], [0, 0, 1, 1], [], []>} : vector<2x64xf32>, vector<64x16xf32>, vector<2x16xf32> -> vector<2x16xf32>
    %396 = arith.addf %395, %28 : vector<2x16xf32>
    %397 = arith.negf %396 : vector<2x16xf32>
    %398 = math.exp %397 : vector<2x16xf32>
    %cst_130 = arith.constant 1.000000e+00 : f32
    %399 = vector.broadcast %cst_130 : f32 to vector<2x16xf32>
    %400 = arith.addf %399, %398 : vector<2x16xf32>
    %401 = arith.divf %399, %400 : vector<2x16xf32>
    %402 = vector.extract_strided_slice %401 {offsets = [0, 0], sizes = [2, 8], strides = [1, 1]} : vector<2x16xf32> to vector<2x8xf32>
    %403 = vector.extract_strided_slice %401 {offsets = [0, 8], sizes = [2, 8], strides = [1, 1]} : vector<2x16xf32> to vector<2x8xf32>
    %404 = arith.mulf %402, %331 : vector<2x8xf32>
    %405 = arith.mulf %403, %389 : vector<2x8xf32>
    %406 = arith.addf %404, %405 : vector<2x8xf32>
    %c5_i32 = arith.constant 5 : i32
    %407 = arith.index_cast %c5_i32 : i32 to index
    %c0_131 = arith.constant 0 : index
    %c0_132 = arith.constant 0 : index
    %408 = vector.load %arg1[%407, %c0_131, %c0_132] : memref<8x2x12xf32, #tpu.memory_space<vmem>>, vector<1x2x12xf32>
    %409 = vector.shape_cast %408 : vector<1x2x12xf32> to vector<2x12xf32>
    %cst_133 = arith.constant dense<0.000000e+00> : vector<2x96xf32>
    %410 = tpu.matmul %409, %0, %cst_133 {dimension_numbers = #tpu.dot_dimension_numbers<[1], [0], [0], [1], [0, 0, 1, 1], [], []>} : vector<2x12xf32>, vector<12x96xf32>, vector<2x96xf32> -> vector<2x96xf32>
    %cst_134 = arith.constant dense<0.000000e+00> : vector<2x96xf32>
    %411 = tpu.matmul %363, %1, %cst_134 {dimension_numbers = #tpu.dot_dimension_numbers<[1], [0], [0], [1], [0, 0, 1, 1], [], []>} : vector<2x24xf32>, vector<24x96xf32>, vector<2x96xf32> -> vector<2x96xf32>
    %412 = arith.addf %410, %411 : vector<2x96xf32>
    %413 = arith.addf %412, %4 : vector<2x96xf32>
    %414 = vector.extract_strided_slice %413 {offsets = [0, 0], sizes = [2, 24], strides = [1, 1]} : vector<2x96xf32> to vector<2x24xf32>
    %415 = arith.negf %414 : vector<2x24xf32>
    %416 = math.exp %415 : vector<2x24xf32>
    %cst_135 = arith.constant 1.000000e+00 : f32
    %417 = vector.broadcast %cst_135 : f32 to vector<2x24xf32>
    %418 = arith.addf %417, %416 : vector<2x24xf32>
    %419 = arith.divf %417, %418 : vector<2x24xf32>
    %420 = vector.extract_strided_slice %413 {offsets = [0, 24], sizes = [2, 24], strides = [1, 1]} : vector<2x96xf32> to vector<2x24xf32>
    %421 = arith.negf %420 : vector<2x24xf32>
    %422 = math.exp %421 : vector<2x24xf32>
    %cst_136 = arith.constant 1.000000e+00 : f32
    %423 = vector.broadcast %cst_136 : f32 to vector<2x24xf32>
    %424 = arith.addf %423, %422 : vector<2x24xf32>
    %425 = arith.divf %423, %424 : vector<2x24xf32>
    %426 = vector.extract_strided_slice %413 {offsets = [0, 48], sizes = [2, 24], strides = [1, 1]} : vector<2x96xf32> to vector<2x24xf32>
    %427 = math.tanh %426 : vector<2x24xf32>
    %428 = vector.extract_strided_slice %413 {offsets = [0, 72], sizes = [2, 24], strides = [1, 1]} : vector<2x96xf32> to vector<2x24xf32>
    %429 = arith.negf %428 : vector<2x24xf32>
    %430 = math.exp %429 : vector<2x24xf32>
    %cst_137 = arith.constant 1.000000e+00 : f32
    %431 = vector.broadcast %cst_137 : f32 to vector<2x24xf32>
    %432 = arith.addf %431, %430 : vector<2x24xf32>
    %433 = arith.divf %431, %432 : vector<2x24xf32>
    %434 = arith.mulf %425, %361 : vector<2x24xf32>
    %435 = arith.mulf %419, %427 : vector<2x24xf32>
    %436 = arith.addf %434, %435 : vector<2x24xf32>
    %437 = math.tanh %436 : vector<2x24xf32>
    %438 = arith.mulf %433, %437 : vector<2x24xf32>
    %439 = tpu.concatenate %361, %436 in 1 : vector<2x24xf32>, vector<2x24xf32> -> vector<2x48xf32>
    %cst_138 = arith.constant dense<0.000000e+00> : vector<2x32xf32>
    %440 = tpu.matmul %439, %5, %cst_138 {dimension_numbers = #tpu.dot_dimension_numbers<[1], [0], [0], [1], [0, 0, 1, 1], [], []>} : vector<2x48xf32>, vector<48x32xf32>, vector<2x32xf32> -> vector<2x32xf32>
    %441 = arith.addf %440, %8 : vector<2x32xf32>
    %cst_139 = arith.constant 0.000000e+00 : f32
    %442 = vector.broadcast %cst_139 : f32 to vector<2x32xf32>
    %443 = arith.maximumf %441, %442 : vector<2x32xf32>
    %cst_140 = arith.constant dense<0.000000e+00> : vector<2x48xf32>
    %444 = tpu.matmul %443, %9, %cst_140 {dimension_numbers = #tpu.dot_dimension_numbers<[1], [0], [0], [1], [0, 0, 1, 1], [], []>} : vector<2x32xf32>, vector<32x48xf32>, vector<2x48xf32> -> vector<2x48xf32>
    %445 = arith.addf %444, %12 : vector<2x48xf32>
    %cst_141 = arith.constant dense<0xFF800000> : vector<2xf32>
    %446 = vector.multi_reduction <maximumf>, %445, %cst_141 [1] : vector<2x48xf32> to vector<2xf32>
    %cst_142 = arith.constant 0xFF800000 : f32
    %447 = vector.broadcast %cst_142 : f32 to vector<2xf32>
    %448 = arith.maximumf %447, %446 : vector<2xf32>
    %449 = vector.shape_cast %448 : vector<2xf32> to vector<2x1xf32>
    %450 = vector.broadcast %449 : vector<2x1xf32> to vector<2x48xf32>
    %451 = arith.subf %445, %450 : vector<2x48xf32>
    %452 = math.exp %451 : vector<2x48xf32>
    %cst_143 = arith.constant dense<0.000000e+00> : vector<2xf32>
    %453 = vector.multi_reduction <add>, %452, %cst_143 [1] : vector<2x48xf32> to vector<2xf32>
    %454 = vector.shape_cast %453 : vector<2xf32> to vector<2x1xf32>
    %455 = vector.broadcast %454 : vector<2x1xf32> to vector<2x48xf32>
    %456 = arith.divf %452, %455 : vector<2x48xf32>
    %457 = arith.mulf %456, %439 : vector<2x48xf32>
    %cst_144 = arith.constant dense<0.000000e+00> : vector<2x32xf32>
    %458 = tpu.matmul %457, %13, %cst_144 {dimension_numbers = #tpu.dot_dimension_numbers<[1], [0], [0], [1], [0, 0, 1, 1], [], []>} : vector<2x48xf32>, vector<48x32xf32>, vector<2x32xf32> -> vector<2x32xf32>
    %459 = arith.addf %458, %16 : vector<2x32xf32>
    %cst_145 = arith.constant 0.000000e+00 : f32
    %460 = vector.broadcast %cst_145 : f32 to vector<2x32xf32>
    %461 = arith.maximumf %459, %460 : vector<2x32xf32>
    %cst_146 = arith.constant dense<0.000000e+00> : vector<2x8xf32>
    %462 = tpu.matmul %461, %17, %cst_146 {dimension_numbers = #tpu.dot_dimension_numbers<[1], [0], [0], [1], [0, 0, 1, 1], [], []>} : vector<2x32xf32>, vector<32x8xf32>, vector<2x8xf32> -> vector<2x8xf32>
    %463 = arith.addf %462, %20 : vector<2x8xf32>
    %464 = math.tanh %463 : vector<2x8xf32>
    %465 = tpu.concatenate %457, %406 in 1 : vector<2x48xf32>, vector<2x8xf32> -> vector<2x56xf32>
    %cst_147 = arith.constant dense<0.000000e+00> : vector<2x64xf32>
    %466 = tpu.matmul %465, %21, %cst_147 {dimension_numbers = #tpu.dot_dimension_numbers<[1], [0], [0], [1], [0, 0, 1, 1], [], []>} : vector<2x56xf32>, vector<56x64xf32>, vector<2x64xf32> -> vector<2x64xf32>
    %467 = arith.addf %466, %24 : vector<2x64xf32>
    %cst_148 = arith.constant 0.000000e+00 : f32
    %468 = vector.broadcast %cst_148 : f32 to vector<2x64xf32>
    %469 = arith.maximumf %467, %468 : vector<2x64xf32>
    %cst_149 = arith.constant dense<0.000000e+00> : vector<2x16xf32>
    %470 = tpu.matmul %469, %25, %cst_149 {dimension_numbers = #tpu.dot_dimension_numbers<[1], [0], [0], [1], [0, 0, 1, 1], [], []>} : vector<2x64xf32>, vector<64x16xf32>, vector<2x16xf32> -> vector<2x16xf32>
    %471 = arith.addf %470, %28 : vector<2x16xf32>
    %472 = arith.negf %471 : vector<2x16xf32>
    %473 = math.exp %472 : vector<2x16xf32>
    %cst_150 = arith.constant 1.000000e+00 : f32
    %474 = vector.broadcast %cst_150 : f32 to vector<2x16xf32>
    %475 = arith.addf %474, %473 : vector<2x16xf32>
    %476 = arith.divf %474, %475 : vector<2x16xf32>
    %477 = vector.extract_strided_slice %476 {offsets = [0, 0], sizes = [2, 8], strides = [1, 1]} : vector<2x16xf32> to vector<2x8xf32>
    %478 = vector.extract_strided_slice %476 {offsets = [0, 8], sizes = [2, 8], strides = [1, 1]} : vector<2x16xf32> to vector<2x8xf32>
    %479 = arith.mulf %477, %406 : vector<2x8xf32>
    %480 = arith.mulf %478, %464 : vector<2x8xf32>
    %481 = arith.addf %479, %480 : vector<2x8xf32>
    %c6_i32 = arith.constant 6 : i32
    %482 = arith.index_cast %c6_i32 : i32 to index
    %c0_151 = arith.constant 0 : index
    %c0_152 = arith.constant 0 : index
    %483 = vector.load %arg1[%482, %c0_151, %c0_152] : memref<8x2x12xf32, #tpu.memory_space<vmem>>, vector<1x2x12xf32>
    %484 = vector.shape_cast %483 : vector<1x2x12xf32> to vector<2x12xf32>
    %cst_153 = arith.constant dense<0.000000e+00> : vector<2x96xf32>
    %485 = tpu.matmul %484, %0, %cst_153 {dimension_numbers = #tpu.dot_dimension_numbers<[1], [0], [0], [1], [0, 0, 1, 1], [], []>} : vector<2x12xf32>, vector<12x96xf32>, vector<2x96xf32> -> vector<2x96xf32>
    %cst_154 = arith.constant dense<0.000000e+00> : vector<2x96xf32>
    %486 = tpu.matmul %438, %1, %cst_154 {dimension_numbers = #tpu.dot_dimension_numbers<[1], [0], [0], [1], [0, 0, 1, 1], [], []>} : vector<2x24xf32>, vector<24x96xf32>, vector<2x96xf32> -> vector<2x96xf32>
    %487 = arith.addf %485, %486 : vector<2x96xf32>
    %488 = arith.addf %487, %4 : vector<2x96xf32>
    %489 = vector.extract_strided_slice %488 {offsets = [0, 0], sizes = [2, 24], strides = [1, 1]} : vector<2x96xf32> to vector<2x24xf32>
    %490 = arith.negf %489 : vector<2x24xf32>
    %491 = math.exp %490 : vector<2x24xf32>
    %cst_155 = arith.constant 1.000000e+00 : f32
    %492 = vector.broadcast %cst_155 : f32 to vector<2x24xf32>
    %493 = arith.addf %492, %491 : vector<2x24xf32>
    %494 = arith.divf %492, %493 : vector<2x24xf32>
    %495 = vector.extract_strided_slice %488 {offsets = [0, 24], sizes = [2, 24], strides = [1, 1]} : vector<2x96xf32> to vector<2x24xf32>
    %496 = arith.negf %495 : vector<2x24xf32>
    %497 = math.exp %496 : vector<2x24xf32>
    %cst_156 = arith.constant 1.000000e+00 : f32
    %498 = vector.broadcast %cst_156 : f32 to vector<2x24xf32>
    %499 = arith.addf %498, %497 : vector<2x24xf32>
    %500 = arith.divf %498, %499 : vector<2x24xf32>
    %501 = vector.extract_strided_slice %488 {offsets = [0, 48], sizes = [2, 24], strides = [1, 1]} : vector<2x96xf32> to vector<2x24xf32>
    %502 = math.tanh %501 : vector<2x24xf32>
    %503 = vector.extract_strided_slice %488 {offsets = [0, 72], sizes = [2, 24], strides = [1, 1]} : vector<2x96xf32> to vector<2x24xf32>
    %504 = arith.negf %503 : vector<2x24xf32>
    %505 = math.exp %504 : vector<2x24xf32>
    %cst_157 = arith.constant 1.000000e+00 : f32
    %506 = vector.broadcast %cst_157 : f32 to vector<2x24xf32>
    %507 = arith.addf %506, %505 : vector<2x24xf32>
    %508 = arith.divf %506, %507 : vector<2x24xf32>
    %509 = arith.mulf %500, %436 : vector<2x24xf32>
    %510 = arith.mulf %494, %502 : vector<2x24xf32>
    %511 = arith.addf %509, %510 : vector<2x24xf32>
    %512 = math.tanh %511 : vector<2x24xf32>
    %513 = arith.mulf %508, %512 : vector<2x24xf32>
    %514 = tpu.concatenate %436, %511 in 1 : vector<2x24xf32>, vector<2x24xf32> -> vector<2x48xf32>
    %cst_158 = arith.constant dense<0.000000e+00> : vector<2x32xf32>
    %515 = tpu.matmul %514, %5, %cst_158 {dimension_numbers = #tpu.dot_dimension_numbers<[1], [0], [0], [1], [0, 0, 1, 1], [], []>} : vector<2x48xf32>, vector<48x32xf32>, vector<2x32xf32> -> vector<2x32xf32>
    %516 = arith.addf %515, %8 : vector<2x32xf32>
    %cst_159 = arith.constant 0.000000e+00 : f32
    %517 = vector.broadcast %cst_159 : f32 to vector<2x32xf32>
    %518 = arith.maximumf %516, %517 : vector<2x32xf32>
    %cst_160 = arith.constant dense<0.000000e+00> : vector<2x48xf32>
    %519 = tpu.matmul %518, %9, %cst_160 {dimension_numbers = #tpu.dot_dimension_numbers<[1], [0], [0], [1], [0, 0, 1, 1], [], []>} : vector<2x32xf32>, vector<32x48xf32>, vector<2x48xf32> -> vector<2x48xf32>
    %520 = arith.addf %519, %12 : vector<2x48xf32>
    %cst_161 = arith.constant dense<0xFF800000> : vector<2xf32>
    %521 = vector.multi_reduction <maximumf>, %520, %cst_161 [1] : vector<2x48xf32> to vector<2xf32>
    %cst_162 = arith.constant 0xFF800000 : f32
    %522 = vector.broadcast %cst_162 : f32 to vector<2xf32>
    %523 = arith.maximumf %522, %521 : vector<2xf32>
    %524 = vector.shape_cast %523 : vector<2xf32> to vector<2x1xf32>
    %525 = vector.broadcast %524 : vector<2x1xf32> to vector<2x48xf32>
    %526 = arith.subf %520, %525 : vector<2x48xf32>
    %527 = math.exp %526 : vector<2x48xf32>
    %cst_163 = arith.constant dense<0.000000e+00> : vector<2xf32>
    %528 = vector.multi_reduction <add>, %527, %cst_163 [1] : vector<2x48xf32> to vector<2xf32>
    %529 = vector.shape_cast %528 : vector<2xf32> to vector<2x1xf32>
    %530 = vector.broadcast %529 : vector<2x1xf32> to vector<2x48xf32>
    %531 = arith.divf %527, %530 : vector<2x48xf32>
    %532 = arith.mulf %531, %514 : vector<2x48xf32>
    %cst_164 = arith.constant dense<0.000000e+00> : vector<2x32xf32>
    %533 = tpu.matmul %532, %13, %cst_164 {dimension_numbers = #tpu.dot_dimension_numbers<[1], [0], [0], [1], [0, 0, 1, 1], [], []>} : vector<2x48xf32>, vector<48x32xf32>, vector<2x32xf32> -> vector<2x32xf32>
    %534 = arith.addf %533, %16 : vector<2x32xf32>
    %cst_165 = arith.constant 0.000000e+00 : f32
    %535 = vector.broadcast %cst_165 : f32 to vector<2x32xf32>
    %536 = arith.maximumf %534, %535 : vector<2x32xf32>
    %cst_166 = arith.constant dense<0.000000e+00> : vector<2x8xf32>
    %537 = tpu.matmul %536, %17, %cst_166 {dimension_numbers = #tpu.dot_dimension_numbers<[1], [0], [0], [1], [0, 0, 1, 1], [], []>} : vector<2x32xf32>, vector<32x8xf32>, vector<2x8xf32> -> vector<2x8xf32>
    %538 = arith.addf %537, %20 : vector<2x8xf32>
    %539 = math.tanh %538 : vector<2x8xf32>
    %540 = tpu.concatenate %532, %481 in 1 : vector<2x48xf32>, vector<2x8xf32> -> vector<2x56xf32>
    %cst_167 = arith.constant dense<0.000000e+00> : vector<2x64xf32>
    %541 = tpu.matmul %540, %21, %cst_167 {dimension_numbers = #tpu.dot_dimension_numbers<[1], [0], [0], [1], [0, 0, 1, 1], [], []>} : vector<2x56xf32>, vector<56x64xf32>, vector<2x64xf32> -> vector<2x64xf32>
    %542 = arith.addf %541, %24 : vector<2x64xf32>
    %cst_168 = arith.constant 0.000000e+00 : f32
    %543 = vector.broadcast %cst_168 : f32 to vector<2x64xf32>
    %544 = arith.maximumf %542, %543 : vector<2x64xf32>
    %cst_169 = arith.constant dense<0.000000e+00> : vector<2x16xf32>
    %545 = tpu.matmul %544, %25, %cst_169 {dimension_numbers = #tpu.dot_dimension_numbers<[1], [0], [0], [1], [0, 0, 1, 1], [], []>} : vector<2x64xf32>, vector<64x16xf32>, vector<2x16xf32> -> vector<2x16xf32>
    %546 = arith.addf %545, %28 : vector<2x16xf32>
    %547 = arith.negf %546 : vector<2x16xf32>
    %548 = math.exp %547 : vector<2x16xf32>
    %cst_170 = arith.constant 1.000000e+00 : f32
    %549 = vector.broadcast %cst_170 : f32 to vector<2x16xf32>
    %550 = arith.addf %549, %548 : vector<2x16xf32>
    %551 = arith.divf %549, %550 : vector<2x16xf32>
    %552 = vector.extract_strided_slice %551 {offsets = [0, 0], sizes = [2, 8], strides = [1, 1]} : vector<2x16xf32> to vector<2x8xf32>
    %553 = vector.extract_strided_slice %551 {offsets = [0, 8], sizes = [2, 8], strides = [1, 1]} : vector<2x16xf32> to vector<2x8xf32>
    %554 = arith.mulf %552, %481 : vector<2x8xf32>
    %555 = arith.mulf %553, %539 : vector<2x8xf32>
    %556 = arith.addf %554, %555 : vector<2x8xf32>
    %c7_i32 = arith.constant 7 : i32
    %557 = arith.index_cast %c7_i32 : i32 to index
    %c0_171 = arith.constant 0 : index
    %c0_172 = arith.constant 0 : index
    %558 = vector.load %arg1[%557, %c0_171, %c0_172] : memref<8x2x12xf32, #tpu.memory_space<vmem>>, vector<1x2x12xf32>
    %559 = vector.shape_cast %558 : vector<1x2x12xf32> to vector<2x12xf32>
    %cst_173 = arith.constant dense<0.000000e+00> : vector<2x96xf32>
    %560 = tpu.matmul %559, %0, %cst_173 {dimension_numbers = #tpu.dot_dimension_numbers<[1], [0], [0], [1], [0, 0, 1, 1], [], []>} : vector<2x12xf32>, vector<12x96xf32>, vector<2x96xf32> -> vector<2x96xf32>
    %cst_174 = arith.constant dense<0.000000e+00> : vector<2x96xf32>
    %561 = tpu.matmul %513, %1, %cst_174 {dimension_numbers = #tpu.dot_dimension_numbers<[1], [0], [0], [1], [0, 0, 1, 1], [], []>} : vector<2x24xf32>, vector<24x96xf32>, vector<2x96xf32> -> vector<2x96xf32>
    %562 = arith.addf %560, %561 : vector<2x96xf32>
    %563 = arith.addf %562, %4 : vector<2x96xf32>
    %564 = vector.extract_strided_slice %563 {offsets = [0, 0], sizes = [2, 24], strides = [1, 1]} : vector<2x96xf32> to vector<2x24xf32>
    %565 = arith.negf %564 : vector<2x24xf32>
    %566 = math.exp %565 : vector<2x24xf32>
    %cst_175 = arith.constant 1.000000e+00 : f32
    %567 = vector.broadcast %cst_175 : f32 to vector<2x24xf32>
    %568 = arith.addf %567, %566 : vector<2x24xf32>
    %569 = arith.divf %567, %568 : vector<2x24xf32>
    %570 = vector.extract_strided_slice %563 {offsets = [0, 24], sizes = [2, 24], strides = [1, 1]} : vector<2x96xf32> to vector<2x24xf32>
    %571 = arith.negf %570 : vector<2x24xf32>
    %572 = math.exp %571 : vector<2x24xf32>
    %cst_176 = arith.constant 1.000000e+00 : f32
    %573 = vector.broadcast %cst_176 : f32 to vector<2x24xf32>
    %574 = arith.addf %573, %572 : vector<2x24xf32>
    %575 = arith.divf %573, %574 : vector<2x24xf32>
    %576 = vector.extract_strided_slice %563 {offsets = [0, 48], sizes = [2, 24], strides = [1, 1]} : vector<2x96xf32> to vector<2x24xf32>
    %577 = math.tanh %576 : vector<2x24xf32>
    %578 = vector.extract_strided_slice %563 {offsets = [0, 72], sizes = [2, 24], strides = [1, 1]} : vector<2x96xf32> to vector<2x24xf32>
    %579 = arith.negf %578 : vector<2x24xf32>
    %580 = math.exp %579 : vector<2x24xf32>
    %cst_177 = arith.constant 1.000000e+00 : f32
    %581 = vector.broadcast %cst_177 : f32 to vector<2x24xf32>
    %582 = arith.addf %581, %580 : vector<2x24xf32>
    %583 = arith.divf %581, %582 : vector<2x24xf32>
    %584 = arith.mulf %575, %511 : vector<2x24xf32>
    %585 = arith.mulf %569, %577 : vector<2x24xf32>
    %586 = arith.addf %584, %585 : vector<2x24xf32>
    %587 = math.tanh %586 : vector<2x24xf32>
    %588 = arith.mulf %583, %587 : vector<2x24xf32>
    %589 = tpu.concatenate %511, %586 in 1 : vector<2x24xf32>, vector<2x24xf32> -> vector<2x48xf32>
    %cst_178 = arith.constant dense<0.000000e+00> : vector<2x32xf32>
    %590 = tpu.matmul %589, %5, %cst_178 {dimension_numbers = #tpu.dot_dimension_numbers<[1], [0], [0], [1], [0, 0, 1, 1], [], []>} : vector<2x48xf32>, vector<48x32xf32>, vector<2x32xf32> -> vector<2x32xf32>
    %591 = arith.addf %590, %8 : vector<2x32xf32>
    %cst_179 = arith.constant 0.000000e+00 : f32
    %592 = vector.broadcast %cst_179 : f32 to vector<2x32xf32>
    %593 = arith.maximumf %591, %592 : vector<2x32xf32>
    %cst_180 = arith.constant dense<0.000000e+00> : vector<2x48xf32>
    %594 = tpu.matmul %593, %9, %cst_180 {dimension_numbers = #tpu.dot_dimension_numbers<[1], [0], [0], [1], [0, 0, 1, 1], [], []>} : vector<2x32xf32>, vector<32x48xf32>, vector<2x48xf32> -> vector<2x48xf32>
    %595 = arith.addf %594, %12 : vector<2x48xf32>
    %cst_181 = arith.constant dense<0xFF800000> : vector<2xf32>
    %596 = vector.multi_reduction <maximumf>, %595, %cst_181 [1] : vector<2x48xf32> to vector<2xf32>
    %cst_182 = arith.constant 0xFF800000 : f32
    %597 = vector.broadcast %cst_182 : f32 to vector<2xf32>
    %598 = arith.maximumf %597, %596 : vector<2xf32>
    %599 = vector.shape_cast %598 : vector<2xf32> to vector<2x1xf32>
    %600 = vector.broadcast %599 : vector<2x1xf32> to vector<2x48xf32>
    %601 = arith.subf %595, %600 : vector<2x48xf32>
    %602 = math.exp %601 : vector<2x48xf32>
    %cst_183 = arith.constant dense<0.000000e+00> : vector<2xf32>
    %603 = vector.multi_reduction <add>, %602, %cst_183 [1] : vector<2x48xf32> to vector<2xf32>
    %604 = vector.shape_cast %603 : vector<2xf32> to vector<2x1xf32>
    %605 = vector.broadcast %604 : vector<2x1xf32> to vector<2x48xf32>
    %606 = arith.divf %602, %605 : vector<2x48xf32>
    %607 = arith.mulf %606, %589 : vector<2x48xf32>
    %cst_184 = arith.constant dense<0.000000e+00> : vector<2x32xf32>
    %608 = tpu.matmul %607, %13, %cst_184 {dimension_numbers = #tpu.dot_dimension_numbers<[1], [0], [0], [1], [0, 0, 1, 1], [], []>} : vector<2x48xf32>, vector<48x32xf32>, vector<2x32xf32> -> vector<2x32xf32>
    %609 = arith.addf %608, %16 : vector<2x32xf32>
    %cst_185 = arith.constant 0.000000e+00 : f32
    %610 = vector.broadcast %cst_185 : f32 to vector<2x32xf32>
    %611 = arith.maximumf %609, %610 : vector<2x32xf32>
    %cst_186 = arith.constant dense<0.000000e+00> : vector<2x8xf32>
    %612 = tpu.matmul %611, %17, %cst_186 {dimension_numbers = #tpu.dot_dimension_numbers<[1], [0], [0], [1], [0, 0, 1, 1], [], []>} : vector<2x32xf32>, vector<32x8xf32>, vector<2x8xf32> -> vector<2x8xf32>
    %613 = arith.addf %612, %20 : vector<2x8xf32>
    %614 = math.tanh %613 : vector<2x8xf32>
    %615 = tpu.concatenate %607, %556 in 1 : vector<2x48xf32>, vector<2x8xf32> -> vector<2x56xf32>
    %cst_187 = arith.constant dense<0.000000e+00> : vector<2x64xf32>
    %616 = tpu.matmul %615, %21, %cst_187 {dimension_numbers = #tpu.dot_dimension_numbers<[1], [0], [0], [1], [0, 0, 1, 1], [], []>} : vector<2x56xf32>, vector<56x64xf32>, vector<2x64xf32> -> vector<2x64xf32>
    %617 = arith.addf %616, %24 : vector<2x64xf32>
    %cst_188 = arith.constant 0.000000e+00 : f32
    %618 = vector.broadcast %cst_188 : f32 to vector<2x64xf32>
    %619 = arith.maximumf %617, %618 : vector<2x64xf32>
    %cst_189 = arith.constant dense<0.000000e+00> : vector<2x16xf32>
    %620 = tpu.matmul %619, %25, %cst_189 {dimension_numbers = #tpu.dot_dimension_numbers<[1], [0], [0], [1], [0, 0, 1, 1], [], []>} : vector<2x64xf32>, vector<64x16xf32>, vector<2x16xf32> -> vector<2x16xf32>
    %621 = arith.addf %620, %28 : vector<2x16xf32>
    %622 = arith.negf %621 : vector<2x16xf32>
    %623 = math.exp %622 : vector<2x16xf32>
    %cst_190 = arith.constant 1.000000e+00 : f32
    %624 = vector.broadcast %cst_190 : f32 to vector<2x16xf32>
    %625 = arith.addf %624, %623 : vector<2x16xf32>
    %626 = arith.divf %624, %625 : vector<2x16xf32>
    %627 = vector.extract_strided_slice %626 {offsets = [0, 0], sizes = [2, 8], strides = [1, 1]} : vector<2x16xf32> to vector<2x8xf32>
    %628 = vector.extract_strided_slice %626 {offsets = [0, 8], sizes = [2, 8], strides = [1, 1]} : vector<2x16xf32> to vector<2x8xf32>
    %629 = arith.mulf %627, %556 : vector<2x8xf32>
    %630 = arith.mulf %628, %614 : vector<2x8xf32>
    %631 = arith.addf %629, %630 : vector<2x8xf32>
    %c8_i32 = arith.constant 8 : i32
    %632 = tpu.concatenate %588, %631 in 1 : vector<2x24xf32>, vector<2x8xf32> -> vector<2x32xf32>
    %c0_191 = arith.constant 0 : index
    %c0_192 = arith.constant 0 : index
    %633 = vector.load %arg17[%c0_191, %c0_192] : memref<32x32xf32, #tpu.memory_space<vmem>>, vector<32x32xf32>
    %cst_193 = arith.constant dense<0.000000e+00> : vector<2x32xf32>
    %634 = tpu.matmul %632, %633, %cst_193 {dimension_numbers = #tpu.dot_dimension_numbers<[1], [0], [0], [1], [0, 0, 1, 1], [], []>} : vector<2x32xf32>, vector<32x32xf32>, vector<2x32xf32> -> vector<2x32xf32>
    %c0_194 = arith.constant 0 : index
    %c0_195 = arith.constant 0 : index
    %635 = vector.load %arg18[%c0_194, %c0_195] : memref<1x32xf32, #tpu.memory_space<vmem>>, vector<1x32xf32>
    %636 = vector.broadcast %635 : vector<1x32xf32> to vector<2x32xf32>
    %637 = arith.addf %634, %636 : vector<2x32xf32>
    %cst_196 = arith.constant 0.000000e+00 : f32
    %638 = vector.broadcast %cst_196 : f32 to vector<2x32xf32>
    %639 = arith.maximumf %637, %638 : vector<2x32xf32>
    %c0_197 = arith.constant 0 : index
    %c0_198 = arith.constant 0 : index
    %640 = vector.load %arg19[%c0_197, %c0_198] : memref<32x128xf32, #tpu.memory_space<vmem>>, vector<32x128xf32>
    %cst_199 = arith.constant dense<0.000000e+00> : vector<2x128xf32>
    %641 = tpu.matmul %639, %640, %cst_199 {dimension_numbers = #tpu.dot_dimension_numbers<[1], [0], [0], [1], [0, 0, 1, 1], [], []>} : vector<2x32xf32>, vector<32x128xf32>, vector<2x128xf32> -> vector<2x128xf32>
    %c0_200 = arith.constant 0 : index
    %c0_201 = arith.constant 0 : index
    %642 = vector.load %arg20[%c0_200, %c0_201] : memref<1x128xf32, #tpu.memory_space<vmem>>, vector<1x128xf32>
    %643 = vector.broadcast %642 : vector<1x128xf32> to vector<2x128xf32>
    %644 = arith.addf %641, %643 : vector<2x128xf32>
    %c0_202 = arith.constant 0 : index
    %c0_203 = arith.constant 0 : index
    %645 = vector.load %arg21[%c0_202, %c0_203] : memref<2x128xf32, #tpu.memory_space<vmem>>, vector<2x128xf32>
    tpu.vector_store %arg21[%c0_202, %c0_203], %644 {strides = array<i32>} : memref<2x128xf32, #tpu.memory_space<vmem>>, vector<2x128xf32>,
    return
  }
  func.func @transform_0(%arg0: i32) -> (i32, i32, i32) {
    %c0_i32 = arith.constant 0 : i32
    %c0_i32_0 = arith.constant 0 : i32
    %c0_i32_1 = arith.constant 0 : i32
    %c0_i32_2 = arith.constant 0 : i32
    return %c0_i32, %c0_i32_0, %c0_i32_1 : i32, i32, i32
  }
  func.func @transform_1(%arg0: i32) -> (i32, i32) {
    %c0_i32 = arith.constant 0 : i32
    %c0_i32_0 = arith.constant 0 : i32
    %c0_i32_1 = arith.constant 0 : i32
    return %c0_i32, %c0_i32_0 : i32, i32
  }
  func.func @transform_2(%arg0: i32) -> (i32, i32) {
    %c0_i32 = arith.constant 0 : i32
    %c0_i32_0 = arith.constant 0 : i32
    %c0_i32_1 = arith.constant 0 : i32
    return %c0_i32, %c0_i32_0 : i32, i32
  }
  func.func @transform_3(%arg0: i32) -> (i32, i32) {
    %c0_i32 = arith.constant 0 : i32
    %c0_i32_0 = arith.constant 0 : i32
    %c0_i32_1 = arith.constant 0 : i32
    return %c0_i32, %c0_i32_0 : i32, i32
  }
  func.func @transform_4(%arg0: i32) -> (i32, i32) {
    %c0_i32 = arith.constant 0 : i32
    %c0_i32_0 = arith.constant 0 : i32
    %c0_i32_1 = arith.constant 0 : i32
    return %c0_i32, %c0_i32_0 : i32, i32
  }
  func.func @transform_5(%arg0: i32) -> (i32, i32) {
    %c0_i32 = arith.constant 0 : i32
    %c0_i32_0 = arith.constant 0 : i32
    %c0_i32_1 = arith.constant 0 : i32
    return %c0_i32, %c0_i32_0 : i32, i32
  }
  func.func @transform_6(%arg0: i32) -> (i32, i32) {
    %c0_i32 = arith.constant 0 : i32
    %c0_i32_0 = arith.constant 0 : i32
    %c0_i32_1 = arith.constant 0 : i32
    return %c0_i32, %c0_i32_0 : i32, i32
  }
  func.func @transform_7(%arg0: i32) -> (i32, i32) {
    %c0_i32 = arith.constant 0 : i32
    %c0_i32_0 = arith.constant 0 : i32
    %c0_i32_1 = arith.constant 0 : i32
    return %c0_i32, %c0_i32_0 : i32, i32
  }
  func.func @transform_8(%arg0: i32) -> (i32, i32) {
    %c0_i32 = arith.constant 0 : i32
    %c0_i32_0 = arith.constant 0 : i32
    %c0_i32_1 = arith.constant 0 : i32
    return %c0_i32, %c0_i32_0 : i32, i32
  }
  func.func @transform_9(%arg0: i32) -> (i32, i32) {
    %c0_i32 = arith.constant 0 : i32
    %c0_i32_0 = arith.constant 0 : i32
    %c0_i32_1 = arith.constant 0 : i32
    return %c0_i32, %c0_i32_0 : i32, i32
  }
  func.func @transform_10(%arg0: i32) -> (i32, i32) {
    %c0_i32 = arith.constant 0 : i32
    %c0_i32_0 = arith.constant 0 : i32
    %c0_i32_1 = arith.constant 0 : i32
    return %c0_i32, %c0_i32_0 : i32, i32
  }
  func.func @transform_11(%arg0: i32) -> (i32, i32) {
    %c0_i32 = arith.constant 0 : i32
    %c0_i32_0 = arith.constant 0 : i32
    %c0_i32_1 = arith.constant 0 : i32
    return %c0_i32, %c0_i32_0 : i32, i32
  }
  func.func @transform_12(%arg0: i32) -> (i32, i32) {
    %c0_i32 = arith.constant 0 : i32
    %c0_i32_0 = arith.constant 0 : i32
    %c0_i32_1 = arith.constant 0 : i32
    return %c0_i32, %c0_i32_0 : i32, i32
  }
  func.func @transform_13(%arg0: i32) -> (i32, i32) {
    %c0_i32 = arith.constant 0 : i32
    %c0_i32_0 = arith.constant 0 : i32
    %c0_i32_1 = arith.constant 0 : i32
    return %c0_i32, %c0_i32_0 : i32, i32
  }
  func.func @transform_14(%arg0: i32) -> (i32, i32) {
    %c0_i32 = arith.constant 0 : i32
    %c0_i32_0 = arith.constant 0 : i32
    %c0_i32_1 = arith.constant 0 : i32
    return %c0_i32, %c0_i32_0 : i32, i32
  }
  func.func @transform_15(%arg0: i32) -> (i32, i32) {
    %c0_i32 = arith.constant 0 : i32
    %c0_i32_0 = arith.constant 0 : i32
    %c0_i32_1 = arith.constant 0 : i32
    return %c0_i32, %c0_i32_0 : i32, i32
  }
  func.func @transform_16(%arg0: i32) -> (i32, i32) {
    %c0_i32 = arith.constant 0 : i32
    %c0_i32_0 = arith.constant 0 : i32
    %c0_i32_1 = arith.constant 0 : i32
    return %c0_i32, %c0_i32_0 : i32, i32
  }
  func.func @transform_17(%arg0: i32) -> (i32, i32) {
    %c0_i32 = arith.constant 0 : i32
    %c0_i32_0 = arith.constant 0 : i32
    %c0_i32_1 = arith.constant 0 : i32
    return %c0_i32, %c0_i32_0 : i32, i32
  }
  func.func @transform_18(%arg0: i32) -> (i32, i32) {
    %c0_i32 = arith.constant 0 : i32
    %c0_i32_0 = arith.constant 0 : i32
    %c0_i32_1 = arith.constant 0 : i32
    return %c0_i32, %c0_i32_0 : i32, i32
  }
  func.func @transform_19(%arg0: i32) -> (i32, i32) {
    %c0_i32 = arith.constant 0 : i32
    %c0_i32_0 = arith.constant 0 : i32
    %c0_i32_1 = arith.constant 0 : i32
    return %c0_i32, %c0_i32_0 : i32, i32
  }
  func.func @transform_20(%arg0: i32) -> (i32, i32) {
    %c0_i32 = arith.constant 0 : i32
    %c0_i32_0 = arith.constant 0 : i32
    %c0_i32_1 = arith.constant 0 : i32
    return %c0_i32, %c0_i32_0 : i32, i32
  }
}

</mosaic_0001>

<llo_original>
// kernel: tpu_custom_call.1
$region0: #{tpu_custom_call.1}
  #allocation0 [shape = 'u32[]', space=smem, size = 0x4, offset = 0x4, fixed_abs, tag = 'smem constant byte address 0x4 - core index']
  #allocation1 [shape = 'u32[72,128]{1,0:T(1,128)}', space=vmem, size = 0x9000, scoped, tag = 'internal scratch']
  %s0 = inlined_call_operand.vmem [shape: f32[8,2,12], index: 0, kind: input, shape index: {}]
  %s1 = inlined_call_operand.hbm [shape: f32[12,96], index: 1, kind: input, shape index: {}]
  %s2 = inlined_call_operand.vmem [shape: f32[24,96], index: 2, kind: input, shape index: {}]
  %s3 = inlined_call_operand.vmem [shape: f32[1,96], index: 3, kind: input, shape index: {}]
  %s4 = inlined_call_operand.vmem [shape: f32[48,32], index: 4, kind: input, shape index: {}]
  %s5 = inlined_call_operand.vmem [shape: f32[1,32], index: 5, kind: input, shape index: {}]
  %s6 = inlined_call_operand.vmem [shape: f32[32,48], index: 6, kind: input, shape index: {}]
  %s7 = inlined_call_operand.vmem [shape: f32[1,48], index: 7, kind: input, shape index: {}]
  %s8 = inlined_call_operand.vmem [shape: f32[48,32], index: 8, kind: input, shape index: {}]
  %s9 = inlined_call_operand.vmem [shape: f32[1,32], index: 9, kind: input, shape index: {}]
  %s10 = inlined_call_operand.vmem [shape: f32[32,8], index: 10, kind: input, shape index: {}]
  %s11 = inlined_call_operand.vmem [shape: f32[1,8], index: 11, kind: input, shape index: {}]
  %s12 = inlined_call_operand.vmem [shape: f32[56,64], index: 12, kind: input, shape index: {}]
  %s13 = inlined_call_operand.vmem [shape: f32[1,64], index: 13, kind: input, shape index: {}]
  %s14 = inlined_call_operand.vmem [shape: f32[64,16], index: 14, kind: input, shape index: {}]
  %s15 = inlined_call_operand.vmem [shape: f32[1,16], index: 15, kind: input, shape index: {}]
  %s16 = inlined_call_operand.vmem [shape: f32[32,32], index: 16, kind: input, shape index: {}]
  %s17 = inlined_call_operand.vmem [shape: f32[1,32], index: 17, kind: input, shape index: {}]
  %s18 = inlined_call_operand.vmem [shape: f32[32,128], index: 18, kind: input, shape index: {}]
  %s19 = inlined_call_operand.vmem [shape: f32[1,128], index: 19, kind: input, shape index: {}]
  %s20 = inlined_call_operand.hbm [shape: f32[2,128], index: 20, kind: output, shape index: {}]
  %s21 = sld [smem:[#allocation0]]
  $region94: #{tpu_custom_call.1} parent=0
    _
  %s23 = ssub.s32 1, %s21
  %s24 = scalar_select 0, %s23, %s21
  $region1: #{tpu_custom_call.1} parent=0
    #allocation2 [shape = 'u8[8192]{0}', space=vmem, size = 0x2000, scoped, tag = 'input window, operand 1, single buffered']
    #allocation3 [shape = 's32[1]{0}', space=sflag, size = 0x4, scoped, tag = 'scoped memory for tpu_custom_call.1']
    #allocation4 [shape = 's32[1]{0}', space=sflag, size = 0x4, scoped, tag = 'scoped memory for tpu_custom_call.1']
    #allocation5 [shape = 'u8[1024]{0}', space=vmem, size = 0x400, scoped, tag = 'output window, operand 0, single buffered']
    %25 = vsyncpa [#allocation3], 0
    %26 = vsyncpa [#allocation4], 0
    // Predicated region
    $region2: #{tpu_custom_call.1} parent=1 // pred_check
      _
    $region3: #{tpu_custom_call.1} parent=1 // pred_check_branch
      %28 = sbr.rel (0) target = $region5
    $region4: #{tpu_custom_call.1} parent=1 // pred_region
      _
    $region5: #{tpu_custom_call.1} parent=1 // pred_fallthru
      _
    // Predicated region
    $region6: #{tpu_custom_call.1} parent=1 // pred_check
      _
    $region7: #{tpu_custom_call.1} parent=1 // pred_check_branch
      %30 = sbr.rel (0) target = $region9
    $region8: #{tpu_custom_call.1} parent=1 // pred_region
      %32 = vsyncadd [#allocation3], 0
      %s33 = sshll.u32 %s1, 4
      %s34 = int_to_ptr.hbm [resolvable:$true] %s33
      %s35 = sshll.u32 [#allocation2], 4
      %s36 = int_to_ptr.vmem [resolvable:$true] %s35
      %41 = dma.hbm_to_vmem [thread:$0]  %s34, 256, %s36, [#allocation3], 128, 128, 8
    $region9: #{tpu_custom_call.1} parent=1 // pred_fallthru
      _
    // Predicated region
    $region10: #{tpu_custom_call.1} parent=1 // pred_check
      _
    $region11: #{tpu_custom_call.1} parent=1 // pred_check_branch
      %43 = sbr.rel (0) target = $region13
    $region12: #{tpu_custom_call.1} parent=1 // pred_region
      _
    $region13: #{tpu_custom_call.1} parent=1 // pred_fallthru
      _
    // Predicated region
    $region14: #{tpu_custom_call.1} parent=1 // pred_check
      _
    $region15: #{tpu_custom_call.1} parent=1 // pred_check_branch
      %45 = sbr.rel (0) target = $region17
    $region16: #{tpu_custom_call.1} parent=1 // pred_region
      _
    $region17: #{tpu_custom_call.1} parent=1 // pred_fallthru
      _
    // Predicated region
    $region18: #{tpu_custom_call.1} parent=1 // pred_check
      _
    $region19: #{tpu_custom_call.1} parent=1 // pred_check_branch
      %47 = sbr.rel (0) target = $region21
    $region20: #{tpu_custom_call.1} parent=1 // pred_region
      _
    $region21: #{tpu_custom_call.1} parent=1 // pred_fallthru
      _
    // Predicated region
    $region22: #{tpu_custom_call.1} parent=1 // pred_check
      _
    $region23: #{tpu_custom_call.1} parent=1 // pred_check_branch
      %49 = sbr.rel (0) target = $region25
    $region24: #{tpu_custom_call.1} parent=1 // pred_region
      _
    $region25: #{tpu_custom_call.1} parent=1 // pred_fallthru
      _
    // Predicated region
    $region26: #{tpu_custom_call.1} parent=1 // pred_check
      _
    $region27: #{tpu_custom_call.1} parent=1 // pred_check_branch
      %51 = sbr.rel (0) target = $region29
    $region28: #{tpu_custom_call.1} parent=1 // pred_region
      _
    $region29: #{tpu_custom_call.1} parent=1 // pred_fallthru
      _
    // Predicated region
    $region30: #{tpu_custom_call.1} parent=1 // pred_check
      _
    $region31: #{tpu_custom_call.1} parent=1 // pred_check_branch
      %53 = sbr.rel (0) target = $region33
    $region32: #{tpu_custom_call.1} parent=1 // pred_region
      _
    $region33: #{tpu_custom_call.1} parent=1 // pred_fallthru
      _
    // Predicated region
    $region34: #{tpu_custom_call.1} parent=1 // pred_check
      _
    $region35: #{tpu_custom_call.1} parent=1 // pred_check_branch
      %55 = sbr.rel (0) target = $region37
    $region36: #{tpu_custom_call.1} parent=1 // pred_region
      _
    $region37: #{tpu_custom_call.1} parent=1 // pred_fallthru
      _
    // Predicated region
    $region38: #{tpu_custom_call.1} parent=1 // pred_check
      _
    $region39: #{tpu_custom_call.1} parent=1 // pred_check_branch
      %57 = sbr.rel (0) target = $region41
    $region40: #{tpu_custom_call.1} parent=1 // pred_region
      _
    $region41: #{tpu_custom_call.1} parent=1 // pred_fallthru
      _
    // Predicated region
    $region42: #{tpu_custom_call.1} parent=1 // pred_check
      _
    $region43: #{tpu_custom_call.1} parent=1 // pred_check_branch
      %59 = sbr.rel (0) target = $region45
    $region44: #{tpu_custom_call.1} parent=1 // pred_region
      _
    $region45: #{tpu_custom_call.1} parent=1 // pred_fallthru
      _
    // Predicated region
    $region46: #{tpu_custom_call.1} parent=1 // pred_check
      _
    $region47: #{tpu_custom_call.1} parent=1 // pred_check_branch
      %61 = sbr.rel (0) target = $region49
    $region48: #{tpu_custom_call.1} parent=1 // pred_region
      _
    $region49: #{tpu_custom_call.1} parent=1 // pred_fallthru
      _
    // Predicated region
    $region50: #{tpu_custom_call.1} parent=1 // pred_check
      _
    $region51: #{tpu_custom_call.1} parent=1 // pred_check_branch
      %63 = sbr.rel (0) target = $region53
    $region52: #{tpu_custom_call.1} parent=1 // pred_region
      _
    $region53: #{tpu_custom_call.1} parent=1 // pred_fallthru
      _
    // Predicated region
    $region54: #{tpu_custom_call.1} parent=1 // pred_check
      _
    $region55: #{tpu_custom_call.1} parent=1 // pred_check_branch
      %65 = sbr.rel (0) target = $region57
    $region56: #{tpu_custom_call.1} parent=1 // pred_region
      _
    $region57: #{tpu_custom_call.1} parent=1 // pred_fallthru
      _
    // Predicated region
    $region58: #{tpu_custom_call.1} parent=1 // pred_check
      _
    $region59: #{tpu_custom_call.1} parent=1 // pred_check_branch
      %67 = sbr.rel (0) target = $region61
    $region60: #{tpu_custom_call.1} parent=1 // pred_region
      _
    $region61: #{tpu_custom_call.1} parent=1 // pred_fallthru
      _
    // Predicated region
    $region62: #{tpu_custom_call.1} parent=1 // pred_check
      _
    $region63: #{tpu_custom_call.1} parent=1 // pred_check_branch
      %69 = sbr.rel (0) target = $region65
    $region64: #{tpu_custom_call.1} parent=1 // pred_region
      _
    $region65: #{tpu_custom_call.1} parent=1 // pred_fallthru
      _
    // Predicated region
    $region66: #{tpu_custom_call.1} parent=1 // pred_check
      _
    $region67: #{tpu_custom_call.1} parent=1 // pred_check_branch
      %71 = sbr.rel (0) target = $region69
    $region68: #{tpu_custom_call.1} parent=1 // pred_region
      _
    $region69: #{tpu_custom_call.1} parent=1 // pred_fallthru
      _
    // Predicated region
    $region70: #{tpu_custom_call.1} parent=1 // pred_check
      _
    $region71: #{tpu_custom_call.1} parent=1 // pred_check_branch
      %73 = sbr.rel (0) target = $region73
    $region72: #{tpu_custom_call.1} parent=1 // pred_region
      _
    $region73: #{tpu_custom_call.1} parent=1 // pred_fallthru
      _
    // Predicated region
    $region74: #{tpu_custom_call.1} parent=1 // pred_check
      _
    $region75: #{tpu_custom_call.1} parent=1 // pred_check_branch
      %75 = sbr.rel (0) target = $region77
    $region76: #{tpu_custom_call.1} parent=1 // pred_region
      _
    $region77: #{tpu_custom_call.1} parent=1 // pred_fallthru
      _
    // Predicated region
    $region78: #{tpu_custom_call.1} parent=1 // pred_check
      _
    $region79: #{tpu_custom_call.1} parent=1 // pred_check_branch
      %77 = sbr.rel (0) target = $region81
    $region80: #{tpu_custom_call.1} parent=1 // pred_region
      _
    $region81: #{tpu_custom_call.1} parent=1 // pred_fallthru
      _
    // Predicated region
    $region82: #{tpu_custom_call.1} parent=1 // pred_check
      _
    $region83: #{tpu_custom_call.1} parent=1 // pred_check_branch
      %79 = sbr.rel (0) target = $region85
    $region84: #{tpu_custom_call.1} parent=1 // pred_region
      %81 = dma.done [#allocation3], 256
    $region85: #{tpu_custom_call.1} parent=1 // pred_fallthru
      _
    %v82 = vld [vmem:[#allocation2] sm:$0xff]
    %v83 = vld [vmem:[#allocation2 + $0x8] sm:$0xf]
    %v84 = vld [vmem:[%s2] sm:$0xff]
    %v85 = vld [vmem:[%s2 + $0x8] sm:$0xff]
    %v86 = vld [vmem:[%s2 + $0x10] sm:$0xff]
    %v87 = vld [vmem:[%s3] sm:$0x1]
    %v89 = vperm.slane %v87, 0
    %v91 = vld [vmem:[%s4] sm:$0xff]
    %v92 = vld [vmem:[%s4 + $0x8] sm:$0xff]
    %v93 = vld [vmem:[%s4 + $0x10] sm:$0xff]
    %v94 = vld [vmem:[%s4 + $0x18] sm:$0xff]
    %v95 = vld [vmem:[%s4 + $0x20] sm:$0xff]
    %v96 = vld [vmem:[%s4 + $0x28] sm:$0xff]
    %v97 = vld [vmem:[%s5] sm:$0x1]
    %v99 = vperm.slane %v97, 0
    %v101 = vld [vmem:[%s6] sm:$0xff]
    %v102 = vld [vmem:[%s6 + $0x8] sm:$0xff]
    %v103 = vld [vmem:[%s6 + $0x10] sm:$0xff]
    %v104 = vld [vmem:[%s6 + $0x18] sm:$0xff]
    %v105 = vld [vmem:[%s7] sm:$0x1]
    %v107 = vperm.slane %v105, 0
    %v109 = vld [vmem:[%s8] sm:$0xff]
    %v110 = vld [vmem:[%s8 + $0x8] sm:$0xff]
    %v111 = vld [vmem:[%s8 + $0x10] sm:$0xff]
    %v112 = vld [vmem:[%s8 + $0x18] sm:$0xff]
    %v113 = vld [vmem:[%s8 + $0x20] sm:$0xff]
    %v114 = vld [vmem:[%s8 + $0x28] sm:$0xff]
    %v115 = vld [vmem:[%s9] sm:$0x1]
    %v117 = vperm.slane %v115, 0
    %v119 = vld [vmem:[%s10] sm:$0xff]
    %v120 = vld [vmem:[%s10 + $0x8] sm:$0xff]
    %v121 = vld [vmem:[%s10 + $0x10] sm:$0xff]
    %v122 = vld [vmem:[%s10 + $0x18] sm:$0xff]
    %v123 = vld [vmem:[%s11] sm:$0x1]
    %v125 = vperm.slane %v123, 0
    %v127 = vld [vmem:[%s12] sm:$0xff]
    %v128 = vld [vmem:[%s12 + $0x8] sm:$0xff]
    %v129 = vld [vmem:[%s12 + $0x10] sm:$0xff]
    %v130 = vld [vmem:[%s12 + $0x18] sm:$0xff]
    %v131 = vld [vmem:[%s12 + $0x20] sm:$0xff]
    %v132 = vld [vmem:[%s12 + $0x28] sm:$0xff]
    %v133 = vld [vmem:[%s12 + $0x30] sm:$0xff]
    %v134 = vld [vmem:[%s13] sm:$0x1]
    %v136 = vperm.slane %v134, 0
    %v138 = vld [vmem:[%s14] sm:$0xff]
    %v139 = vld [vmem:[%s14 + $0x8] sm:$0xff]
    %v140 = vld [vmem:[%s14 + $0x10] sm:$0xff]
    %v141 = vld [vmem:[%s14 + $0x18] sm:$0xff]
    %v142 = vld [vmem:[%s14 + $0x20] sm:$0xff]
    %v143 = vld [vmem:[%s14 + $0x28] sm:$0xff]
    %v144 = vld [vmem:[%s14 + $0x30] sm:$0xff]
    %v145 = vld [vmem:[%s14 + $0x38] sm:$0xff]
    %v146 = vld [vmem:[%s15] sm:$0x1]
    %v148 = vperm.slane %v146, 0
    %v150 = vld [vmem:[%s0] sm:$0x3]
    %vm151 = vcmask 195584
    %v153 = vsel %vm151, 0.0, 0
    %155 = vmatpush.msra.mxu0 0.0
    %156 = vmatpush.msra.mxu0 0.0
    %157 = vmatpush.msra.mxu0 0.0
    %158 = vmatpush.msra.mxu0 0.0
    %159 = vmatpush.msra.mxu0 0.0
    %160 = vmatpush.msra.mxu0 0.0
    %161 = vmatpush.msra.mxu0 0.0
    %162 = vmatpush.msra.mxu0 0.0
    %163 = vmatpush.msra.mxu0 0.0
    %164 = vmatpush.msra.mxu0 0.0
    %165 = vmatpush.msra.mxu0 0.0
    %166 = vmatpush.msra.mxu0 0.0
    %167 = vmatpush.msra.mxu0 0.0
    %168 = vmatpush.msra.mxu0 %v86
    %169 = vmatpush.msra.mxu0 %v85
    %170 = vmatpush.msra.mxu0 %v84
    %171 = vmatmul.f32.gmra.mxu0 %v153
    %v172 = vpop.f32.mrf.mxu0
    %v173 = vadd.f32 0.0, %v172
    %174 = vdwg.mxu0
    %vm175 = vcmask 97280
    %v177 = vsel %vm175, %v150, 0
    %vm179 = vcmask 1043456
    %v181 = vsel %vm179, %v83, 0
    %183 = vmatpush.msra.mxu0 0.0
    %184 = vmatpush.msra.mxu0 0.0
    %185 = vmatpush.msra.mxu0 0.0
    %186 = vmatpush.msra.mxu0 0.0
    %187 = vmatpush.msra.mxu0 0.0
    %188 = vmatpush.msra.mxu0 0.0
    %189 = vmatpush.msra.mxu0 0.0
    %190 = vmatpush.msra.mxu0 0.0
    %191 = vmatpush.msra.mxu0 0.0
    %192 = vmatpush.msra.mxu0 0.0
    %193 = vmatpush.msra.mxu0 0.0
    %194 = vmatpush.msra.mxu0 0.0
    %195 = vmatpush.msra.mxu0 0.0
    %196 = vmatpush.msra.mxu0 0.0
    %197 = vmatpush.msra.mxu0 %v181
    %198 = vmatpush.msra.mxu0 %v82
    %199 = vmatmul.f32.gmra.mxu0 %v177
    %v200 = vpop.f32.mrf.mxu0
    %v201 = vadd.f32 %v173, %v200
    %202 = vdwg.mxu0
    %v203 = vadd.f32 %v201, %v89
    %v204 = vxor.u32 %v203, 2147483648
    %v205 = vmul.f32 %v204, 1.442695
    %v206 = vpow.pop %v205
    %v207 = vadd.f32 %v206, 1.0
    %v208 = vrcp.pop %v207
    %v209 = vmul.f32 %v207, %v208
    %v210 = vsub.f32 1.0, %v209
    %v211 = vmul.f32 %v208, %v210
    %v212 = vadd.f32 %v208, %v211
    %vm213 = vweird.f32 %v207
    %vm214 = vweird.f32 %v208
    %vm215 = vmor %vm213, %vm214
    %v216 = vsel %vm215, %v208, %v212
    %v217 = vand.u32 2147483647, %v207
    %vm218 = vcmp.eq.f32.partialorder %v217, 8.507059e+37
    %v219 = vand.u32 %v207, 2147483648
    %v220 = vor.u32 1.1754944e-38, %v219
    %v221 = vsel %vm218, %v220, %v216
    %v222 = vmul.f32 1.0, %v221
    %v223 = vtanh.pop %v203
    %v224 = vmul.f32 %v222, 0.0
    %226 = vrot.lane.b32.xlu0 %v223, 80
    %v227 = vpop.permute.xlu0 %226
    %v229 = vmul.f32 %v222, %v227
    %231 = vrot.lane.b32.xlu0 %v229, 24
    %v232 = vpop.permute.xlu0 %231
    %v234 = vadd.f32 %v224, %v232
    %v235 = vtanh.pop %v234
    %237 = vrot.lane.b32.xlu0 %v235, 48
    %v238 = vpop.permute.xlu0 %237
    %v240 = vmul.f32 %v222, %v238
    %v241 = vsel %vm151, 0.0, %v234
    %vm242 = vcmask 392192
    %v244 = vsel %vm242, %v241, 0
    %246 = vmatpush.msra.mxu0 0.0
    %247 = vmatpush.msra.mxu0 0.0
    %248 = vmatpush.msra.mxu0 0.0
    %249 = vmatpush.msra.mxu0 0.0
    %250 = vmatpush.msra.mxu0 0.0
    %251 = vmatpush.msra.mxu0 0.0
    %252 = vmatpush.msra.mxu0 0.0
    %253 = vmatpush.msra.mxu0 0.0
    %254 = vmatpush.msra.mxu0 0.0
    %255 = vmatpush.msra.mxu0 0.0
    %256 = vmatpush.msra.mxu0 %v96
    %257 = vmatpush.msra.mxu0 %v95
    %258 = vmatpush.msra.mxu0 %v94
    %259 = vmatpush.msra.mxu0 %v93
    %260 = vmatpush.msra.mxu0 %v92
    %261 = vmatpush.msra.mxu0 %v91
    %262 = vmatmul.f32.gmra.mxu0 %v244
    %v263 = vpop.f32.mrf.mxu0
    %v264 = vadd.f32 %v99, %v263
    %265 = vdwg.mxu0
    %v266 = vmax.f32 %v264, 0.0
    %vm267 = vcmask 261120
    %v269 = vsel %vm267, %v266, 0
    %271 = vmatpush.msra.mxu0 0.0
    %272 = vmatpush.msra.mxu0 0.0
    %273 = vmatpush.msra.mxu0 0.0
    %274 = vmatpush.msra.mxu0 0.0
    %275 = vmatpush.msra.mxu0 0.0
    %276 = vmatpush.msra.mxu0 0.0
    %277 = vmatpush.msra.mxu0 0.0
    %278 = vmatpush.msra.mxu0 0.0
    %279 = vmatpush.msra.mxu0 0.0
    %280 = vmatpush.msra.mxu0 0.0
    %281 = vmatpush.msra.mxu0 0.0
    %282 = vmatpush.msra.mxu0 0.0
    %283 = vmatpush.msra.mxu0 %v104
    %284 = vmatpush.msra.mxu0 %v103
    %285 = vmatpush.msra.mxu0 %v102
    %286 = vmatpush.msra.mxu0 %v101
    %287 = vmatmul.f32.gmra.mxu0 %v269
    %v288 = vpop.f32.mrf.mxu0
    %v289 = vadd.f32 %v107, %v288
    %290 = vdwg.mxu0
    %vm291 = vcmask 386048
    %v292 = vsel %vm291, %v289, -inf
    %293 = vmax.xlane.f32.xlu0 %v292
    %v294 = vpop.xlane.xlu0 %293
    %v295 = vsub.f32 %v289, %v294
    %v296 = vmul.f32 %v295, 1.442695
    %v297 = vpow.pop %v296
    %v298 = vsel %vm291, %v297, 0.0
    %299 = vadd.xlane.f32.xlu0 %v298
    %v300 = vpop.xlane.xlu0 %299
    %v301 = vrcp.pop %v300
    %v302 = vmul.f32 %v300, %v301
    %v303 = vsub.f32 1.0, %v302
    %v304 = vmul.f32 %v301, %v303
    %v305 = vadd.f32 %v301, %v304
    %vm306 = vweird.f32 %v300
    %vm307 = vweird.f32 %v301
    %vm308 = vmor %vm306, %vm307
    %v309 = vsel %vm308, %v301, %v305
    %v310 = vand.u32 2147483647, %v300
    %vm311 = vcmp.eq.f32.partialorder %v310, 8.507059e+37
    %v312 = vand.u32 %v300, 2147483648
    %v313 = vor.u32 1.1754944e-38, %v312
    %v314 = vsel %vm311, %v313, %v309
    %v315 = vmul.f32 %v297, %v314
    %v316 = vmul.f32 %v315, %v241
    %v318 = vsel %vm242, %v316, 0
    %320 = vmatpush.msra.mxu0 0.0
    %321 = vmatpush.msra.mxu0 0.0
    %322 = vmatpush.msra.mxu0 0.0
    %323 = vmatpush.msra.mxu0 0.0
    %324 = vmatpush.msra.mxu0 0.0
    %325 = vmatpush.msra.mxu0 0.0
    %326 = vmatpush.msra.mxu0 0.0
    %327 = vmatpush.msra.mxu0 0.0
    %328 = vmatpush.msra.mxu0 0.0
    %329 = vmatpush.msra.mxu0 0.0
    %330 = vmatpush.msra.mxu0 %v114
    %331 = vmatpush.msra.mxu0 %v113
    %332 = vmatpush.msra.mxu0 %v112
    %333 = vmatpush.msra.mxu0 %v111
    %334 = vmatpush.msra.mxu0 %v110
    %335 = vmatpush.msra.mxu0 %v109
    %336 = vmatmul.f32.gmra.mxu0 %v318
    %v337 = vpop.f32.mrf.mxu0
    %v338 = vadd.f32 %v117, %v337
    %339 = vdwg.mxu0
    %v340 = vmax.f32 %v338, 0.0
    %v342 = vsel %vm267, %v340, 0
    %344 = vmatpush.msra.mxu0 0.0
    %345 = vmatpush.msra.mxu0 0.0
    %346 = vmatpush.msra.mxu0 0.0
    %347 = vmatpush.msra.mxu0 0.0
    %348 = vmatpush.msra.mxu0 0.0
    %349 = vmatpush.msra.mxu0 0.0
    %350 = vmatpush.msra.mxu0 0.0
    %351 = vmatpush.msra.mxu0 0.0
    %352 = vmatpush.msra.mxu0 0.0
    %353 = vmatpush.msra.mxu0 0.0
    %354 = vmatpush.msra.mxu0 0.0
    %355 = vmatpush.msra.mxu0 0.0
    %356 = vmatpush.msra.mxu0 %v122
    %357 = vmatpush.msra.mxu0 %v121
    %358 = vmatpush.msra.mxu0 %v120
    %359 = vmatpush.msra.mxu0 %v119
    %360 = vmatmul.f32.gmra.mxu0 %v342
    %v361 = vpop.f32.mrf.mxu0
    %v362 = vadd.f32 %v125, %v361
    %363 = vdwg.mxu0
    %v364 = vtanh.pop %v362
    %v365 = vsel %vm242, %v316, 0.0
    %vm366 = vcmask 457728
    %v368 = vsel %vm366, %v365, 0
    %370 = vmatpush.msra.mxu0 0.0
    %371 = vmatpush.msra.mxu0 0.0
    %372 = vmatpush.msra.mxu0 0.0
    %373 = vmatpush.msra.mxu0 0.0
    %374 = vmatpush.msra.mxu0 0.0
    %375 = vmatpush.msra.mxu0 0.0
    %376 = vmatpush.msra.mxu0 0.0
    %377 = vmatpush.msra.mxu0 0.0
    %378 = vmatpush.msra.mxu0 0.0
    %379 = vmatpush.msra.mxu0 %v133
    %380 = vmatpush.msra.mxu0 %v132
    %381 = vmatpush.msra.mxu0 %v131
    %382 = vmatpush.msra.mxu0 %v130
    %383 = vmatpush.msra.mxu0 %v129
    %384 = vmatpush.msra.mxu0 %v128
    %385 = vmatpush.msra.mxu0 %v127
    %386 = vmatmul.f32.gmra.mxu0 %v368
    %v387 = vpop.f32.mrf.mxu0
    %v388 = vadd.f32 %v136, %v387
    %389 = vdwg.mxu0
    %v390 = vmax.f32 %v388, 0.0
    %vm391 = vcmask 523264
    %v393 = vsel %vm391, %v390, 0
    %395 = vmatpush.msra.mxu0 0.0
    %396 = vmatpush.msra.mxu0 0.0
    %397 = vmatpush.msra.mxu0 0.0
    %398 = vmatpush.msra.mxu0 0.0
    %399 = vmatpush.msra.mxu0 0.0
    %400 = vmatpush.msra.mxu0 0.0
    %401 = vmatpush.msra.mxu0 0.0
    %402 = vmatpush.msra.mxu0 0.0
    %403 = vmatpush.msra.mxu0 %v145
    %404 = vmatpush.msra.mxu0 %v144
    %405 = vmatpush.msra.mxu0 %v143
    %406 = vmatpush.msra.mxu0 %v142
    %407 = vmatpush.msra.mxu0 %v141
    %408 = vmatpush.msra.mxu0 %v140
    %409 = vmatpush.msra.mxu0 %v139
    %410 = vmatpush.msra.mxu0 %v138
    %411 = vmatmul.f32.gmra.mxu0 %v393
    %v412 = vpop.f32.mrf.mxu0
    %v413 = vadd.f32 %v148, %v412
    %414 = vdwg.mxu0
    %v415 = vxor.u32 %v413, 2147483648
    %v416 = vmul.f32 %v415, 1.442695
    %v417 = vpow.pop %v416
    %v418 = vadd.f32 %v417, 1.0
    %v419 = vrcp.pop %v418
    %v420 = vmul.f32 %v418, %v419
    %v421 = vsub.f32 1.0, %v420
    %v422 = vmul.f32 %v419, %v421
    %v423 = vadd.f32 %v419, %v422
    %vm424 = vweird.f32 %v418
    %vm425 = vweird.f32 %v419
    %vm426 = vmor %vm424, %vm425
    %v427 = vsel %vm426, %v419, %v423
    %v428 = vand.u32 2147483647, %v418
    %vm429 = vcmp.eq.f32.partialorder %v428, 8.507059e+37
    %v430 = vand.u32 %v418, 2147483648
    %v431 = vor.u32 1.1754944e-38, %v430
    %v432 = vsel %vm429, %v431, %v427
    %v433 = vmul.f32 1.0, %v432
    %v434 = vmul.f32 %v433, 0.0
    %436 = vrot.lane.b32.xlu0 %v364, 8
    %v437 = vpop.permute.xlu0 %436
    %v439 = vmul.f32 %v433, %v437
    %441 = vrot.lane.b32.xlu0 %v439, 120
    %v442 = vpop.permute.xlu0 %441
    %v444 = vadd.f32 %v434, %v442
    %s445 = scalar_lea.vmem %s0, 2
    %v446 = vld [vmem:[%s445] sm:$0x3]
    %448 = vrot.lane.b32.xlu0 %v240, 56
    %v449 = vpop.permute.xlu0 %448
    %v450 = vsel %vm151, %v449, 0
    %452 = vmatpush.msra.mxu0 0.0
    %453 = vmatpush.msra.mxu0 0.0
    %454 = vmatpush.msra.mxu0 0.0
    %455 = vmatpush.msra.mxu0 0.0
    %456 = vmatpush.msra.mxu0 0.0
    %457 = vmatpush.msra.mxu0 0.0
    %458 = vmatpush.msra.mxu0 0.0
    %459 = vmatpush.msra.mxu0 0.0
    %460 = vmatpush.msra.mxu0 0.0
    %461 = vmatpush.msra.mxu0 0.0
    %462 = vmatpush.msra.mxu0 0.0
    %463 = vmatpush.msra.mxu0 0.0
    %464 = vmatpush.msra.mxu0 0.0
    %465 = vmatpush.msra.mxu0 %v86
    %466 = vmatpush.msra.mxu0 %v85
    %467 = vmatpush.msra.mxu0 %v84
    %468 = vmatmul.f32.gmra.mxu0 %v450
    %v469 = vpop.f32.mrf.mxu0
    %v470 = vadd.f32 0.0, %v469
    %471 = vdwg.mxu0
    %v473 = vsel %vm175, %v446, 0
    %475 = vmatpush.msra.mxu0 0.0
    %476 = vmatpush.msra.mxu0 0.0
    %477 = vmatpush.msra.mxu0 0.0
    %478 = vmatpush.msra.mxu0 0.0
    %479 = vmatpush.msra.mxu0 0.0
    %480 = vmatpush.msra.mxu0 0.0
    %481 = vmatpush.msra.mxu0 0.0
    %482 = vmatpush.msra.mxu0 0.0
    %483 = vmatpush.msra.mxu0 0.0
    %484 = vmatpush.msra.mxu0 0.0
    %485 = vmatpush.msra.mxu0 0.0
    %486 = vmatpush.msra.mxu0 0.0
    %487 = vmatpush.msra.mxu0 0.0
    %488 = vmatpush.msra.mxu0 0.0
    %489 = vmatpush.msra.mxu0 %v181
    %490 = vmatpush.msra.mxu0 %v82
    %491 = vmatmul.f32.gmra.mxu0 %v473
    %v492 = vpop.f32.mrf.mxu0
    %v493 = vadd.f32 %v470, %v492
    %494 = vdwg.mxu0
    %v495 = vadd.f32 %v493, %v89
    %v496 = vxor.u32 %v495, 2147483648
    %v497 = vmul.f32 %v496, 1.442695
    %v498 = vpow.pop %v497
    %v499 = vadd.f32 %v498, 1.0
    %v500 = vrcp.pop %v499
    %v501 = vmul.f32 %v499, %v500
    %v502 = vsub.f32 1.0, %v501
    %v503 = vmul.f32 %v500, %v502
    %v504 = vadd.f32 %v500, %v503
    %vm505 = vweird.f32 %v499
    %vm506 = vweird.f32 %v500
    %vm507 = vmor %vm505, %vm506
    %v508 = vsel %vm507, %v500, %v504
    %v509 = vand.u32 2147483647, %v499
    %vm510 = vcmp.eq.f32.partialorder %v509, 8.507059e+37
    %v511 = vand.u32 %v499, 2147483648
    %v512 = vor.u32 1.1754944e-38, %v511
    %v513 = vsel %vm510, %v512, %v508
    %v514 = vmul.f32 1.0, %v513
    %v515 = vtanh.pop %v495
    %v516 = vmul.f32 %v514, %v234
    %518 = vrot.lane.b32.xlu0 %v515, 80
    %v519 = vpop.permute.xlu0 %518
    %v521 = vmul.f32 %v514, %v519
    %523 = vrot.lane.b32.xlu0 %v521, 24
    %v524 = vpop.permute.xlu0 %523
    %v526 = vadd.f32 %v516, %v524
    %v527 = vtanh.pop %v526
    %529 = vrot.lane.b32.xlu0 %v527, 48
    %v530 = vpop.permute.xlu0 %529
    %v532 = vmul.f32 %v514, %v530
    %534 = vrot.lane.b32.xlu0 %v234, 104
    %v535 = vpop.permute.xlu0 %534
    %v537 = vsel %vm151, %v535, %v526
    %v539 = vsel %vm242, %v537, 0
    %541 = vmatpush.msra.mxu0 0.0
    %542 = vmatpush.msra.mxu0 0.0
    %543 = vmatpush.msra.mxu0 0.0
    %544 = vmatpush.msra.mxu0 0.0
    %545 = vmatpush.msra.mxu0 0.0
    %546 = vmatpush.msra.mxu0 0.0
    %547 = vmatpush.msra.mxu0 0.0
    %548 = vmatpush.msra.mxu0 0.0
    %549 = vmatpush.msra.mxu0 0.0
    %550 = vmatpush.msra.mxu0 0.0
    %551 = vmatpush.msra.mxu0 %v96
    %552 = vmatpush.msra.mxu0 %v95
    %553 = vmatpush.msra.mxu0 %v94
    %554 = vmatpush.msra.mxu0 %v93
    %555 = vmatpush.msra.mxu0 %v92
    %556 = vmatpush.msra.mxu0 %v91
    %557 = vmatmul.f32.gmra.mxu0 %v539
    %v558 = vpop.f32.mrf.mxu0
    %v559 = vadd.f32 %v99, %v558
    %560 = vdwg.mxu0
    %v561 = vmax.f32 %v559, 0.0
    %v563 = vsel %vm267, %v561, 0
    %565 = vmatpush.msra.mxu0 0.0
    %566 = vmatpush.msra.mxu0 0.0
    %567 = vmatpush.msra.mxu0 0.0
    %568 = vmatpush.msra.mxu0 0.0
    %569 = vmatpush.msra.mxu0 0.0
    %570 = vmatpush.msra.mxu0 0.0
    %571 = vmatpush.msra.mxu0 0.0
    %572 = vmatpush.msra.mxu0 0.0
    %573 = vmatpush.msra.mxu0 0.0
    %574 = vmatpush.msra.mxu0 0.0
    %575 = vmatpush.msra.mxu0 0.0
    %576 = vmatpush.msra.mxu0 0.0
    %577 = vmatpush.msra.mxu0 %v104
    %578 = vmatpush.msra.mxu0 %v103
    %579 = vmatpush.msra.mxu0 %v102
    %580 = vmatpush.msra.mxu0 %v101
    %581 = vmatmul.f32.gmra.mxu0 %v563
    %v582 = vpop.f32.mrf.mxu0
    %v583 = vadd.f32 %v107, %v582
    %584 = vdwg.mxu0
    %v585 = vsel %vm291, %v583, -inf
    %586 = vmax.xlane.f32.xlu0 %v585
    %v587 = vpop.xlane.xlu0 %586
    %v588 = vsub.f32 %v583, %v587
    %v589 = vmul.f32 %v588, 1.442695
    %v590 = vpow.pop %v589
    %v591 = vsel %vm291, %v590, 0.0
    %592 = vadd.xlane.f32.xlu0 %v591
    %v593 = vpop.xlane.xlu0 %592
    %v594 = vrcp.pop %v593
    %v595 = vmul.f32 %v593, %v594
    %v596 = vsub.f32 1.0, %v595
    %v597 = vmul.f32 %v594, %v596
    %v598 = vadd.f32 %v594, %v597
    %vm599 = vweird.f32 %v593
    %vm600 = vweird.f32 %v594
    %vm601 = vmor %vm599, %vm600
    %v602 = vsel %vm601, %v594, %v598
    %v603 = vand.u32 2147483647, %v593
    %vm604 = vcmp.eq.f32.partialorder %v603, 8.507059e+37
    %v605 = vand.u32 %v593, 2147483648
    %v606 = vor.u32 1.1754944e-38, %v605
    %v607 = vsel %vm604, %v606, %v602
    %v608 = vmul.f32 %v590, %v607
    %v609 = vmul.f32 %v608, %v537
    %v611 = vsel %vm242, %v609, 0
    %613 = vmatpush.msra.mxu0 0.0
    %614 = vmatpush.msra.mxu0 0.0
    %615 = vmatpush.msra.mxu0 0.0
    %616 = vmatpush.msra.mxu0 0.0
    %617 = vmatpush.msra.mxu0 0.0
    %618 = vmatpush.msra.mxu0 0.0
    %619 = vmatpush.msra.mxu0 0.0
    %620 = vmatpush.msra.mxu0 0.0
    %621 = vmatpush.msra.mxu0 0.0
    %622 = vmatpush.msra.mxu0 0.0
    %623 = vmatpush.msra.mxu0 %v114
    %624 = vmatpush.msra.mxu0 %v113
    %625 = vmatpush.msra.mxu0 %v112
    %626 = vmatpush.msra.mxu0 %v111
    %627 = vmatpush.msra.mxu0 %v110
    %628 = vmatpush.msra.mxu0 %v109
    %629 = vmatmul.f32.gmra.mxu0 %v611
    %v630 = vpop.f32.mrf.mxu0
    %v631 = vadd.f32 %v117, %v630
    %632 = vdwg.mxu0
    %v633 = vmax.f32 %v631, 0.0
    %v635 = vsel %vm267, %v633, 0
    %637 = vmatpush.msra.mxu0 0.0
    %638 = vmatpush.msra.mxu0 0.0
    %639 = vmatpush.msra.mxu0 0.0
    %640 = vmatpush.msra.mxu0 0.0
    %641 = vmatpush.msra.mxu0 0.0
    %642 = vmatpush.msra.mxu0 0.0
    %643 = vmatpush.msra.mxu0 0.0
    %644 = vmatpush.msra.mxu0 0.0
    %645 = vmatpush.msra.mxu0 0.0
    %646 = vmatpush.msra.mxu0 0.0
    %647 = vmatpush.msra.mxu0 0.0
    %648 = vmatpush.msra.mxu0 0.0
    %649 = vmatpush.msra.mxu0 %v122
    %650 = vmatpush.msra.mxu0 %v121
    %651 = vmatpush.msra.mxu0 %v120
    %652 = vmatpush.msra.mxu0 %v119
    %653 = vmatmul.f32.gmra.mxu0 %v635
    %v654 = vpop.f32.mrf.mxu0
    %v655 = vadd.f32 %v125, %v654
    %656 = vdwg.mxu0
    %v657 = vtanh.pop %v655
    %659 = vrot.lane.b32.xlu0 %v444, 48
    %v660 = vpop.permute.xlu0 %659
    %v662 = vsel %vm242, %v609, %v660
    %v664 = vsel %vm366, %v662, 0
    %666 = vmatpush.msra.mxu0 0.0
    %667 = vmatpush.msra.mxu0 0.0
    %668 = vmatpush.msra.mxu0 0.0
    %669 = vmatpush.msra.mxu0 0.0
    %670 = vmatpush.msra.mxu0 0.0
    %671 = vmatpush.msra.mxu0 0.0
    %672 = vmatpush.msra.mxu0 0.0
    %673 = vmatpush.msra.mxu0 0.0
    %674 = vmatpush.msra.mxu0 0.0
    %675 = vmatpush.msra.mxu0 %v133
    %676 = vmatpush.msra.mxu0 %v132
    %677 = vmatpush.msra.mxu0 %v131
    %678 = vmatpush.msra.mxu0 %v130
    %679 = vmatpush.msra.mxu0 %v129
    %680 = vmatpush.msra.mxu0 %v128
    %681 = vmatpush.msra.mxu0 %v127
    %682 = vmatmul.f32.gmra.mxu0 %v664
    %v683 = vpop.f32.mrf.mxu0
    %v684 = vadd.f32 %v136, %v683
    %685 = vdwg.mxu0
    %v686 = vmax.f32 %v684, 0.0
    %v688 = vsel %vm391, %v686, 0
    %690 = vmatpush.msra.mxu0 0.0
    %691 = vmatpush.msra.mxu0 0.0
    %692 = vmatpush.msra.mxu0 0.0
    %693 = vmatpush.msra.mxu0 0.0
    %694 = vmatpush.msra.mxu0 0.0
    %695 = vmatpush.msra.mxu0 0.0
    %696 = vmatpush.msra.mxu0 0.0
    %697 = vmatpush.msra.mxu0 0.0
    %698 = vmatpush.msra.mxu0 %v145
    %699 = vmatpush.msra.mxu0 %v144
    %700 = vmatpush.msra.mxu0 %v143
    %701 = vmatpush.msra.mxu0 %v142
    %702 = vmatpush.msra.mxu0 %v141
    %703 = vmatpush.msra.mxu0 %v140
    %704 = vmatpush.msra.mxu0 %v139
    %705 = vmatpush.msra.mxu0 %v138
    %706 = vmatmul.f32.gmra.mxu0 %v688
    %v707 = vpop.f32.mrf.mxu0
    %v708 = vadd.f32 %v148, %v707
    %709 = vdwg.mxu0
    %v710 = vxor.u32 %v708, 2147483648
    %v711 = vmul.f32 %v710, 1.442695
    %v712 = vpow.pop %v711
    %v713 = vadd.f32 %v712, 1.0
    %v714 = vrcp.pop %v713
    %v715 = vmul.f32 %v713, %v714
    %v716 = vsub.f32 1.0, %v715
    %v717 = vmul.f32 %v714, %v716
    %v718 = vadd.f32 %v714, %v717
    %vm719 = vweird.f32 %v713
    %vm720 = vweird.f32 %v714
    %vm721 = vmor %vm719, %vm720
    %v722 = vsel %vm721, %v714, %v718
    %v723 = vand.u32 2147483647, %v713
    %vm724 = vcmp.eq.f32.partialorder %v723, 8.507059e+37
    %v725 = vand.u32 %v713, 2147483648
    %v726 = vor.u32 1.1754944e-38, %v725
    %v727 = vsel %vm724, %v726, %v722
    %v728 = vmul.f32 1.0, %v727
    %v729 = vmul.f32 %v728, %v444
    %731 = vrot.lane.b32.xlu0 %v657, 8
    %v732 = vpop.permute.xlu0 %731
    %v734 = vmul.f32 %v728, %v732
    %736 = vrot.lane.b32.xlu0 %v734, 120
    %v737 = vpop.permute.xlu0 %736
    %v739 = vadd.f32 %v729, %v737
    %s740 = scalar_lea.vmem %s0, 4
    %v741 = vld [vmem:[%s740] sm:$0x3]
    %743 = vrot.lane.b32.xlu0 %v532, 56
    %v744 = vpop.permute.xlu0 %743
    %v745 = vsel %vm151, %v744, 0
    %747 = vmatpush.msra.mxu0 0.0
    %748 = vmatpush.msra.mxu0 0.0
    %749 = vmatpush.msra.mxu0 0.0
    %750 = vmatpush.msra.mxu0 0.0
    %751 = vmatpush.msra.mxu0 0.0
    %752 = vmatpush.msra.mxu0 0.0
    %753 = vmatpush.msra.mxu0 0.0
    %754 = vmatpush.msra.mxu0 0.0
    %755 = vmatpush.msra.mxu0 0.0
    %756 = vmatpush.msra.mxu0 0.0
    %757 = vmatpush.msra.mxu0 0.0
    %758 = vmatpush.msra.mxu0 0.0
    %759 = vmatpush.msra.mxu0 0.0
    %760 = vmatpush.msra.mxu0 %v86
    %761 = vmatpush.msra.mxu0 %v85
    %762 = vmatpush.msra.mxu0 %v84
    %763 = vmatmul.f32.gmra.mxu0 %v745
    %v764 = vpop.f32.mrf.mxu0
    %v765 = vadd.f32 0.0, %v764
    %766 = vdwg.mxu0
    %v768 = vsel %vm175, %v741, 0
    %770 = vmatpush.msra.mxu0 0.0
    %771 = vmatpush.msra.mxu0 0.0
    %772 = vmatpush.msra.mxu0 0.0
    %773 = vmatpush.msra.mxu0 0.0
    %774 = vmatpush.msra.mxu0 0.0
    %775 = vmatpush.msra.mxu0 0.0
    %776 = vmatpush.msra.mxu0 0.0
    %777 = vmatpush.msra.mxu0 0.0
    %778 = vmatpush.msra.mxu0 0.0
    %779 = vmatpush.msra.mxu0 0.0
    %780 = vmatpush.msra.mxu0 0.0
    %781 = vmatpush.msra.mxu0 0.0
    %782 = vmatpush.msra.mxu0 0.0
    %783 = vmatpush.msra.mxu0 0.0
    %784 = vmatpush.msra.mxu0 %v181
    %785 = vmatpush.msra.mxu0 %v82
    %786 = vmatmul.f32.gmra.mxu0 %v768
    %v787 = vpop.f32.mrf.mxu0
    %v788 = vadd.f32 %v765, %v787
    %789 = vdwg.mxu0
    %v790 = vadd.f32 %v788, %v89
    %v791 = vxor.u32 %v790, 2147483648
    %v792 = vmul.f32 %v791, 1.442695
    %v793 = vpow.pop %v792
    %v794 = vadd.f32 %v793, 1.0
    %v795 = vrcp.pop %v794
    %v796 = vmul.f32 %v794, %v795
    %v797 = vsub.f32 1.0, %v796
    %v798 = vmul.f32 %v795, %v797
    %v799 = vadd.f32 %v795, %v798
    %vm800 = vweird.f32 %v794
    %vm801 = vweird.f32 %v795
    %vm802 = vmor %vm800, %vm801
    %v803 = vsel %vm802, %v795, %v799
    %v804 = vand.u32 2147483647, %v794
    %vm805 = vcmp.eq.f32.partialorder %v804, 8.507059e+37
    %v806 = vand.u32 %v794, 2147483648
    %v807 = vor.u32 1.1754944e-38, %v806
    %v808 = vsel %vm805, %v807, %v803
    %v809 = vmul.f32 1.0, %v808
    %v810 = vtanh.pop %v790
    %v811 = vmul.f32 %v809, %v526
    %813 = vrot.lane.b32.xlu0 %v810, 80
    %v814 = vpop.permute.xlu0 %813
    %v816 = vmul.f32 %v809, %v814
    %818 = vrot.lane.b32.xlu0 %v816, 24
    %v819 = vpop.permute.xlu0 %818
    %v821 = vadd.f32 %v811, %v819
    %v822 = vtanh.pop %v821
    %824 = vrot.lane.b32.xlu0 %v822, 48
    %v825 = vpop.permute.xlu0 %824
    %v827 = vmul.f32 %v809, %v825
    %829 = vrot.lane.b32.xlu0 %v526, 104
    %v830 = vpop.permute.xlu0 %829
    %v832 = vsel %vm151, %v830, %v821
    %v834 = vsel %vm242, %v832, 0
    %836 = vmatpush.msra.mxu0 0.0
    %837 = vmatpush.msra.mxu0 0.0
    %838 = vmatpush.msra.mxu0 0.0
    %839 = vmatpush.msra.mxu0 0.0
    %840 = vmatpush.msra.mxu0 0.0
    %841 = vmatpush.msra.mxu0 0.0
    %842 = vmatpush.msra.mxu0 0.0
    %843 = vmatpush.msra.mxu0 0.0
    %844 = vmatpush.msra.mxu0 0.0
    %845 = vmatpush.msra.mxu0 0.0
    %846 = vmatpush.msra.mxu0 %v96
    %847 = vmatpush.msra.mxu0 %v95
    %848 = vmatpush.msra.mxu0 %v94
    %849 = vmatpush.msra.mxu0 %v93
    %850 = vmatpush.msra.mxu0 %v92
    %851 = vmatpush.msra.mxu0 %v91
    %852 = vmatmul.f32.gmra.mxu0 %v834
    %v853 = vpop.f32.mrf.mxu0
    %v854 = vadd.f32 %v99, %v853
    %855 = vdwg.mxu0
    %v856 = vmax.f32 %v854, 0.0
    %v858 = vsel %vm267, %v856, 0
    %860 = vmatpush.msra.mxu0 0.0
    %861 = vmatpush.msra.mxu0 0.0
    %862 = vmatpush.msra.mxu0 0.0
    %863 = vmatpush.msra.mxu0 0.0
    %864 = vmatpush.msra.mxu0 0.0
    %865 = vmatpush.msra.mxu0 0.0
    %866 = vmatpush.msra.mxu0 0.0
    %867 = vmatpush.msra.mxu0 0.0
    %868 = vmatpush.msra.mxu0 0.0
    %869 = vmatpush.msra.mxu0 0.0
    %870 = vmatpush.msra.mxu0 0.0
    %871 = vmatpush.msra.mxu0 0.0
    %872 = vmatpush.msra.mxu0 %v104
    %873 = vmatpush.msra.mxu0 %v103
    %874 = vmatpush.msra.mxu0 %v102
    %875 = vmatpush.msra.mxu0 %v101
    %876 = vmatmul.f32.gmra.mxu0 %v858
    %v877 = vpop.f32.mrf.mxu0
    %v878 = vadd.f32 %v107, %v877
    %879 = vdwg.mxu0
    %v880 = vsel %vm291, %v878, -inf
    %881 = vmax.xlane.f32.xlu0 %v880
    %v882 = vpop.xlane.xlu0 %881
    %v883 = vsub.f32 %v878, %v882
    %v884 = vmul.f32 %v883, 1.442695
    %v885 = vpow.pop %v884
    %v886 = vsel %vm291, %v885, 0.0
    %887 = vadd.xlane.f32.xlu0 %v886
    %v888 = vpop.xlane.xlu0 %887
    %v889 = vrcp.pop %v888
    %v890 = vmul.f32 %v888, %v889
    %v891 = vsub.f32 1.0, %v890
    %v892 = vmul.f32 %v889, %v891
    %v893 = vadd.f32 %v889, %v892
    %vm894 = vweird.f32 %v888
    %vm895 = vweird.f32 %v889
    %vm896 = vmor %vm894, %vm895
    %v897 = vsel %vm896, %v889, %v893
    %v898 = vand.u32 2147483647, %v888
    %vm899 = vcmp.eq.f32.partialorder %v898, 8.507059e+37
    %v900 = vand.u32 %v888, 2147483648
    %v901 = vor.u32 1.1754944e-38, %v900
    %v902 = vsel %vm899, %v901, %v897
    %v903 = vmul.f32 %v885, %v902
    %v904 = vmul.f32 %v903, %v832
    %v906 = vsel %vm242, %v904, 0
    %908 = vmatpush.msra.mxu0 0.0
    %909 = vmatpush.msra.mxu0 0.0
    %910 = vmatpush.msra.mxu0 0.0
    %911 = vmatpush.msra.mxu0 0.0
    %912 = vmatpush.msra.mxu0 0.0
    %913 = vmatpush.msra.mxu0 0.0
    %914 = vmatpush.msra.mxu0 0.0
    %915 = vmatpush.msra.mxu0 0.0
    %916 = vmatpush.msra.mxu0 0.0
    %917 = vmatpush.msra.mxu0 0.0
    %918 = vmatpush.msra.mxu0 %v114
    %919 = vmatpush.msra.mxu0 %v113
    %920 = vmatpush.msra.mxu0 %v112
    %921 = vmatpush.msra.mxu0 %v111
    %922 = vmatpush.msra.mxu0 %v110
    %923 = vmatpush.msra.mxu0 %v109
    %924 = vmatmul.f32.gmra.mxu0 %v906
    %v925 = vpop.f32.mrf.mxu0
    %v926 = vadd.f32 %v117, %v925
    %927 = vdwg.mxu0
    %v928 = vmax.f32 %v926, 0.0
    %v930 = vsel %vm267, %v928, 0
    %932 = vmatpush.msra.mxu0 0.0
    %933 = vmatpush.msra.mxu0 0.0
    %934 = vmatpush.msra.mxu0 0.0
    %935 = vmatpush.msra.mxu0 0.0
    %936 = vmatpush.msra.mxu0 0.0
    %937 = vmatpush.msra.mxu0 0.0
    %938 = vmatpush.msra.mxu0 0.0
    %939 = vmatpush.msra.mxu0 0.0
    %940 = vmatpush.msra.mxu0 0.0
    %941 = vmatpush.msra.mxu0 0.0
    %942 = vmatpush.msra.mxu0 0.0
    %943 = vmatpush.msra.mxu0 0.0
    %944 = vmatpush.msra.mxu0 %v122
    %945 = vmatpush.msra.mxu0 %v121
    %946 = vmatpush.msra.mxu0 %v120
    %947 = vmatpush.msra.mxu0 %v119
    %948 = vmatmul.f32.gmra.mxu0 %v930
    %v949 = vpop.f32.mrf.mxu0
    %v950 = vadd.f32 %v125, %v949
    %951 = vdwg.mxu0
    %v952 = vtanh.pop %v950
    %954 = vrot.lane.b32.xlu0 %v739, 48
    %v955 = vpop.permute.xlu0 %954
    %v957 = vsel %vm242, %v904, %v955
    %v959 = vsel %vm366, %v957, 0
    %961 = vmatpush.msra.mxu0 0.0
    %962 = vmatpush.msra.mxu0 0.0
    %963 = vmatpush.msra.mxu0 0.0
    %964 = vmatpush.msra.mxu0 0.0
    %965 = vmatpush.msra.mxu0 0.0
    %966 = vmatpush.msra.mxu0 0.0
    %967 = vmatpush.msra.mxu0 0.0
    %968 = vmatpush.msra.mxu0 0.0
    %969 = vmatpush.msra.mxu0 0.0
    %970 = vmatpush.msra.mxu0 %v133
    %971 = vmatpush.msra.mxu0 %v132
    %972 = vmatpush.msra.mxu0 %v131
    %973 = vmatpush.msra.mxu0 %v130
    %974 = vmatpush.msra.mxu0 %v129
    %975 = vmatpush.msra.mxu0 %v128
    %976 = vmatpush.msra.mxu0 %v127
    %977 = vmatmul.f32.gmra.mxu0 %v959
    %v978 = vpop.f32.mrf.mxu0
    %v979 = vadd.f32 %v136, %v978
    %980 = vdwg.mxu0
    %v981 = vmax.f32 %v979, 0.0
    %v983 = vsel %vm391, %v981, 0
    %985 = vmatpush.msra.mxu0 0.0
    %986 = vmatpush.msra.mxu0 0.0
    %987 = vmatpush.msra.mxu0 0.0
    %988 = vmatpush.msra.mxu0 0.0
    %989 = vmatpush.msra.mxu0 0.0
    %990 = vmatpush.msra.mxu0 0.0
    %991 = vmatpush.msra.mxu0 0.0
    %992 = vmatpush.msra.mxu0 0.0
    %993 = vmatpush.msra.mxu0 %v145
    %994 = vmatpush.msra.mxu0 %v144
    %995 = vmatpush.msra.mxu0 %v143
    %996 = vmatpush.msra.mxu0 %v142
    %997 = vmatpush.msra.mxu0 %v141
    %998 = vmatpush.msra.mxu0 %v140
    %999 = vmatpush.msra.mxu0 %v139
    %1000 = vmatpush.msra.mxu0 %v138
    %1001 = vmatmul.f32.gmra.mxu0 %v983
    %v1002 = vpop.f32.mrf.mxu0
    %v1003 = vadd.f32 %v148, %v1002
    %1004 = vdwg.mxu0
    %v1005 = vxor.u32 %v1003, 2147483648
    %v1006 = vmul.f32 %v1005, 1.442695
    %v1007 = vpow.pop %v1006
    %v1008 = vadd.f32 %v1007, 1.0
    %v1009 = vrcp.pop %v1008
    %v1010 = vmul.f32 %v1008, %v1009
    %v1011 = vsub.f32 1.0, %v1010
    %v1012 = vmul.f32 %v1009, %v1011
    %v1013 = vadd.f32 %v1009, %v1012
    %vm1014 = vweird.f32 %v1008
    %vm1015 = vweird.f32 %v1009
    %vm1016 = vmor %vm1014, %vm1015
    %v1017 = vsel %vm1016, %v1009, %v1013
    %v1018 = vand.u32 2147483647, %v1008
    %vm1019 = vcmp.eq.f32.partialorder %v1018, 8.507059e+37
    %v1020 = vand.u32 %v1008, 2147483648
    %v1021 = vor.u32 1.1754944e-38, %v1020
    %v1022 = vsel %vm1019, %v1021, %v1017
    %v1023 = vmul.f32 1.0, %v1022
    %v1024 = vmul.f32 %v1023, %v739
    %1026 = vrot.lane.b32.xlu0 %v952, 8
    %v1027 = vpop.permute.xlu0 %1026
    %v1029 = vmul.f32 %v1023, %v1027
    %1031 = vrot.lane.b32.xlu0 %v1029, 120
    %v1032 = vpop.permute.xlu0 %1031
    %v1034 = vadd.f32 %v1024, %v1032
    %s1035 = scalar_lea.vmem %s0, 6
    %v1036 = vld [vmem:[%s1035] sm:$0x3]
    %1038 = vrot.lane.b32.xlu0 %v827, 56
    %v1039 = vpop.permute.xlu0 %1038
    %v1040 = vsel %vm151, %v1039, 0
    %1042 = vmatpush.msra.mxu0 0.0
    %1043 = vmatpush.msra.mxu0 0.0
    %1044 = vmatpush.msra.mxu0 0.0
    %1045 = vmatpush.msra.mxu0 0.0
    %1046 = vmatpush.msra.mxu0 0.0
    %1047 = vmatpush.msra.mxu0 0.0
    %1048 = vmatpush.msra.mxu0 0.0
    %1049 = vmatpush.msra.mxu0 0.0
    %1050 = vmatpush.msra.mxu0 0.0
    %1051 = vmatpush.msra.mxu0 0.0
    %1052 = vmatpush.msra.mxu0 0.0
    %1053 = vmatpush.msra.mxu0 0.0
    %1054 = vmatpush.msra.mxu0 0.0
    %1055 = vmatpush.msra.mxu0 %v86
    %1056 = vmatpush.msra.mxu0 %v85
    %1057 = vmatpush.msra.mxu0 %v84
    %1058 = vmatmul.f32.gmra.mxu0 %v1040
    %v1059 = vpop.f32.mrf.mxu0
    %v1060 = vadd.f32 0.0, %v1059
    %1061 = vdwg.mxu0
    %v1063 = vsel %vm175, %v1036, 0
    %1065 = vmatpush.msra.mxu0 0.0
    %1066 = vmatpush.msra.mxu0 0.0
    %1067 = vmatpush.msra.mxu0 0.0
    %1068 = vmatpush.msra.mxu0 0.0
    %1069 = vmatpush.msra.mxu0 0.0
    %1070 = vmatpush.msra.mxu0 0.0
    %1071 = vmatpush.msra.mxu0 0.0
    %1072 = vmatpush.msra.mxu0 0.0
    %1073 = vmatpush.msra.mxu0 0.0
    %1074 = vmatpush.msra.mxu0 0.0
    %1075 = vmatpush.msra.mxu0 0.0
    %1076 = vmatpush.msra.mxu0 0.0
    %1077 = vmatpush.msra.mxu0 0.0
    %1078 = vmatpush.msra.mxu0 0.0
    %1079 = vmatpush.msra.mxu0 %v181
    %1080 = vmatpush.msra.mxu0 %v82
    %1081 = vmatmul.f32.gmra.mxu0 %v1063
    %v1082 = vpop.f32.mrf.mxu0
    %v1083 = vadd.f32 %v1060, %v1082
    %1084 = vdwg.mxu0
    %v1085 = vadd.f32 %v1083, %v89
    %v1086 = vxor.u32 %v1085, 2147483648
    %v1087 = vmul.f32 %v1086, 1.442695
    %v1088 = vpow.pop %v1087
    %v1089 = vadd.f32 %v1088, 1.0
    %v1090 = vrcp.pop %v1089
    %v1091 = vmul.f32 %v1089, %v1090
    %v1092 = vsub.f32 1.0, %v1091
    %v1093 = vmul.f32 %v1090, %v1092
    %v1094 = vadd.f32 %v1090, %v1093
    %vm1095 = vweird.f32 %v1089
    %vm1096 = vweird.f32 %v1090
    %vm1097 = vmor %vm1095, %vm1096
    %v1098 = vsel %vm1097, %v1090, %v1094
    %v1099 = vand.u32 2147483647, %v1089
    %vm1100 = vcmp.eq.f32.partialorder %v1099, 8.507059e+37
    %v1101 = vand.u32 %v1089, 2147483648
    %v1102 = vor.u32 1.1754944e-38, %v1101
    %v1103 = vsel %vm1100, %v1102, %v1098
    %v1104 = vmul.f32 1.0, %v1103
    %v1105 = vtanh.pop %v1085
    %v1106 = vmul.f32 %v1104, %v821
    %1108 = vrot.lane.b32.xlu0 %v1105, 80
    %v1109 = vpop.permute.xlu0 %1108
    %v1111 = vmul.f32 %v1104, %v1109
    %1113 = vrot.lane.b32.xlu0 %v1111, 24
    %v1114 = vpop.permute.xlu0 %1113
    %v1116 = vadd.f32 %v1106, %v1114
    %v1117 = vtanh.pop %v1116
    %1119 = vrot.lane.b32.xlu0 %v1117, 48
    %v1120 = vpop.permute.xlu0 %1119
    %v1122 = vmul.f32 %v1104, %v1120
    %1124 = vrot.lane.b32.xlu0 %v821, 104
    %v1125 = vpop.permute.xlu0 %1124
    %v1127 = vsel %vm151, %v1125, %v1116
    %v1129 = vsel %vm242, %v1127, 0
    %1131 = vmatpush.msra.mxu0 0.0
    %1132 = vmatpush.msra.mxu0 0.0
    %1133 = vmatpush.msra.mxu0 0.0
    %1134 = vmatpush.msra.mxu0 0.0
    %1135 = vmatpush.msra.mxu0 0.0
    %1136 = vmatpush.msra.mxu0 0.0
    %1137 = vmatpush.msra.mxu0 0.0
    %1138 = vmatpush.msra.mxu0 0.0
    %1139 = vmatpush.msra.mxu0 0.0
    %1140 = vmatpush.msra.mxu0 0.0
    %1141 = vmatpush.msra.mxu0 %v96
    %1142 = vmatpush.msra.mxu0 %v95
    %1143 = vmatpush.msra.mxu0 %v94
    %1144 = vmatpush.msra.mxu0 %v93
    %1145 = vmatpush.msra.mxu0 %v92
    %1146 = vmatpush.msra.mxu0 %v91
    %1147 = vmatmul.f32.gmra.mxu0 %v1129
    %v1148 = vpop.f32.mrf.mxu0
    %v1149 = vadd.f32 %v99, %v1148
    %1150 = vdwg.mxu0
    %v1151 = vmax.f32 %v1149, 0.0
    %v1153 = vsel %vm267, %v1151, 0
    %1155 = vmatpush.msra.mxu0 0.0
    %1156 = vmatpush.msra.mxu0 0.0
    %1157 = vmatpush.msra.mxu0 0.0
    %1158 = vmatpush.msra.mxu0 0.0
    %1159 = vmatpush.msra.mxu0 0.0
    %1160 = vmatpush.msra.mxu0 0.0
    %1161 = vmatpush.msra.mxu0 0.0
    %1162 = vmatpush.msra.mxu0 0.0
    %1163 = vmatpush.msra.mxu0 0.0
    %1164 = vmatpush.msra.mxu0 0.0
    %1165 = vmatpush.msra.mxu0 0.0
    %1166 = vmatpush.msra.mxu0 0.0
    %1167 = vmatpush.msra.mxu0 %v104
    %1168 = vmatpush.msra.mxu0 %v103
    %1169 = vmatpush.msra.mxu0 %v102
    %1170 = vmatpush.msra.mxu0 %v101
    %1171 = vmatmul.f32.gmra.mxu0 %v1153
    %v1172 = vpop.f32.mrf.mxu0
    %v1173 = vadd.f32 %v107, %v1172
    %1174 = vdwg.mxu0
    %v1175 = vsel %vm291, %v1173, -inf
    %1176 = vmax.xlane.f32.xlu0 %v1175
    %v1177 = vpop.xlane.xlu0 %1176
    %v1178 = vsub.f32 %v1173, %v1177
    %v1179 = vmul.f32 %v1178, 1.442695
    %v1180 = vpow.pop %v1179
    %v1181 = vsel %vm291, %v1180, 0.0
    %1182 = vadd.xlane.f32.xlu0 %v1181
    %v1183 = vpop.xlane.xlu0 %1182
    %v1184 = vrcp.pop %v1183
    %v1185 = vmul.f32 %v1183, %v1184
    %v1186 = vsub.f32 1.0, %v1185
    %v1187 = vmul.f32 %v1184, %v1186
    %v1188 = vadd.f32 %v1184, %v1187
    %vm1189 = vweird.f32 %v1183
    %vm1190 = vweird.f32 %v1184
    %vm1191 = vmor %vm1189, %vm1190
    %v1192 = vsel %vm1191, %v1184, %v1188
    %v1193 = vand.u32 2147483647, %v1183
    %vm1194 = vcmp.eq.f32.partialorder %v1193, 8.507059e+37
    %v1195 = vand.u32 %v1183, 2147483648
    %v1196 = vor.u32 1.1754944e-38, %v1195
    %v1197 = vsel %vm1194, %v1196, %v1192
    %v1198 = vmul.f32 %v1180, %v1197
    %v1199 = vmul.f32 %v1198, %v1127
    %v1201 = vsel %vm242, %v1199, 0
    %1203 = vmatpush.msra.mxu0 0.0
    %1204 = vmatpush.msra.mxu0 0.0
    %1205 = vmatpush.msra.mxu0 0.0
    %1206 = vmatpush.msra.mxu0 0.0
    %1207 = vmatpush.msra.mxu0 0.0
    %1208 = vmatpush.msra.mxu0 0.0
    %1209 = vmatpush.msra.mxu0 0.0
    %1210 = vmatpush.msra.mxu0 0.0
    %1211 = vmatpush.msra.mxu0 0.0
    %1212 = vmatpush.msra.mxu0 0.0
    %1213 = vmatpush.msra.mxu0 %v114
    %1214 = vmatpush.msra.mxu0 %v113
    %1215 = vmatpush.msra.mxu0 %v112
    %1216 = vmatpush.msra.mxu0 %v111
    %1217 = vmatpush.msra.mxu0 %v110
    %1218 = vmatpush.msra.mxu0 %v109
    %1219 = vmatmul.f32.gmra.mxu0 %v1201
    %v1220 = vpop.f32.mrf.mxu0
    %v1221 = vadd.f32 %v117, %v1220
    %1222 = vdwg.mxu0
    %v1223 = vmax.f32 %v1221, 0.0
    %v1225 = vsel %vm267, %v1223, 0
    %1227 = vmatpush.msra.mxu0 0.0
    %1228 = vmatpush.msra.mxu0 0.0
    %1229 = vmatpush.msra.mxu0 0.0
    %1230 = vmatpush.msra.mxu0 0.0
    %1231 = vmatpush.msra.mxu0 0.0
    %1232 = vmatpush.msra.mxu0 0.0
    %1233 = vmatpush.msra.mxu0 0.0
    %1234 = vmatpush.msra.mxu0 0.0
    %1235 = vmatpush.msra.mxu0 0.0
    %1236 = vmatpush.msra.mxu0 0.0
    %1237 = vmatpush.msra.mxu0 0.0
    %1238 = vmatpush.msra.mxu0 0.0
    %1239 = vmatpush.msra.mxu0 %v122
    %1240 = vmatpush.msra.mxu0 %v121
    %1241 = vmatpush.msra.mxu0 %v120
    %1242 = vmatpush.msra.mxu0 %v119
    %1243 = vmatmul.f32.gmra.mxu0 %v1225
    %v1244 = vpop.f32.mrf.mxu0
    %v1245 = vadd.f32 %v125, %v1244
    %1246 = vdwg.mxu0
    %v1247 = vtanh.pop %v1245
    %1249 = vrot.lane.b32.xlu0 %v1034, 48
    %v1250 = vpop.permute.xlu0 %1249
    %v1252 = vsel %vm242, %v1199, %v1250
    %v1254 = vsel %vm366, %v1252, 0
    %1256 = vmatpush.msra.mxu0 0.0
    %1257 = vmatpush.msra.mxu0 0.0
    %1258 = vmatpush.msra.mxu0 0.0
    %1259 = vmatpush.msra.mxu0 0.0
    %1260 = vmatpush.msra.mxu0 0.0
    %1261 = vmatpush.msra.mxu0 0.0
    %1262 = vmatpush.msra.mxu0 0.0
    %1263 = vmatpush.msra.mxu0 0.0
    %1264 = vmatpush.msra.mxu0 0.0
    %1265 = vmatpush.msra.mxu0 %v133
    %1266 = vmatpush.msra.mxu0 %v132
    %1267 = vmatpush.msra.mxu0 %v131
    %1268 = vmatpush.msra.mxu0 %v130
    %1269 = vmatpush.msra.mxu0 %v129
    %1270 = vmatpush.msra.mxu0 %v128
    %1271 = vmatpush.msra.mxu0 %v127
    %1272 = vmatmul.f32.gmra.mxu0 %v1254
    %v1273 = vpop.f32.mrf.mxu0
    %v1274 = vadd.f32 %v136, %v1273
    %1275 = vdwg.mxu0
    %v1276 = vmax.f32 %v1274, 0.0
    %v1278 = vsel %vm391, %v1276, 0
    %1280 = vmatpush.msra.mxu0 0.0
    %1281 = vmatpush.msra.mxu0 0.0
    %1282 = vmatpush.msra.mxu0 0.0
    %1283 = vmatpush.msra.mxu0 0.0
    %1284 = vmatpush.msra.mxu0 0.0
    %1285 = vmatpush.msra.mxu0 0.0
    %1286 = vmatpush.msra.mxu0 0.0
    %1287 = vmatpush.msra.mxu0 0.0
    %1288 = vmatpush.msra.mxu0 %v145
    %1289 = vmatpush.msra.mxu0 %v144
    %1290 = vmatpush.msra.mxu0 %v143
    %1291 = vmatpush.msra.mxu0 %v142
    %1292 = vmatpush.msra.mxu0 %v141
    %1293 = vmatpush.msra.mxu0 %v140
    %1294 = vmatpush.msra.mxu0 %v139
    %1295 = vmatpush.msra.mxu0 %v138
    %1296 = vmatmul.f32.gmra.mxu0 %v1278
    %v1297 = vpop.f32.mrf.mxu0
    %v1298 = vadd.f32 %v148, %v1297
    %1299 = vdwg.mxu0
    %v1300 = vxor.u32 %v1298, 2147483648
    %v1301 = vmul.f32 %v1300, 1.442695
    %v1302 = vpow.pop %v1301
    %v1303 = vadd.f32 %v1302, 1.0
    %v1304 = vrcp.pop %v1303
    %v1305 = vmul.f32 %v1303, %v1304
    %v1306 = vsub.f32 1.0, %v1305
    %v1307 = vmul.f32 %v1304, %v1306
    %v1308 = vadd.f32 %v1304, %v1307
    %vm1309 = vweird.f32 %v1303
    %vm1310 = vweird.f32 %v1304
    %vm1311 = vmor %vm1309, %vm1310
    %v1312 = vsel %vm1311, %v1304, %v1308
    %v1313 = vand.u32 2147483647, %v1303
    %vm1314 = vcmp.eq.f32.partialorder %v1313, 8.507059e+37
    %v1315 = vand.u32 %v1303, 2147483648
    %v1316 = vor.u32 1.1754944e-38, %v1315
    %v1317 = vsel %vm1314, %v1316, %v1312
    %v1318 = vmul.f32 1.0, %v1317
    %v1319 = vmul.f32 %v1318, %v1034
    %1321 = vrot.lane.b32.xlu0 %v1247, 8
    %v1322 = vpop.permute.xlu0 %1321
    %v1324 = vmul.f32 %v1318, %v1322
    %1326 = vrot.lane.b32.xlu0 %v1324, 120
    %v1327 = vpop.permute.xlu0 %1326
    %v1329 = vadd.f32 %v1319, %v1327
    %s1330 = scalar_lea.vmem %s0, 8
    %v1331 = vld [vmem:[%s1330] sm:$0x3]
    %1333 = vrot.lane.b32.xlu0 %v1122, 56
    %v1334 = vpop.permute.xlu0 %1333
    %v1335 = vsel %vm151, %v1334, 0
    %1337 = vmatpush.msra.mxu0 0.0
    %1338 = vmatpush.msra.mxu0 0.0
    %1339 = vmatpush.msra.mxu0 0.0
    %1340 = vmatpush.msra.mxu0 0.0
    %1341 = vmatpush.msra.mxu0 0.0
    %1342 = vmatpush.msra.mxu0 0.0
    %1343 = vmatpush.msra.mxu0 0.0
    %1344 = vmatpush.msra.mxu0 0.0
    %1345 = vmatpush.msra.mxu0 0.0
    %1346 = vmatpush.msra.mxu0 0.0
    %1347 = vmatpush.msra.mxu0 0.0
    %1348 = vmatpush.msra.mxu0 0.0
    %1349 = vmatpush.msra.mxu0 0.0
    %1350 = vmatpush.msra.mxu0 %v86
    %1351 = vmatpush.msra.mxu0 %v85
    %1352 = vmatpush.msra.mxu0 %v84
    %1353 = vmatmul.f32.gmra.mxu0 %v1335
    %v1354 = vpop.f32.mrf.mxu0
    %v1355 = vadd.f32 0.0, %v1354
    %1356 = vdwg.mxu0
    %v1358 = vsel %vm175, %v1331, 0
    %1360 = vmatpush.msra.mxu0 0.0
    %1361 = vmatpush.msra.mxu0 0.0
    %1362 = vmatpush.msra.mxu0 0.0
    %1363 = vmatpush.msra.mxu0 0.0
    %1364 = vmatpush.msra.mxu0 0.0
    %1365 = vmatpush.msra.mxu0 0.0
    %1366 = vmatpush.msra.mxu0 0.0
    %1367 = vmatpush.msra.mxu0 0.0
    %1368 = vmatpush.msra.mxu0 0.0
    %1369 = vmatpush.msra.mxu0 0.0
    %1370 = vmatpush.msra.mxu0 0.0
    %1371 = vmatpush.msra.mxu0 0.0
    %1372 = vmatpush.msra.mxu0 0.0
    %1373 = vmatpush.msra.mxu0 0.0
    %1374 = vmatpush.msra.mxu0 %v181
    %1375 = vmatpush.msra.mxu0 %v82
    %1376 = vmatmul.f32.gmra.mxu0 %v1358
    %v1377 = vpop.f32.mrf.mxu0
    %v1378 = vadd.f32 %v1355, %v1377
    %1379 = vdwg.mxu0
    %v1380 = vadd.f32 %v1378, %v89
    %v1381 = vxor.u32 %v1380, 2147483648
    %v1382 = vmul.f32 %v1381, 1.442695
    %v1383 = vpow.pop %v1382
    %v1384 = vadd.f32 %v1383, 1.0
    %v1385 = vrcp.pop %v1384
    %v1386 = vmul.f32 %v1384, %v1385
    %v1387 = vsub.f32 1.0, %v1386
    %v1388 = vmul.f32 %v1385, %v1387
    %v1389 = vadd.f32 %v1385, %v1388
    %vm1390 = vweird.f32 %v1384
    %vm1391 = vweird.f32 %v1385
    %vm1392 = vmor %vm1390, %vm1391
    %v1393 = vsel %vm1392, %v1385, %v1389
    %v1394 = vand.u32 2147483647, %v1384
    %vm1395 = vcmp.eq.f32.partialorder %v1394, 8.507059e+37
    %v1396 = vand.u32 %v1384, 2147483648
    %v1397 = vor.u32 1.1754944e-38, %v1396
    %v1398 = vsel %vm1395, %v1397, %v1393
    %v1399 = vmul.f32 1.0, %v1398
    %v1400 = vtanh.pop %v1380
    %v1401 = vmul.f32 %v1399, %v1116
    %1403 = vrot.lane.b32.xlu0 %v1400, 80
    %v1404 = vpop.permute.xlu0 %1403
    %v1406 = vmul.f32 %v1399, %v1404
    %1408 = vrot.lane.b32.xlu0 %v1406, 24
    %v1409 = vpop.permute.xlu0 %1408
    %v1411 = vadd.f32 %v1401, %v1409
    %v1412 = vtanh.pop %v1411
    %1414 = vrot.lane.b32.xlu0 %v1412, 48
    %v1415 = vpop.permute.xlu0 %1414
    %v1417 = vmul.f32 %v1399, %v1415
    %1419 = vrot.lane.b32.xlu0 %v1116, 104
    %v1420 = vpop.permute.xlu0 %1419
    %v1422 = vsel %vm151, %v1420, %v1411
    %v1424 = vsel %vm242, %v1422, 0
    %1426 = vmatpush.msra.mxu0 0.0
    %1427 = vmatpush.msra.mxu0 0.0
    %1428 = vmatpush.msra.mxu0 0.0
    %1429 = vmatpush.msra.mxu0 0.0
    %1430 = vmatpush.msra.mxu0 0.0
    %1431 = vmatpush.msra.mxu0 0.0
    %1432 = vmatpush.msra.mxu0 0.0
    %1433 = vmatpush.msra.mxu0 0.0
    %1434 = vmatpush.msra.mxu0 0.0
    %1435 = vmatpush.msra.mxu0 0.0
    %1436 = vmatpush.msra.mxu0 %v96
    %1437 = vmatpush.msra.mxu0 %v95
    %1438 = vmatpush.msra.mxu0 %v94
    %1439 = vmatpush.msra.mxu0 %v93
    %1440 = vmatpush.msra.mxu0 %v92
    %1441 = vmatpush.msra.mxu0 %v91
    %1442 = vmatmul.f32.gmra.mxu0 %v1424
    %v1443 = vpop.f32.mrf.mxu0
    %v1444 = vadd.f32 %v99, %v1443
    %1445 = vdwg.mxu0
    %v1446 = vmax.f32 %v1444, 0.0
    %v1448 = vsel %vm267, %v1446, 0
    %1450 = vmatpush.msra.mxu0 0.0
    %1451 = vmatpush.msra.mxu0 0.0
    %1452 = vmatpush.msra.mxu0 0.0
    %1453 = vmatpush.msra.mxu0 0.0
    %1454 = vmatpush.msra.mxu0 0.0
    %1455 = vmatpush.msra.mxu0 0.0
    %1456 = vmatpush.msra.mxu0 0.0
    %1457 = vmatpush.msra.mxu0 0.0
    %1458 = vmatpush.msra.mxu0 0.0
    %1459 = vmatpush.msra.mxu0 0.0
    %1460 = vmatpush.msra.mxu0 0.0
    %1461 = vmatpush.msra.mxu0 0.0
    %1462 = vmatpush.msra.mxu0 %v104
    %1463 = vmatpush.msra.mxu0 %v103
    %1464 = vmatpush.msra.mxu0 %v102
    %1465 = vmatpush.msra.mxu0 %v101
    %1466 = vmatmul.f32.gmra.mxu0 %v1448
    %v1467 = vpop.f32.mrf.mxu0
    %v1468 = vadd.f32 %v107, %v1467
    %1469 = vdwg.mxu0
    %v1470 = vsel %vm291, %v1468, -inf
    %1471 = vmax.xlane.f32.xlu0 %v1470
    %v1472 = vpop.xlane.xlu0 %1471
    %v1473 = vsub.f32 %v1468, %v1472
    %v1474 = vmul.f32 %v1473, 1.442695
    %v1475 = vpow.pop %v1474
    %v1476 = vsel %vm291, %v1475, 0.0
    %1477 = vadd.xlane.f32.xlu0 %v1476
    %v1478 = vpop.xlane.xlu0 %1477
    %v1479 = vrcp.pop %v1478
    %v1480 = vmul.f32 %v1478, %v1479
    %v1481 = vsub.f32 1.0, %v1480
    %v1482 = vmul.f32 %v1479, %v1481
    %v1483 = vadd.f32 %v1479, %v1482
    %vm1484 = vweird.f32 %v1478
    %vm1485 = vweird.f32 %v1479
    %vm1486 = vmor %vm1484, %vm1485
    %v1487 = vsel %vm1486, %v1479, %v1483
    %v1488 = vand.u32 2147483647, %v1478
    %vm1489 = vcmp.eq.f32.partialorder %v1488, 8.507059e+37
    %v1490 = vand.u32 %v1478, 2147483648
    %v1491 = vor.u32 1.1754944e-38, %v1490
    %v1492 = vsel %vm1489, %v1491, %v1487
    %v1493 = vmul.f32 %v1475, %v1492
    %v1494 = vmul.f32 %v1493, %v1422
    %v1496 = vsel %vm242, %v1494, 0
    %1498 = vmatpush.msra.mxu0 0.0
    %1499 = vmatpush.msra.mxu0 0.0
    %1500 = vmatpush.msra.mxu0 0.0
    %1501 = vmatpush.msra.mxu0 0.0
    %1502 = vmatpush.msra.mxu0 0.0
    %1503 = vmatpush.msra.mxu0 0.0
    %1504 = vmatpush.msra.mxu0 0.0
    %1505 = vmatpush.msra.mxu0 0.0
    %1506 = vmatpush.msra.mxu0 0.0
    %1507 = vmatpush.msra.mxu0 0.0
    %1508 = vmatpush.msra.mxu0 %v114
    %1509 = vmatpush.msra.mxu0 %v113
    %1510 = vmatpush.msra.mxu0 %v112
    %1511 = vmatpush.msra.mxu0 %v111
    %1512 = vmatpush.msra.mxu0 %v110
    %1513 = vmatpush.msra.mxu0 %v109
    %1514 = vmatmul.f32.gmra.mxu0 %v1496
    %v1515 = vpop.f32.mrf.mxu0
    %v1516 = vadd.f32 %v117, %v1515
    %1517 = vdwg.mxu0
    %v1518 = vmax.f32 %v1516, 0.0
    %v1520 = vsel %vm267, %v1518, 0
    %1522 = vmatpush.msra.mxu0 0.0
    %1523 = vmatpush.msra.mxu0 0.0
    %1524 = vmatpush.msra.mxu0 0.0
    %1525 = vmatpush.msra.mxu0 0.0
    %1526 = vmatpush.msra.mxu0 0.0
    %1527 = vmatpush.msra.mxu0 0.0
    %1528 = vmatpush.msra.mxu0 0.0
    %1529 = vmatpush.msra.mxu0 0.0
    %1530 = vmatpush.msra.mxu0 0.0
    %1531 = vmatpush.msra.mxu0 0.0
    %1532 = vmatpush.msra.mxu0 0.0
    %1533 = vmatpush.msra.mxu0 0.0
    %1534 = vmatpush.msra.mxu0 %v122
    %1535 = vmatpush.msra.mxu0 %v121
    %1536 = vmatpush.msra.mxu0 %v120
    %1537 = vmatpush.msra.mxu0 %v119
    %1538 = vmatmul.f32.gmra.mxu0 %v1520
    %v1539 = vpop.f32.mrf.mxu0
    %v1540 = vadd.f32 %v125, %v1539
    %1541 = vdwg.mxu0
    %v1542 = vtanh.pop %v1540
    %1544 = vrot.lane.b32.xlu0 %v1329, 48
    %v1545 = vpop.permute.xlu0 %1544
    %v1547 = vsel %vm242, %v1494, %v1545
    %v1549 = vsel %vm366, %v1547, 0
    %1551 = vmatpush.msra.mxu0 0.0
    %1552 = vmatpush.msra.mxu0 0.0
    %1553 = vmatpush.msra.mxu0 0.0
    %1554 = vmatpush.msra.mxu0 0.0
    %1555 = vmatpush.msra.mxu0 0.0
    %1556 = vmatpush.msra.mxu0 0.0
    %1557 = vmatpush.msra.mxu0 0.0
    %1558 = vmatpush.msra.mxu0 0.0
    %1559 = vmatpush.msra.mxu0 0.0
    %1560 = vmatpush.msra.mxu0 %v133
    %1561 = vmatpush.msra.mxu0 %v132
    %1562 = vmatpush.msra.mxu0 %v131
    %1563 = vmatpush.msra.mxu0 %v130
    %1564 = vmatpush.msra.mxu0 %v129
    %1565 = vmatpush.msra.mxu0 %v128
    %1566 = vmatpush.msra.mxu0 %v127
    %1567 = vmatmul.f32.gmra.mxu0 %v1549
    %v1568 = vpop.f32.mrf.mxu0
    %v1569 = vadd.f32 %v136, %v1568
    %1570 = vdwg.mxu0
    %v1571 = vmax.f32 %v1569, 0.0
    %v1573 = vsel %vm391, %v1571, 0
    %1575 = vmatpush.msra.mxu0 0.0
    %1576 = vmatpush.msra.mxu0 0.0
    %1577 = vmatpush.msra.mxu0 0.0
    %1578 = vmatpush.msra.mxu0 0.0
    %1579 = vmatpush.msra.mxu0 0.0
    %1580 = vmatpush.msra.mxu0 0.0
    %1581 = vmatpush.msra.mxu0 0.0
    %1582 = vmatpush.msra.mxu0 0.0
    %1583 = vmatpush.msra.mxu0 %v145
    %1584 = vmatpush.msra.mxu0 %v144
    %1585 = vmatpush.msra.mxu0 %v143
    %1586 = vmatpush.msra.mxu0 %v142
    %1587 = vmatpush.msra.mxu0 %v141
    %1588 = vmatpush.msra.mxu0 %v140
    %1589 = vmatpush.msra.mxu0 %v139
    %1590 = vmatpush.msra.mxu0 %v138
    %1591 = vmatmul.f32.gmra.mxu0 %v1573
    %v1592 = vpop.f32.mrf.mxu0
    %v1593 = vadd.f32 %v148, %v1592
    %1594 = vdwg.mxu0
    %v1595 = vxor.u32 %v1593, 2147483648
    %v1596 = vmul.f32 %v1595, 1.442695
    %v1597 = vpow.pop %v1596
    %v1598 = vadd.f32 %v1597, 1.0
    %v1599 = vrcp.pop %v1598
    %v1600 = vmul.f32 %v1598, %v1599
    %v1601 = vsub.f32 1.0, %v1600
    %v1602 = vmul.f32 %v1599, %v1601
    %v1603 = vadd.f32 %v1599, %v1602
    %vm1604 = vweird.f32 %v1598
    %vm1605 = vweird.f32 %v1599
    %vm1606 = vmor %vm1604, %vm1605
    %v1607 = vsel %vm1606, %v1599, %v1603
    %v1608 = vand.u32 2147483647, %v1598
    %vm1609 = vcmp.eq.f32.partialorder %v1608, 8.507059e+37
    %v1610 = vand.u32 %v1598, 2147483648
    %v1611 = vor.u32 1.1754944e-38, %v1610
    %v1612 = vsel %vm1609, %v1611, %v1607
    %v1613 = vmul.f32 1.0, %v1612
    %v1614 = vmul.f32 %v1613, %v1329
    %1616 = vrot.lane.b32.xlu0 %v1542, 8
    %v1617 = vpop.permute.xlu0 %1616
    %v1619 = vmul.f32 %v1613, %v1617
    %1621 = vrot.lane.b32.xlu0 %v1619, 120
    %v1622 = vpop.permute.xlu0 %1621
    %v1624 = vadd.f32 %v1614, %v1622
    %s1625 = scalar_lea.vmem %s0, 10
    %v1626 = vld [vmem:[%s1625] sm:$0x3]
    %1628 = vrot.lane.b32.xlu0 %v1417, 56
    %v1629 = vpop.permute.xlu0 %1628
    %v1630 = vsel %vm151, %v1629, 0
    %1632 = vmatpush.msra.mxu0 0.0
    %1633 = vmatpush.msra.mxu0 0.0
    %1634 = vmatpush.msra.mxu0 0.0
    %1635 = vmatpush.msra.mxu0 0.0
    %1636 = vmatpush.msra.mxu0 0.0
    %1637 = vmatpush.msra.mxu0 0.0
    %1638 = vmatpush.msra.mxu0 0.0
    %1639 = vmatpush.msra.mxu0 0.0
    %1640 = vmatpush.msra.mxu0 0.0
    %1641 = vmatpush.msra.mxu0 0.0
    %1642 = vmatpush.msra.mxu0 0.0
    %1643 = vmatpush.msra.mxu0 0.0
    %1644 = vmatpush.msra.mxu0 0.0
    %1645 = vmatpush.msra.mxu0 %v86
    %1646 = vmatpush.msra.mxu0 %v85
    %1647 = vmatpush.msra.mxu0 %v84
    %1648 = vmatmul.f32.gmra.mxu0 %v1630
    %v1649 = vpop.f32.mrf.mxu0
    %v1650 = vadd.f32 0.0, %v1649
    %1651 = vdwg.mxu0
    %v1653 = vsel %vm175, %v1626, 0
    %1655 = vmatpush.msra.mxu0 0.0
    %1656 = vmatpush.msra.mxu0 0.0
    %1657 = vmatpush.msra.mxu0 0.0
    %1658 = vmatpush.msra.mxu0 0.0
    %1659 = vmatpush.msra.mxu0 0.0
    %1660 = vmatpush.msra.mxu0 0.0
    %1661 = vmatpush.msra.mxu0 0.0
    %1662 = vmatpush.msra.mxu0 0.0
    %1663 = vmatpush.msra.mxu0 0.0
    %1664 = vmatpush.msra.mxu0 0.0
    %1665 = vmatpush.msra.mxu0 0.0
    %1666 = vmatpush.msra.mxu0 0.0
    %1667 = vmatpush.msra.mxu0 0.0
    %1668 = vmatpush.msra.mxu0 0.0
    %1669 = vmatpush.msra.mxu0 %v181
    %1670 = vmatpush.msra.mxu0 %v82
    %1671 = vmatmul.f32.gmra.mxu0 %v1653
    %v1672 = vpop.f32.mrf.mxu0
    %v1673 = vadd.f32 %v1650, %v1672
    %1674 = vdwg.mxu0
    %v1675 = vadd.f32 %v1673, %v89
    %v1676 = vxor.u32 %v1675, 2147483648
    %v1677 = vmul.f32 %v1676, 1.442695
    %v1678 = vpow.pop %v1677
    %v1679 = vadd.f32 %v1678, 1.0
    %v1680 = vrcp.pop %v1679
    %v1681 = vmul.f32 %v1679, %v1680
    %v1682 = vsub.f32 1.0, %v1681
    %v1683 = vmul.f32 %v1680, %v1682
    %v1684 = vadd.f32 %v1680, %v1683
    %vm1685 = vweird.f32 %v1679
    %vm1686 = vweird.f32 %v1680
    %vm1687 = vmor %vm1685, %vm1686
    %v1688 = vsel %vm1687, %v1680, %v1684
    %v1689 = vand.u32 2147483647, %v1679
    %vm1690 = vcmp.eq.f32.partialorder %v1689, 8.507059e+37
    %v1691 = vand.u32 %v1679, 2147483648
    %v1692 = vor.u32 1.1754944e-38, %v1691
    %v1693 = vsel %vm1690, %v1692, %v1688
    %v1694 = vmul.f32 1.0, %v1693
    %v1695 = vtanh.pop %v1675
    %v1696 = vmul.f32 %v1694, %v1411
    %1698 = vrot.lane.b32.xlu0 %v1695, 80
    %v1699 = vpop.permute.xlu0 %1698
    %v1701 = vmul.f32 %v1694, %v1699
    %1703 = vrot.lane.b32.xlu0 %v1701, 24
    %v1704 = vpop.permute.xlu0 %1703
    %v1706 = vadd.f32 %v1696, %v1704
    %v1707 = vtanh.pop %v1706
    %1709 = vrot.lane.b32.xlu0 %v1707, 48
    %v1710 = vpop.permute.xlu0 %1709
    %v1712 = vmul.f32 %v1694, %v1710
    %1714 = vrot.lane.b32.xlu0 %v1411, 104
    %v1715 = vpop.permute.xlu0 %1714
    %v1717 = vsel %vm151, %v1715, %v1706
    %v1719 = vsel %vm242, %v1717, 0
    %1721 = vmatpush.msra.mxu0 0.0
    %1722 = vmatpush.msra.mxu0 0.0
    %1723 = vmatpush.msra.mxu0 0.0
    %1724 = vmatpush.msra.mxu0 0.0
    %1725 = vmatpush.msra.mxu0 0.0
    %1726 = vmatpush.msra.mxu0 0.0
    %1727 = vmatpush.msra.mxu0 0.0
    %1728 = vmatpush.msra.mxu0 0.0
    %1729 = vmatpush.msra.mxu0 0.0
    %1730 = vmatpush.msra.mxu0 0.0
    %1731 = vmatpush.msra.mxu0 %v96
    %1732 = vmatpush.msra.mxu0 %v95
    %1733 = vmatpush.msra.mxu0 %v94
    %1734 = vmatpush.msra.mxu0 %v93
    %1735 = vmatpush.msra.mxu0 %v92
    %1736 = vmatpush.msra.mxu0 %v91
    %1737 = vmatmul.f32.gmra.mxu0 %v1719
    %v1738 = vpop.f32.mrf.mxu0
    %v1739 = vadd.f32 %v99, %v1738
    %1740 = vdwg.mxu0
    %v1741 = vmax.f32 %v1739, 0.0
    %v1743 = vsel %vm267, %v1741, 0
    %1745 = vmatpush.msra.mxu0 0.0
    %1746 = vmatpush.msra.mxu0 0.0
    %1747 = vmatpush.msra.mxu0 0.0
    %1748 = vmatpush.msra.mxu0 0.0
    %1749 = vmatpush.msra.mxu0 0.0
    %1750 = vmatpush.msra.mxu0 0.0
    %1751 = vmatpush.msra.mxu0 0.0
    %1752 = vmatpush.msra.mxu0 0.0
    %1753 = vmatpush.msra.mxu0 0.0
    %1754 = vmatpush.msra.mxu0 0.0
    %1755 = vmatpush.msra.mxu0 0.0
    %1756 = vmatpush.msra.mxu0 0.0
    %1757 = vmatpush.msra.mxu0 %v104
    %1758 = vmatpush.msra.mxu0 %v103
    %1759 = vmatpush.msra.mxu0 %v102
    %1760 = vmatpush.msra.mxu0 %v101
    %1761 = vmatmul.f32.gmra.mxu0 %v1743
    %v1762 = vpop.f32.mrf.mxu0
    %v1763 = vadd.f32 %v107, %v1762
    %1764 = vdwg.mxu0
    %v1765 = vsel %vm291, %v1763, -inf
    %1766 = vmax.xlane.f32.xlu0 %v1765
    %v1767 = vpop.xlane.xlu0 %1766
    %v1768 = vsub.f32 %v1763, %v1767
    %v1769 = vmul.f32 %v1768, 1.442695
    %v1770 = vpow.pop %v1769
    %v1771 = vsel %vm291, %v1770, 0.0
    %1772 = vadd.xlane.f32.xlu0 %v1771
    %v1773 = vpop.xlane.xlu0 %1772
    %v1774 = vrcp.pop %v1773
    %v1775 = vmul.f32 %v1773, %v1774
    %v1776 = vsub.f32 1.0, %v1775
    %v1777 = vmul.f32 %v1774, %v1776
    %v1778 = vadd.f32 %v1774, %v1777
    %vm1779 = vweird.f32 %v1773
    %vm1780 = vweird.f32 %v1774
    %vm1781 = vmor %vm1779, %vm1780
    %v1782 = vsel %vm1781, %v1774, %v1778
    %v1783 = vand.u32 2147483647, %v1773
    %vm1784 = vcmp.eq.f32.partialorder %v1783, 8.507059e+37
    %v1785 = vand.u32 %v1773, 2147483648
    %v1786 = vor.u32 1.1754944e-38, %v1785
    %v1787 = vsel %vm1784, %v1786, %v1782
    %v1788 = vmul.f32 %v1770, %v1787
    %v1789 = vmul.f32 %v1788, %v1717
    %v1791 = vsel %vm242, %v1789, 0
    %1793 = vmatpush.msra.mxu0 0.0
    %1794 = vmatpush.msra.mxu0 0.0
    %1795 = vmatpush.msra.mxu0 0.0
    %1796 = vmatpush.msra.mxu0 0.0
    %1797 = vmatpush.msra.mxu0 0.0
    %1798 = vmatpush.msra.mxu0 0.0
    %1799 = vmatpush.msra.mxu0 0.0
    %1800 = vmatpush.msra.mxu0 0.0
    %1801 = vmatpush.msra.mxu0 0.0
    %1802 = vmatpush.msra.mxu0 0.0
    %1803 = vmatpush.msra.mxu0 %v114
    %1804 = vmatpush.msra.mxu0 %v113
    %1805 = vmatpush.msra.mxu0 %v112
    %1806 = vmatpush.msra.mxu0 %v111
    %1807 = vmatpush.msra.mxu0 %v110
    %1808 = vmatpush.msra.mxu0 %v109
    %1809 = vmatmul.f32.gmra.mxu0 %v1791
    %v1810 = vpop.f32.mrf.mxu0
    %v1811 = vadd.f32 %v117, %v1810
    %1812 = vdwg.mxu0
    %v1813 = vmax.f32 %v1811, 0.0
    %v1815 = vsel %vm267, %v1813, 0
    %1817 = vmatpush.msra.mxu0 0.0
    %1818 = vmatpush.msra.mxu0 0.0
    %1819 = vmatpush.msra.mxu0 0.0
    %1820 = vmatpush.msra.mxu0 0.0
    %1821 = vmatpush.msra.mxu0 0.0
    %1822 = vmatpush.msra.mxu0 0.0
    %1823 = vmatpush.msra.mxu0 0.0
    %1824 = vmatpush.msra.mxu0 0.0
    %1825 = vmatpush.msra.mxu0 0.0
    %1826 = vmatpush.msra.mxu0 0.0
    %1827 = vmatpush.msra.mxu0 0.0
    %1828 = vmatpush.msra.mxu0 0.0
    %1829 = vmatpush.msra.mxu0 %v122
    %1830 = vmatpush.msra.mxu0 %v121
    %1831 = vmatpush.msra.mxu0 %v120
    %1832 = vmatpush.msra.mxu0 %v119
    %1833 = vmatmul.f32.gmra.mxu0 %v1815
    %v1834 = vpop.f32.mrf.mxu0
    %v1835 = vadd.f32 %v125, %v1834
    %1836 = vdwg.mxu0
    %v1837 = vtanh.pop %v1835
    %1839 = vrot.lane.b32.xlu0 %v1624, 48
    %v1840 = vpop.permute.xlu0 %1839
    %v1842 = vsel %vm242, %v1789, %v1840
    %v1844 = vsel %vm366, %v1842, 0
    %1846 = vmatpush.msra.mxu0 0.0
    %1847 = vmatpush.msra.mxu0 0.0
    %1848 = vmatpush.msra.mxu0 0.0
    %1849 = vmatpush.msra.mxu0 0.0
    %1850 = vmatpush.msra.mxu0 0.0
    %1851 = vmatpush.msra.mxu0 0.0
    %1852 = vmatpush.msra.mxu0 0.0
    %1853 = vmatpush.msra.mxu0 0.0
    %1854 = vmatpush.msra.mxu0 0.0
    %1855 = vmatpush.msra.mxu0 %v133
    %1856 = vmatpush.msra.mxu0 %v132
    %1857 = vmatpush.msra.mxu0 %v131
    %1858 = vmatpush.msra.mxu0 %v130
    %1859 = vmatpush.msra.mxu0 %v129
    %1860 = vmatpush.msra.mxu0 %v128
    %1861 = vmatpush.msra.mxu0 %v127
    %1862 = vmatmul.f32.gmra.mxu0 %v1844
    %v1863 = vpop.f32.mrf.mxu0
    %v1864 = vadd.f32 %v136, %v1863
    %1865 = vdwg.mxu0
    %v1866 = vmax.f32 %v1864, 0.0
    %v1868 = vsel %vm391, %v1866, 0
    %1870 = vmatpush.msra.mxu0 0.0
    %1871 = vmatpush.msra.mxu0 0.0
    %1872 = vmatpush.msra.mxu0 0.0
    %1873 = vmatpush.msra.mxu0 0.0
    %1874 = vmatpush.msra.mxu0 0.0
    %1875 = vmatpush.msra.mxu0 0.0
    %1876 = vmatpush.msra.mxu0 0.0
    %1877 = vmatpush.msra.mxu0 0.0
    %1878 = vmatpush.msra.mxu0 %v145
    %1879 = vmatpush.msra.mxu0 %v144
    %1880 = vmatpush.msra.mxu0 %v143
    %1881 = vmatpush.msra.mxu0 %v142
    %1882 = vmatpush.msra.mxu0 %v141
    %1883 = vmatpush.msra.mxu0 %v140
    %1884 = vmatpush.msra.mxu0 %v139
    %1885 = vmatpush.msra.mxu0 %v138
    %1886 = vmatmul.f32.gmra.mxu0 %v1868
    %v1887 = vpop.f32.mrf.mxu0
    %v1888 = vadd.f32 %v148, %v1887
    %1889 = vdwg.mxu0
    %v1890 = vxor.u32 %v1888, 2147483648
    %v1891 = vmul.f32 %v1890, 1.442695
    %v1892 = vpow.pop %v1891
    %v1893 = vadd.f32 %v1892, 1.0
    %v1894 = vrcp.pop %v1893
    %v1895 = vmul.f32 %v1893, %v1894
    %v1896 = vsub.f32 1.0, %v1895
    %v1897 = vmul.f32 %v1894, %v1896
    %v1898 = vadd.f32 %v1894, %v1897
    %vm1899 = vweird.f32 %v1893
    %vm1900 = vweird.f32 %v1894
    %vm1901 = vmor %vm1899, %vm1900
    %v1902 = vsel %vm1901, %v1894, %v1898
    %v1903 = vand.u32 2147483647, %v1893
    %vm1904 = vcmp.eq.f32.partialorder %v1903, 8.507059e+37
    %v1905 = vand.u32 %v1893, 2147483648
    %v1906 = vor.u32 1.1754944e-38, %v1905
    %v1907 = vsel %vm1904, %v1906, %v1902
    %v1908 = vmul.f32 1.0, %v1907
    %v1909 = vmul.f32 %v1908, %v1624
    %1911 = vrot.lane.b32.xlu0 %v1837, 8
    %v1912 = vpop.permute.xlu0 %1911
    %v1914 = vmul.f32 %v1908, %v1912
    %1916 = vrot.lane.b32.xlu0 %v1914, 120
    %v1917 = vpop.permute.xlu0 %1916
    %v1919 = vadd.f32 %v1909, %v1917
    %s1920 = scalar_lea.vmem %s0, 12
    %v1921 = vld [vmem:[%s1920] sm:$0x3]
    %1923 = vrot.lane.b32.xlu0 %v1712, 56
    %v1924 = vpop.permute.xlu0 %1923
    %v1925 = vsel %vm151, %v1924, 0
    %1927 = vmatpush.msra.mxu0 0.0
    %1928 = vmatpush.msra.mxu0 0.0
    %1929 = vmatpush.msra.mxu0 0.0
    %1930 = vmatpush.msra.mxu0 0.0
    %1931 = vmatpush.msra.mxu0 0.0
    %1932 = vmatpush.msra.mxu0 0.0
    %1933 = vmatpush.msra.mxu0 0.0
    %1934 = vmatpush.msra.mxu0 0.0
    %1935 = vmatpush.msra.mxu0 0.0
    %1936 = vmatpush.msra.mxu0 0.0
    %1937 = vmatpush.msra.mxu0 0.0
    %1938 = vmatpush.msra.mxu0 0.0
    %1939 = vmatpush.msra.mxu0 0.0
    %1940 = vmatpush.msra.mxu0 %v86
    %1941 = vmatpush.msra.mxu0 %v85
    %1942 = vmatpush.msra.mxu0 %v84
    %1943 = vmatmul.f32.gmra.mxu0 %v1925
    %v1944 = vpop.f32.mrf.mxu0
    %v1945 = vadd.f32 0.0, %v1944
    %1946 = vdwg.mxu0
    %v1948 = vsel %vm175, %v1921, 0
    %1950 = vmatpush.msra.mxu0 0.0
    %1951 = vmatpush.msra.mxu0 0.0
    %1952 = vmatpush.msra.mxu0 0.0
    %1953 = vmatpush.msra.mxu0 0.0
    %1954 = vmatpush.msra.mxu0 0.0
    %1955 = vmatpush.msra.mxu0 0.0
    %1956 = vmatpush.msra.mxu0 0.0
    %1957 = vmatpush.msra.mxu0 0.0
    %1958 = vmatpush.msra.mxu0 0.0
    %1959 = vmatpush.msra.mxu0 0.0
    %1960 = vmatpush.msra.mxu0 0.0
    %1961 = vmatpush.msra.mxu0 0.0
    %1962 = vmatpush.msra.mxu0 0.0
    %1963 = vmatpush.msra.mxu0 0.0
    %1964 = vmatpush.msra.mxu0 %v181
    %1965 = vmatpush.msra.mxu0 %v82
    %1966 = vmatmul.f32.gmra.mxu0 %v1948
    %v1967 = vpop.f32.mrf.mxu0
    %v1968 = vadd.f32 %v1945, %v1967
    %1969 = vdwg.mxu0
    %v1970 = vadd.f32 %v1968, %v89
    %v1971 = vxor.u32 %v1970, 2147483648
    %v1972 = vmul.f32 %v1971, 1.442695
    %v1973 = vpow.pop %v1972
    %v1974 = vadd.f32 %v1973, 1.0
    %v1975 = vrcp.pop %v1974
    %v1976 = vmul.f32 %v1974, %v1975
    %v1977 = vsub.f32 1.0, %v1976
    %v1978 = vmul.f32 %v1975, %v1977
    %v1979 = vadd.f32 %v1975, %v1978
    %vm1980 = vweird.f32 %v1974
    %vm1981 = vweird.f32 %v1975
    %vm1982 = vmor %vm1980, %vm1981
    %v1983 = vsel %vm1982, %v1975, %v1979
    %v1984 = vand.u32 2147483647, %v1974
    %vm1985 = vcmp.eq.f32.partialorder %v1984, 8.507059e+37
    %v1986 = vand.u32 %v1974, 2147483648
    %v1987 = vor.u32 1.1754944e-38, %v1986
    %v1988 = vsel %vm1985, %v1987, %v1983
    %v1989 = vmul.f32 1.0, %v1988
    %v1990 = vtanh.pop %v1970
    %v1991 = vmul.f32 %v1989, %v1706
    %1993 = vrot.lane.b32.xlu0 %v1990, 80
    %v1994 = vpop.permute.xlu0 %1993
    %v1996 = vmul.f32 %v1989, %v1994
    %1998 = vrot.lane.b32.xlu0 %v1996, 24
    %v1999 = vpop.permute.xlu0 %1998
    %v2001 = vadd.f32 %v1991, %v1999
    %v2002 = vtanh.pop %v2001
    %2004 = vrot.lane.b32.xlu0 %v2002, 48
    %v2005 = vpop.permute.xlu0 %2004
    %v2007 = vmul.f32 %v1989, %v2005
    %2009 = vrot.lane.b32.xlu0 %v1706, 104
    %v2010 = vpop.permute.xlu0 %2009
    %v2012 = vsel %vm151, %v2010, %v2001
    %v2014 = vsel %vm242, %v2012, 0
    %2016 = vmatpush.msra.mxu0 0.0
    %2017 = vmatpush.msra.mxu0 0.0
    %2018 = vmatpush.msra.mxu0 0.0
    %2019 = vmatpush.msra.mxu0 0.0
    %2020 = vmatpush.msra.mxu0 0.0
    %2021 = vmatpush.msra.mxu0 0.0
    %2022 = vmatpush.msra.mxu0 0.0
    %2023 = vmatpush.msra.mxu0 0.0
    %2024 = vmatpush.msra.mxu0 0.0
    %2025 = vmatpush.msra.mxu0 0.0
    %2026 = vmatpush.msra.mxu0 %v96
    %2027 = vmatpush.msra.mxu0 %v95
    %2028 = vmatpush.msra.mxu0 %v94
    %2029 = vmatpush.msra.mxu0 %v93
    %2030 = vmatpush.msra.mxu0 %v92
    %2031 = vmatpush.msra.mxu0 %v91
    %2032 = vmatmul.f32.gmra.mxu0 %v2014
    %v2033 = vpop.f32.mrf.mxu0
    %v2034 = vadd.f32 %v99, %v2033
    %2035 = vdwg.mxu0
    %v2036 = vmax.f32 %v2034, 0.0
    %v2038 = vsel %vm267, %v2036, 0
    %2040 = vmatpush.msra.mxu0 0.0
    %2041 = vmatpush.msra.mxu0 0.0
    %2042 = vmatpush.msra.mxu0 0.0
    %2043 = vmatpush.msra.mxu0 0.0
    %2044 = vmatpush.msra.mxu0 0.0
    %2045 = vmatpush.msra.mxu0 0.0
    %2046 = vmatpush.msra.mxu0 0.0
    %2047 = vmatpush.msra.mxu0 0.0
    %2048 = vmatpush.msra.mxu0 0.0
    %2049 = vmatpush.msra.mxu0 0.0
    %2050 = vmatpush.msra.mxu0 0.0
    %2051 = vmatpush.msra.mxu0 0.0
    %2052 = vmatpush.msra.mxu0 %v104
    %2053 = vmatpush.msra.mxu0 %v103
    %2054 = vmatpush.msra.mxu0 %v102
    %2055 = vmatpush.msra.mxu0 %v101
    %2056 = vmatmul.f32.gmra.mxu0 %v2038
    %v2057 = vpop.f32.mrf.mxu0
    %v2058 = vadd.f32 %v107, %v2057
    %2059 = vdwg.mxu0
    %v2060 = vsel %vm291, %v2058, -inf
    %2061 = vmax.xlane.f32.xlu0 %v2060
    %v2062 = vpop.xlane.xlu0 %2061
    %v2063 = vsub.f32 %v2058, %v2062
    %v2064 = vmul.f32 %v2063, 1.442695
    %v2065 = vpow.pop %v2064
    %v2066 = vsel %vm291, %v2065, 0.0
    %2067 = vadd.xlane.f32.xlu0 %v2066
    %v2068 = vpop.xlane.xlu0 %2067
    %v2069 = vrcp.pop %v2068
    %v2070 = vmul.f32 %v2068, %v2069
    %v2071 = vsub.f32 1.0, %v2070
    %v2072 = vmul.f32 %v2069, %v2071
    %v2073 = vadd.f32 %v2069, %v2072
    %vm2074 = vweird.f32 %v2068
    %vm2075 = vweird.f32 %v2069
    %vm2076 = vmor %vm2074, %vm2075
    %v2077 = vsel %vm2076, %v2069, %v2073
    %v2078 = vand.u32 2147483647, %v2068
    %vm2079 = vcmp.eq.f32.partialorder %v2078, 8.507059e+37
    %v2080 = vand.u32 %v2068, 2147483648
    %v2081 = vor.u32 1.1754944e-38, %v2080
    %v2082 = vsel %vm2079, %v2081, %v2077
    %v2083 = vmul.f32 %v2065, %v2082
    %v2084 = vmul.f32 %v2083, %v2012
    %v2086 = vsel %vm242, %v2084, 0
    %2088 = vmatpush.msra.mxu0 0.0
    %2089 = vmatpush.msra.mxu0 0.0
    %2090 = vmatpush.msra.mxu0 0.0
    %2091 = vmatpush.msra.mxu0 0.0
    %2092 = vmatpush.msra.mxu0 0.0
    %2093 = vmatpush.msra.mxu0 0.0
    %2094 = vmatpush.msra.mxu0 0.0
    %2095 = vmatpush.msra.mxu0 0.0
    %2096 = vmatpush.msra.mxu0 0.0
    %2097 = vmatpush.msra.mxu0 0.0
    %2098 = vmatpush.msra.mxu0 %v114
    %2099 = vmatpush.msra.mxu0 %v113
    %2100 = vmatpush.msra.mxu0 %v112
    %2101 = vmatpush.msra.mxu0 %v111
    %2102 = vmatpush.msra.mxu0 %v110
    %2103 = vmatpush.msra.mxu0 %v109
    %2104 = vmatmul.f32.gmra.mxu0 %v2086
    %v2105 = vpop.f32.mrf.mxu0
    %v2106 = vadd.f32 %v117, %v2105
    %2107 = vdwg.mxu0
    %v2108 = vmax.f32 %v2106, 0.0
    %v2110 = vsel %vm267, %v2108, 0
    %2112 = vmatpush.msra.mxu0 0.0
    %2113 = vmatpush.msra.mxu0 0.0
    %2114 = vmatpush.msra.mxu0 0.0
    %2115 = vmatpush.msra.mxu0 0.0
    %2116 = vmatpush.msra.mxu0 0.0
    %2117 = vmatpush.msra.mxu0 0.0
    %2118 = vmatpush.msra.mxu0 0.0
    %2119 = vmatpush.msra.mxu0 0.0
    %2120 = vmatpush.msra.mxu0 0.0
    %2121 = vmatpush.msra.mxu0 0.0
    %2122 = vmatpush.msra.mxu0 0.0
    %2123 = vmatpush.msra.mxu0 0.0
    %2124 = vmatpush.msra.mxu0 %v122
    %2125 = vmatpush.msra.mxu0 %v121
    %2126 = vmatpush.msra.mxu0 %v120
    %2127 = vmatpush.msra.mxu0 %v119
    %2128 = vmatmul.f32.gmra.mxu0 %v2110
    %v2129 = vpop.f32.mrf.mxu0
    %v2130 = vadd.f32 %v125, %v2129
    %2131 = vdwg.mxu0
    %v2132 = vtanh.pop %v2130
    %2134 = vrot.lane.b32.xlu0 %v1919, 48
    %v2135 = vpop.permute.xlu0 %2134
    %v2137 = vsel %vm242, %v2084, %v2135
    %v2139 = vsel %vm366, %v2137, 0
    %2141 = vmatpush.msra.mxu0 0.0
    %2142 = vmatpush.msra.mxu0 0.0
    %2143 = vmatpush.msra.mxu0 0.0
    %2144 = vmatpush.msra.mxu0 0.0
    %2145 = vmatpush.msra.mxu0 0.0
    %2146 = vmatpush.msra.mxu0 0.0
    %2147 = vmatpush.msra.mxu0 0.0
    %2148 = vmatpush.msra.mxu0 0.0
    %2149 = vmatpush.msra.mxu0 0.0
    %2150 = vmatpush.msra.mxu0 %v133
    %2151 = vmatpush.msra.mxu0 %v132
    %2152 = vmatpush.msra.mxu0 %v131
    %2153 = vmatpush.msra.mxu0 %v130
    %2154 = vmatpush.msra.mxu0 %v129
    %2155 = vmatpush.msra.mxu0 %v128
    %2156 = vmatpush.msra.mxu0 %v127
    %2157 = vmatmul.f32.gmra.mxu0 %v2139
    %v2158 = vpop.f32.mrf.mxu0
    %v2159 = vadd.f32 %v136, %v2158
    %2160 = vdwg.mxu0
    %v2161 = vmax.f32 %v2159, 0.0
    %v2163 = vsel %vm391, %v2161, 0
    %2165 = vmatpush.msra.mxu0 0.0
    %2166 = vmatpush.msra.mxu0 0.0
    %2167 = vmatpush.msra.mxu0 0.0
    %2168 = vmatpush.msra.mxu0 0.0
    %2169 = vmatpush.msra.mxu0 0.0
    %2170 = vmatpush.msra.mxu0 0.0
    %2171 = vmatpush.msra.mxu0 0.0
    %2172 = vmatpush.msra.mxu0 0.0
    %2173 = vmatpush.msra.mxu0 %v145
    %2174 = vmatpush.msra.mxu0 %v144
    %2175 = vmatpush.msra.mxu0 %v143
    %2176 = vmatpush.msra.mxu0 %v142
    %2177 = vmatpush.msra.mxu0 %v141
    %2178 = vmatpush.msra.mxu0 %v140
    %2179 = vmatpush.msra.mxu0 %v139
    %2180 = vmatpush.msra.mxu0 %v138
    %2181 = vmatmul.f32.gmra.mxu0 %v2163
    %v2182 = vpop.f32.mrf.mxu0
    %v2183 = vadd.f32 %v148, %v2182
    %2184 = vdwg.mxu0
    %v2185 = vxor.u32 %v2183, 2147483648
    %v2186 = vmul.f32 %v2185, 1.442695
    %v2187 = vpow.pop %v2186
    %v2188 = vadd.f32 %v2187, 1.0
    %v2189 = vrcp.pop %v2188
    %v2190 = vmul.f32 %v2188, %v2189
    %v2191 = vsub.f32 1.0, %v2190
    %v2192 = vmul.f32 %v2189, %v2191
    %v2193 = vadd.f32 %v2189, %v2192
    %vm2194 = vweird.f32 %v2188
    %vm2195 = vweird.f32 %v2189
    %vm2196 = vmor %vm2194, %vm2195
    %v2197 = vsel %vm2196, %v2189, %v2193
    %v2198 = vand.u32 2147483647, %v2188
    %vm2199 = vcmp.eq.f32.partialorder %v2198, 8.507059e+37
    %v2200 = vand.u32 %v2188, 2147483648
    %v2201 = vor.u32 1.1754944e-38, %v2200
    %v2202 = vsel %vm2199, %v2201, %v2197
    %v2203 = vmul.f32 1.0, %v2202
    %v2204 = vmul.f32 %v2203, %v1919
    %2206 = vrot.lane.b32.xlu0 %v2132, 8
    %v2207 = vpop.permute.xlu0 %2206
    %v2209 = vmul.f32 %v2203, %v2207
    %2211 = vrot.lane.b32.xlu0 %v2209, 120
    %v2212 = vpop.permute.xlu0 %2211
    %v2214 = vadd.f32 %v2204, %v2212
    %s2215 = scalar_lea.vmem %s0, 14
    %v2216 = vld [vmem:[%s2215] sm:$0x3]
    %2218 = vrot.lane.b32.xlu0 %v2007, 56
    %v2219 = vpop.permute.xlu0 %2218
    %v2220 = vsel %vm151, %v2219, 0
    %2222 = vmatpush.msra.mxu0 0.0
    %2223 = vmatpush.msra.mxu0 0.0
    %2224 = vmatpush.msra.mxu0 0.0
    %2225 = vmatpush.msra.mxu0 0.0
    %2226 = vmatpush.msra.mxu0 0.0
    %2227 = vmatpush.msra.mxu0 0.0
    %2228 = vmatpush.msra.mxu0 0.0
    %2229 = vmatpush.msra.mxu0 0.0
    %2230 = vmatpush.msra.mxu0 0.0
    %2231 = vmatpush.msra.mxu0 0.0
    %2232 = vmatpush.msra.mxu0 0.0
    %2233 = vmatpush.msra.mxu0 0.0
    %2234 = vmatpush.msra.mxu0 0.0
    %2235 = vmatpush.msra.mxu0 %v86
    %2236 = vmatpush.msra.mxu0 %v85
    %2237 = vmatpush.msra.mxu0 %v84
    %2238 = vmatmul.f32.gmra.mxu0 %v2220
    %v2239 = vpop.f32.mrf.mxu0
    %v2240 = vadd.f32 0.0, %v2239
    %2241 = vdwg.mxu0
    %v2243 = vsel %vm175, %v2216, 0
    %2245 = vmatpush.msra.mxu0 0.0
    %2246 = vmatpush.msra.mxu0 0.0
    %2247 = vmatpush.msra.mxu0 0.0
    %2248 = vmatpush.msra.mxu0 0.0
    %2249 = vmatpush.msra.mxu0 0.0
    %2250 = vmatpush.msra.mxu0 0.0
    %2251 = vmatpush.msra.mxu0 0.0
    %2252 = vmatpush.msra.mxu0 0.0
    %2253 = vmatpush.msra.mxu0 0.0
    %2254 = vmatpush.msra.mxu0 0.0
    %2255 = vmatpush.msra.mxu0 0.0
    %2256 = vmatpush.msra.mxu0 0.0
    %2257 = vmatpush.msra.mxu0 0.0
    %2258 = vmatpush.msra.mxu0 0.0
    %2259 = vmatpush.msra.mxu0 %v181
    %2260 = vmatpush.msra.mxu0 %v82
    %2261 = vmatmul.f32.gmra.mxu0 %v2243
    %v2262 = vpop.f32.mrf.mxu0
    %v2263 = vadd.f32 %v2240, %v2262
    %2264 = vdwg.mxu0
    %v2265 = vadd.f32 %v2263, %v89
    %v2266 = vxor.u32 %v2265, 2147483648
    %v2267 = vmul.f32 %v2266, 1.442695
    %v2268 = vpow.pop %v2267
    %v2269 = vadd.f32 %v2268, 1.0
    %v2270 = vrcp.pop %v2269
    %v2271 = vmul.f32 %v2269, %v2270
    %v2272 = vsub.f32 1.0, %v2271
    %v2273 = vmul.f32 %v2270, %v2272
    %v2274 = vadd.f32 %v2270, %v2273
    %vm2275 = vweird.f32 %v2269
    %vm2276 = vweird.f32 %v2270
    %vm2277 = vmor %vm2275, %vm2276
    %v2278 = vsel %vm2277, %v2270, %v2274
    %v2279 = vand.u32 2147483647, %v2269
    %vm2280 = vcmp.eq.f32.partialorder %v2279, 8.507059e+37
    %v2281 = vand.u32 %v2269, 2147483648
    %v2282 = vor.u32 1.1754944e-38, %v2281
    %v2283 = vsel %vm2280, %v2282, %v2278
    %v2284 = vmul.f32 1.0, %v2283
    %v2285 = vtanh.pop %v2265
    %v2286 = vmul.f32 %v2284, %v2001
    %2288 = vrot.lane.b32.xlu0 %v2285, 80
    %v2289 = vpop.permute.xlu0 %2288
    %v2291 = vmul.f32 %v2284, %v2289
    %2293 = vrot.lane.b32.xlu0 %v2291, 24
    %v2294 = vpop.permute.xlu0 %2293
    %v2296 = vadd.f32 %v2286, %v2294
    %v2297 = vtanh.pop %v2296
    %2299 = vrot.lane.b32.xlu0 %v2297, 48
    %v2300 = vpop.permute.xlu0 %2299
    %v2302 = vmul.f32 %v2284, %v2300
    %2304 = vrot.lane.b32.xlu0 %v2001, 104
    %v2305 = vpop.permute.xlu0 %2304
    %v2307 = vsel %vm151, %v2305, %v2296
    %v2309 = vsel %vm242, %v2307, 0
    %2311 = vmatpush.msra.mxu0 0.0
    %2312 = vmatpush.msra.mxu0 0.0
    %2313 = vmatpush.msra.mxu0 0.0
    %2314 = vmatpush.msra.mxu0 0.0
    %2315 = vmatpush.msra.mxu0 0.0
    %2316 = vmatpush.msra.mxu0 0.0
    %2317 = vmatpush.msra.mxu0 0.0
    %2318 = vmatpush.msra.mxu0 0.0
    %2319 = vmatpush.msra.mxu0 0.0
    %2320 = vmatpush.msra.mxu0 0.0
    %2321 = vmatpush.msra.mxu0 %v96
    %2322 = vmatpush.msra.mxu0 %v95
    %2323 = vmatpush.msra.mxu0 %v94
    %2324 = vmatpush.msra.mxu0 %v93
    %2325 = vmatpush.msra.mxu0 %v92
    %2326 = vmatpush.msra.mxu0 %v91
    %2327 = vmatmul.f32.gmra.mxu0 %v2309
    %v2328 = vpop.f32.mrf.mxu0
    %v2329 = vadd.f32 %v99, %v2328
    %2330 = vdwg.mxu0
    %v2331 = vmax.f32 %v2329, 0.0
    %v2333 = vsel %vm267, %v2331, 0
    %2335 = vmatpush.msra.mxu0 0.0
    %2336 = vmatpush.msra.mxu0 0.0
    %2337 = vmatpush.msra.mxu0 0.0
    %2338 = vmatpush.msra.mxu0 0.0
    %2339 = vmatpush.msra.mxu0 0.0
    %2340 = vmatpush.msra.mxu0 0.0
    %2341 = vmatpush.msra.mxu0 0.0
    %2342 = vmatpush.msra.mxu0 0.0
    %2343 = vmatpush.msra.mxu0 0.0
    %2344 = vmatpush.msra.mxu0 0.0
    %2345 = vmatpush.msra.mxu0 0.0
    %2346 = vmatpush.msra.mxu0 0.0
    %2347 = vmatpush.msra.mxu0 %v104
    %2348 = vmatpush.msra.mxu0 %v103
    %2349 = vmatpush.msra.mxu0 %v102
    %2350 = vmatpush.msra.mxu0 %v101
    %2351 = vmatmul.f32.gmra.mxu0 %v2333
    %v2352 = vpop.f32.mrf.mxu0
    %v2353 = vadd.f32 %v107, %v2352
    %2354 = vdwg.mxu0
    %v2355 = vsel %vm291, %v2353, -inf
    %2356 = vmax.xlane.f32.xlu0 %v2355
    %v2357 = vpop.xlane.xlu0 %2356
    %v2358 = vsub.f32 %v2353, %v2357
    %v2359 = vmul.f32 %v2358, 1.442695
    %v2360 = vpow.pop %v2359
    %v2361 = vsel %vm291, %v2360, 0.0
    %2362 = vadd.xlane.f32.xlu0 %v2361
    %v2363 = vpop.xlane.xlu0 %2362
    %v2364 = vrcp.pop %v2363
    %v2365 = vmul.f32 %v2363, %v2364
    %v2366 = vsub.f32 1.0, %v2365
    %v2367 = vmul.f32 %v2364, %v2366
    %v2368 = vadd.f32 %v2364, %v2367
    %vm2369 = vweird.f32 %v2363
    %vm2370 = vweird.f32 %v2364
    %vm2371 = vmor %vm2369, %vm2370
    %v2372 = vsel %vm2371, %v2364, %v2368
    %v2373 = vand.u32 2147483647, %v2363
    %vm2374 = vcmp.eq.f32.partialorder %v2373, 8.507059e+37
    %v2375 = vand.u32 %v2363, 2147483648
    %v2376 = vor.u32 1.1754944e-38, %v2375
    %v2377 = vsel %vm2374, %v2376, %v2372
    %v2378 = vmul.f32 %v2360, %v2377
    %v2379 = vmul.f32 %v2378, %v2307
    %v2381 = vsel %vm242, %v2379, 0
    %2383 = vmatpush.msra.mxu0 0.0
    %2384 = vmatpush.msra.mxu0 0.0
    %2385 = vmatpush.msra.mxu0 0.0
    %2386 = vmatpush.msra.mxu0 0.0
    %2387 = vmatpush.msra.mxu0 0.0
    %2388 = vmatpush.msra.mxu0 0.0
    %2389 = vmatpush.msra.mxu0 0.0
    %2390 = vmatpush.msra.mxu0 0.0
    %2391 = vmatpush.msra.mxu0 0.0
    %2392 = vmatpush.msra.mxu0 0.0
    %2393 = vmatpush.msra.mxu0 %v114
    %2394 = vmatpush.msra.mxu0 %v113
    %2395 = vmatpush.msra.mxu0 %v112
    %2396 = vmatpush.msra.mxu0 %v111
    %2397 = vmatpush.msra.mxu0 %v110
    %2398 = vmatpush.msra.mxu0 %v109
    %2399 = vmatmul.f32.gmra.mxu0 %v2381
    %v2400 = vpop.f32.mrf.mxu0
    %v2401 = vadd.f32 %v117, %v2400
    %2402 = vdwg.mxu0
    %v2403 = vmax.f32 %v2401, 0.0
    %v2405 = vsel %vm267, %v2403, 0
    %2407 = vmatpush.msra.mxu0 0.0
    %2408 = vmatpush.msra.mxu0 0.0
    %2409 = vmatpush.msra.mxu0 0.0
    %2410 = vmatpush.msra.mxu0 0.0
    %2411 = vmatpush.msra.mxu0 0.0
    %2412 = vmatpush.msra.mxu0 0.0
    %2413 = vmatpush.msra.mxu0 0.0
    %2414 = vmatpush.msra.mxu0 0.0
    %2415 = vmatpush.msra.mxu0 0.0
    %2416 = vmatpush.msra.mxu0 0.0
    %2417 = vmatpush.msra.mxu0 0.0
    %2418 = vmatpush.msra.mxu0 0.0
    %2419 = vmatpush.msra.mxu0 %v122
    %2420 = vmatpush.msra.mxu0 %v121
    %2421 = vmatpush.msra.mxu0 %v120
    %2422 = vmatpush.msra.mxu0 %v119
    %2423 = vmatmul.f32.gmra.mxu0 %v2405
    %v2424 = vpop.f32.mrf.mxu0
    %v2425 = vadd.f32 %v125, %v2424
    %2426 = vdwg.mxu0
    %v2427 = vtanh.pop %v2425
    %2429 = vrot.lane.b32.xlu0 %v2214, 48
    %v2430 = vpop.permute.xlu0 %2429
    %v2432 = vsel %vm242, %v2379, %v2430
    %v2434 = vsel %vm366, %v2432, 0
    %2436 = vmatpush.msra.mxu0 0.0
    %2437 = vmatpush.msra.mxu0 0.0
    %2438 = vmatpush.msra.mxu0 0.0
    %2439 = vmatpush.msra.mxu0 0.0
    %2440 = vmatpush.msra.mxu0 0.0
    %2441 = vmatpush.msra.mxu0 0.0
    %2442 = vmatpush.msra.mxu0 0.0
    %2443 = vmatpush.msra.mxu0 0.0
    %2444 = vmatpush.msra.mxu0 0.0
    %2445 = vmatpush.msra.mxu0 %v133
    %2446 = vmatpush.msra.mxu0 %v132
    %2447 = vmatpush.msra.mxu0 %v131
    %2448 = vmatpush.msra.mxu0 %v130
    %2449 = vmatpush.msra.mxu0 %v129
    %2450 = vmatpush.msra.mxu0 %v128
    %2451 = vmatpush.msra.mxu0 %v127
    %2452 = vmatmul.f32.gmra.mxu0 %v2434
    %v2453 = vpop.f32.mrf.mxu0
    %v2454 = vadd.f32 %v136, %v2453
    %2455 = vdwg.mxu0
    %v2456 = vmax.f32 %v2454, 0.0
    %v2458 = vsel %vm391, %v2456, 0
    %2460 = vmatpush.msra.mxu0 0.0
    %2461 = vmatpush.msra.mxu0 0.0
    %2462 = vmatpush.msra.mxu0 0.0
    %2463 = vmatpush.msra.mxu0 0.0
    %2464 = vmatpush.msra.mxu0 0.0
    %2465 = vmatpush.msra.mxu0 0.0
    %2466 = vmatpush.msra.mxu0 0.0
    %2467 = vmatpush.msra.mxu0 0.0
    %2468 = vmatpush.msra.mxu0 %v145
    %2469 = vmatpush.msra.mxu0 %v144
    %2470 = vmatpush.msra.mxu0 %v143
    %2471 = vmatpush.msra.mxu0 %v142
    %2472 = vmatpush.msra.mxu0 %v141
    %2473 = vmatpush.msra.mxu0 %v140
    %2474 = vmatpush.msra.mxu0 %v139
    %2475 = vmatpush.msra.mxu0 %v138
    %2476 = vmatmul.f32.gmra.mxu0 %v2458
    %v2477 = vpop.f32.mrf.mxu0
    %v2478 = vadd.f32 %v148, %v2477
    %2479 = vdwg.mxu0
    %v2480 = vxor.u32 %v2478, 2147483648
    %v2481 = vmul.f32 %v2480, 1.442695
    %v2482 = vpow.pop %v2481
    %v2483 = vadd.f32 %v2482, 1.0
    %v2484 = vrcp.pop %v2483
    %v2485 = vmul.f32 %v2483, %v2484
    %v2486 = vsub.f32 1.0, %v2485
    %v2487 = vmul.f32 %v2484, %v2486
    %v2488 = vadd.f32 %v2484, %v2487
    %vm2489 = vweird.f32 %v2483
    %vm2490 = vweird.f32 %v2484
    %vm2491 = vmor %vm2489, %vm2490
    %v2492 = vsel %vm2491, %v2484, %v2488
    %v2493 = vand.u32 2147483647, %v2483
    %vm2494 = vcmp.eq.f32.partialorder %v2493, 8.507059e+37
    %v2495 = vand.u32 %v2483, 2147483648
    %v2496 = vor.u32 1.1754944e-38, %v2495
    %v2497 = vsel %vm2494, %v2496, %v2492
    %v2498 = vmul.f32 1.0, %v2497
    %v2499 = vmul.f32 %v2498, %v2214
    %2501 = vrot.lane.b32.xlu0 %v2427, 8
    %v2502 = vpop.permute.xlu0 %2501
    %v2504 = vmul.f32 %v2498, %v2502
    %2506 = vrot.lane.b32.xlu0 %v2504, 120
    %v2507 = vpop.permute.xlu0 %2506
    %v2509 = vadd.f32 %v2499, %v2507
    %2511 = vrot.lane.b32.xlu0 %v2302, 56
    %v2512 = vpop.permute.xlu0 %2511
    %2515 = vrot.lane.b32.xlu0 %v2509, 24
    %v2516 = vpop.permute.xlu0 %2515
    %v2518 = vsel %vm151, %v2512, %v2516
    %v2519 = vld [vmem:[%s16] sm:$0xff]
    %v2520 = vld [vmem:[%s16 + $0x8] sm:$0xff]
    %v2521 = vld [vmem:[%s16 + $0x10] sm:$0xff]
    %v2522 = vld [vmem:[%s16 + $0x18] sm:$0xff]
    %v2523 = vld [vmem:[%s17] sm:$0x1]
    %v2525 = vperm.slane %v2523, 0
    %v2528 = vsel %vm267, %v2518, 0
    %2530 = vmatpush.msra.mxu0 0.0
    %2531 = vmatpush.msra.mxu0 0.0
    %2532 = vmatpush.msra.mxu0 0.0
    %2533 = vmatpush.msra.mxu0 0.0
    %2534 = vmatpush.msra.mxu0 0.0
    %2535 = vmatpush.msra.mxu0 0.0
    %2536 = vmatpush.msra.mxu0 0.0
    %2537 = vmatpush.msra.mxu0 0.0
    %2538 = vmatpush.msra.mxu0 0.0
    %2539 = vmatpush.msra.mxu0 0.0
    %2540 = vmatpush.msra.mxu0 0.0
    %2541 = vmatpush.msra.mxu0 0.0
    %2542 = vmatpush.msra.mxu0 %v2522
    %2543 = vmatpush.msra.mxu0 %v2521
    %2544 = vmatpush.msra.mxu0 %v2520
    %2545 = vmatpush.msra.mxu0 %v2519
    %2546 = vmatmul.f32.gmra.mxu0 %v2528
    %v2547 = vpop.f32.mrf.mxu0
    %v2548 = vadd.f32 %v2525, %v2547
    %2549 = vdwg.mxu0
    %v2550 = vmax.f32 %v2548, 0.0
    %v2551 = vld [vmem:[%s18] sm:$0xff]
    %v2552 = vld [vmem:[%s18 + $0x8] sm:$0xff]
    %v2553 = vld [vmem:[%s18 + $0x10] sm:$0xff]
    %v2554 = vld [vmem:[%s18 + $0x18] sm:$0xff]
    %v2555 = vld [vmem:[%s19] sm:$0x1]
    %v2557 = vperm.slane %v2555, 0
    %v2560 = vsel %vm267, %v2550, 0
    %2562 = vmatpush.msra.mxu0 0.0
    %2563 = vmatpush.msra.mxu0 0.0
    %2564 = vmatpush.msra.mxu0 0.0
    %2565 = vmatpush.msra.mxu0 0.0
    %2566 = vmatpush.msra.mxu0 0.0
    %2567 = vmatpush.msra.mxu0 0.0
    %2568 = vmatpush.msra.mxu0 0.0
    %2569 = vmatpush.msra.mxu0 0.0
    %2570 = vmatpush.msra.mxu0 0.0
    %2571 = vmatpush.msra.mxu0 0.0
    %2572 = vmatpush.msra.mxu0 0.0
    %2573 = vmatpush.msra.mxu0 0.0
    %2574 = vmatpush.msra.mxu0 %v2554
    %2575 = vmatpush.msra.mxu0 %v2553
    %2576 = vmatpush.msra.mxu0 %v2552
    %2577 = vmatpush.msra.mxu0 %v2551
    %2578 = vmatmul.f32.gmra.mxu0 %v2560
    %v2579 = vpop.f32.mrf.mxu0
    %v2580 = vadd.f32 %v2557, %v2579
    %2581 = vdwg.mxu0
    %2582 = vst [vmem:[#allocation5] sm:$0x3] %v2580
    // Predicated region
    $region86: #{tpu_custom_call.1} parent=1 // pred_check
      _
    $region87: #{tpu_custom_call.1} parent=1 // pred_check_branch
      %2584 = sbr.rel (0) target = $region89
    $region88: #{tpu_custom_call.1} parent=1 // pred_region
      %2586 = vsyncadd [#allocation4], 0
      %s2588 = sshll.u32 [#allocation5], 4
      %s2589 = int_to_ptr.vmem [resolvable:$true] %s2588
      %s2590 = sshll.u32 %s20, 4
      %s2591 = int_to_ptr.hbm [resolvable:$true] %s2590
      %2593 = dma.vmem_to_hbm [thread:$0]  %s2589, 32, %s2591, [#allocation4]
    $region89: #{tpu_custom_call.1} parent=1 // pred_fallthru
      _
    // Predicated region
    $region90: #{tpu_custom_call.1} parent=1 // pred_check
      _
    $region91: #{tpu_custom_call.1} parent=1 // pred_check_branch
      %2595 = sbr.rel (0) target = $region93
    $region92: #{tpu_custom_call.1} parent=1 // pred_region
      %2597 = dma.done [#allocation4], 32
    $region93: #{tpu_custom_call.1} parent=1 // pred_fallthru
      _
    %2598 = vsyncpa [#allocation3], 1
    %2599 = vsyncpa [#allocation4], 1

</llo_original>
